<compile_context>
chip_gen: v7x
topology: tpu7x:2x2x1
jax: 0.10.0
libtpu: 0.0.40
codegen_flags: <defaults>
</compile_context>

<pallas_src>
import functools

import jax
import jax.numpy as jnp
from jax import lax
from jax.experimental import pallas as pl
from jax.experimental.pallas import tpu as pltpu

LANE = 128


def _round_up(x, m):
    return (x + m - 1) // m * m


# ---------------------------------------------------------------------------
# Kernel: one (row-tile, batch) block per grid step.
# ---------------------------------------------------------------------------
def resblock_kernel(x_hbm, bn1s_ref, bn1b_ref, w1_ref, b1_ref,
                    w2_ref, b2_ref, w3_ref, wsc_ref, bfin_ref,
                    out_ref, buf_ref, sem, patch_ref, *, ew_dtype):
    t = pl.program_id(0)              # row-tile index (parallel axis)
    n = pl.program_id(1)              # batch index    (arbitrary / prefetch axis)
    n_th = pl.num_programs(0)
    nb = pl.num_programs(1)

    _, th, W, Cop = out_ref.shape     # output block (1, th, W, Cop)
    Cp = w1_ref.shape[0]
    THp = th + 2                      # row tile + 1-row halo on each side
    M = th * W
    Mh = THp * W
    NH = x_hbm.shape[0]               # N * H rows

    slot = n % 2
    base = slot * THp

    # ---- manual HBM -> VMEM fetch of the halo'd row window (P4 pattern) ----
    # 3 copies per tile: core rows + top halo row + bottom halo row.  Halo row
    # sources are clamped to stay in-bounds; rows that correspond to image
    # padding are zeroed by the conv2 mask below, so clamped content is never used.
    def tile_copies(batch, s):
        row0 = (batch * n_th + t) * th            # first interior row in x_hbm
        b0 = s * THp
        top_src = jnp.maximum(row0 - 1, 0)
        bot_src = jnp.minimum(row0 + th, NH - 1)
        return (
            pltpu.make_async_copy(x_hbm.at[pl.ds(row0, th)],
                                  buf_ref.at[pl.ds(b0 + 1, th)], sem.at[s, 0]),
            pltpu.make_async_copy(x_hbm.at[pl.ds(top_src, 1)],
                                  buf_ref.at[pl.ds(b0, 1)], sem.at[s, 1]),
            pltpu.make_async_copy(x_hbm.at[pl.ds(bot_src, 1)],
                                  buf_ref.at[pl.ds(b0 + th + 1, 1)], sem.at[s, 2]),
        )

    def start_fetch(batch, s):
        for c in tile_copies(batch, s):
            c.start()

    def wait_fetch(batch, s):
        for c in tile_copies(batch, s):
            c.wait()

    # Prime the double buffer on the first batch element of this row tile.
    @pl.when(n == 0)
    def _():
        start_fetch(0, 0)

    # Wait for this step's window, then prefetch the next batch element's window.
    wait_fetch(n, slot)

    @pl.when(n + 1 < nb)
    def _():
        start_fetch(n + 1, 1 - slot)

    # ------------------------------- compute --------------------------------
    xt = buf_ref[pl.ds(base, THp), :, :]                  # (THp, W, Cp) bf16
    xe = xt.astype(ew_dtype).reshape(Mh, Cp)

    # conv1 block: BN1 -> ReLU -> 1x1 conv (BN2 pre-folded into w1/b1).
    h1 = jnp.maximum(xe * bn1s_ref[...] + bn1b_ref[...], 0)
    x1 = jnp.dot(h1.astype(jnp.bfloat16), w1_ref[...],
                 preferred_element_type=jnp.float32)
    # conv2 block input: ReLU (BN2 already applied via folding), bias fused in.
    h2 = jnp.maximum(x1 + b1_ref[...], 0.0).astype(jnp.bfloat16).reshape(THp, W, Cp)

    # conv2's zero padding at the image top/bottom: rows-only mask, bf16 select.
    row = lax.broadcasted_iota(jnp.int32, (THp, 1, 1), 0)
    ok_row = ((row >= 1) | (t > 0)) & ((row <= th) | (t < n_th - 1))
    h2 = jnp.where(ok_row, h2, 0)
    # conv2's zero padding at the image left/right: re-insert two zero columns.
    zcol = jnp.zeros((THp, 1, Cp), jnp.bfloat16)
    h2p = jnp.concatenate([zcol, h2, zcol], axis=1)       # (THp, W + 2, Cp)

    # 3x3 conv as one deep-K matmul; im2col patch built with 9 direct stores
    # into VMEM scratch (no concatenate).  BN3 folded into w2/b2.
    # TODO(synk): on v7x (MRB) 9 accumulated K=Cp dots would avoid the patch buffer.
    k = 0
    for dy in range(3):
        for dx in range(3):
            patch_ref[:, :, k * Cp:(k + 1) * Cp] = h2p[dy:dy + th, dx:dx + W, :]
            k += 1
    x2 = jnp.dot(patch_ref[...].reshape(M, 9 * Cp), w2_ref[...],
                 preferred_element_type=jnp.float32)

    # conv3 block: ReLU (BN3 folded above) -> 1x1 conv (Cin -> Cout).
    h3 = jnp.maximum(x2 + b2_ref[...], 0.0).astype(jnp.bfloat16)
    out = jnp.dot(h3, w3_ref[...], preferred_element_type=jnp.float32)

    # Shortcut (1x1 conv + folded BN) on the raw interior pixels; b3 and the
    # folded shortcut bias are pre-fused into one bias (bfin).
    xin = xt[1:th + 1].reshape(M, Cp)
    out = out + jnp.dot(xin, wsc_ref[...], preferred_element_type=jnp.float32)
    out = out + bfin_ref[...]

    out_ref[...] = out.reshape(1, th, W, Cop).astype(out_ref.dtype)


# ---------------------------------------------------------------------------
# Host-side parameter prep: fold BN affines into convs, pad channels, cast.
# ---------------------------------------------------------------------------
def prepare_params(p, cp, cop, ew_dtype):
    cin = p['w1'].shape[0]

    def pad2(a, r, c, dtype=jnp.float32):
        z = jnp.zeros((r, c), jnp.float32).at[:a.shape[0], :a.shape[1]].set(a)
        return z.astype(dtype)

    # conv1 (1x1) with BN2 folded into its output channels.
    w1f = p['w1'] * p['bn2_scale']
    b1f = p['b1'] * p['bn2_scale'] + p['bn2_bias']
    # conv2 (3x3) with BN3 folded; layout (dy, dx, cin, cout) -> (9*Cp, Cp).
    w2 = p['w2'].reshape(3, 3, cin, cin) * p['bn3_scale'].reshape(1, 1, 1, cin)
    w2p = jnp.zeros((3, 3, cp, cp), jnp.float32).at[:, :, :cin, :cin].set(w2)
    w2f = w2p.reshape(9 * cp, cp)
    b2f = p['b2'] * p['bn3_scale'] + p['bn3_bias']
    # shortcut conv (1x1) with its BN folded; its bias fused with conv3's bias.
    wscf = p['wsc'] * p['bnsc_scale']
    bfin = p['b3'] + p['bsc'] * p['bnsc_scale'] + p['bnsc_bias']

    return dict(
        bn1s=pad2(p['bn1_scale'], 1, cp, ew_dtype),
        bn1b=pad2(p['bn1_bias'], 1, cp, ew_dtype),
        w1=pad2(w1f, cp, cp, jnp.bfloat16),
        b1=pad2(b1f, 1, cp),
        w2=w2f.astype(jnp.bfloat16),
        b2=pad2(b2f, 1, cp),
        w3=pad2(p['w3'], cp, cop, jnp.bfloat16),
        wsc=pad2(wscf, cp, cop, jnp.bfloat16),
        bfin=pad2(bfin, 1, cop),
    )


# ---------------------------------------------------------------------------
# Generation-aware knobs
# ---------------------------------------------------------------------------
def _default_ew_dtype():
    try:
        kind = jax.devices()[0].device_kind.lower()
    except Exception:
        return jnp.float32
    # v5e and older have no bf16 VPU; keep elementwise math in f32 there.
    if any(tag in kind for tag in ("v2", "v3", "v4", "v5")):
        return jnp.float32
    return jnp.bfloat16


def _vmem_limit_bytes():
    try:
        cap = int(pltpu.get_tpu_info().vmem_capacity_bytes)
    except Exception:
        cap = 128 * 1024 * 1024
    # ~96 MiB on 128 MiB parts (v5e/v6e), ~48 MiB on 64 MiB parts (v7x).
    return min(cap * 3 // 4, 96 * 1024 * 1024)


def _pick_tile_h(h, w, cp, cop, vmem_budget):
    # Per-row VMEM bytes: x double buffer + im2col patch + out double buffer +
    # a handful of live f32/bf16 intermediates.
    per_row = w * (2 * cp * 2 + 9 * cp * 2 + 2 * cop * 2 + 4 * cp * 4 + 2 * cop * 4)
    w_bytes = 2 * 2 * (10 * cp * cp + 2 * cp * cop)      # double-buffered weights
    rows_budget = max(4, (vmem_budget // 2 - w_bytes) // max(per_row, 1))
    rows_target = max(4, min(rows_budget, max(1, 4096 // max(w, 1))))
    divisors = [d for d in range(1, h + 1) if h % d == 0]
    cands = [d for d in divisors if d <= rows_target] or [1]
    th = max(cands)
    # Prefer >= 2 row tiles (keeps both v7x TensorCores busy even at batch 1),
    # unless that would shrink the tile catastrophically.
    smaller = [d for d in cands if h // d >= 2]
    if smaller and max(smaller) * 4 >= th:
        th = max(smaller)
    # TODO(synk): cdiv-style ragged last tile instead of requiring a divisor of H.
    return th


# ---------------------------------------------------------------------------
# Wrappers
# ---------------------------------------------------------------------------
def resblock_forward_nhwc(x_nhwc, p, *, tile_h=None, ew_dtype=None):
    N, H, W, Cin = x_nhwc.shape
    Cout = p['w3'].shape[-1]
    Cp = _round_up(Cin, LANE)
    Cop = _round_up(Cout, LANE)
    # TODO(synk): pad channels to 256 on v6e/v7x when real channel counts exceed 128
    #             (2x256x256 MXU); 128 is right for v5e and for small channel counts.
    if ew_dtype is None:
        ew_dtype = _default_ew_dtype()
    vmem_limit = _vmem_limit_bytes()
    th = tile_h if tile_h is not None else _pick_tile_h(H, W, Cp, Cop, vmem_limit)
    assert H % th == 0, (H, th)
    n_th = H // th

    fp = prepare_params(p, Cp, Cop, ew_dtype)

    # Channel-pad + bf16 cast only; no spatial pre-padding, no halo duplication.
    xq = jnp.zeros((N, H, W, Cp), jnp.bfloat16).at[..., :Cin].set(
        x_nhwc.astype(jnp.bfloat16))
    x_flat = xq.reshape(N * H, W, Cp)

    params = (fp['bn1s'], fp['bn1b'], fp['w1'], fp['b1'], fp['w2'], fp['b2'],
              fp['w3'], fp['wsc'], fp['bfin'])

    def const_spec(a):
        nd = a.ndim
        return pl.BlockSpec(a.shape, lambda t, n, _nd=nd: (0,) * _nd)
    # TODO(synk): single-buffer the resident weight blocks (pipeline_mode=pl.Buffered(1))
    #             once Cp grows large enough for their double buffers to matter on v7x.

    in_specs = [pl.BlockSpec(memory_space=pl.ANY)] + [const_spec(a) for a in params]
    out_spec = pl.BlockSpec((1, th, W, Cop), lambda t, n: (n, t, 0, 0))

    flops = 2 * N * H * W * (Cp * Cp + 9 * Cp * Cp + 2 * Cp * Cop)
    bytes_accessed = (x_flat.size * x_flat.dtype.itemsize
                      + N * H * W * Cop * 2
                      + sum(int(a.size) * a.dtype.itemsize for a in params))

    kernel = functools.partial(resblock_kernel, ew_dtype=ew_dtype)

    out = pl.pallas_call(
        kernel,
        out_shape=jax.ShapeDtypeStruct((N, H, W, Cop), jnp.bfloat16),
        grid_spec=pltpu.PrefetchScalarGridSpec(
            num_scalar_prefetch=0,
            grid=(n_th, N),
            in_specs=in_specs,
            out_specs=out_spec,
            scratch_shapes=[
                pltpu.VMEM((2 * (th + 2), W, Cp), jnp.bfloat16),   # x double buffer
                pltpu.SemaphoreType.DMA((2, 3)),                   # per-slot copy sems
                pltpu.VMEM((th, W, 9 * Cp), jnp.bfloat16),         # im2col patch
            ]),
        compiler_params=pltpu.CompilerParams(
            dimension_semantics=("parallel", "arbitrary"),
            vmem_limit_bytes=vmem_limit),
        cost_estimate=pl.CostEstimate(
            flops=int(flops), transcendentals=0,
            bytes_accessed=int(bytes_accessed)),
    )(x_flat, *params)
    # Output stays channel-padded (Cop) bf16: downstream NHWC consumers should keep
    # this layout and slice real channels only at the very end of the network.
    return out


def resblock_forward_nchw(x_nchw, p, *, tile_h=None):
    # PyTorch-parity adapter (NCHW<->NHWC transposes, channel un-pad, f32 cast).
    # In a production model keep activations NHWC/bf16 and skip all of this.
    x_nhwc = jnp.transpose(x_nchw, (0, 2, 3, 1))
    out = resblock_forward_nhwc(x_nhwc, p, tile_h=tile_h)
    cout = p['w3'].shape[-1]
    return jnp.transpose(out[..., :cout].astype(jnp.float32), (0, 3, 1, 2))


# ---------------------------------------------------------------------------
# Deterministic params + pure-JAX reference (unfolded, unpadded, f32)
# ---------------------------------------------------------------------------
def make_params(key, cin, cout):
    keys = iter(jax.random.split(key, 24))
    nk = lambda: next(keys)

    def bn_params(c):
        gamma = 1.0 + 0.1 * jax.random.normal(nk(), (c,), jnp.float32)
        beta = 0.1 * jax.random.normal(nk(), (c,), jnp.float32)
        mean = 0.1 * jax.random.normal(nk(), (c,), jnp.float32)
        var = jax.random.uniform(nk(), (c,), jnp.float32, 0.5, 1.5)
        scale = gamma * lax.rsqrt(var + 1e-5)   # fold running stats into affine
        bias = beta - mean * scale
        return scale.reshape(1, c), bias.reshape(1, c)

    def conv_w(ci, co):
        return 0.1 * jax.random.normal(nk(), (ci, co), jnp.float32)

    def conv_b(co):
        return 0.1 * jax.random.normal(nk(), (1, co), jnp.float32)

    p = {}
    p['bn1_scale'], p['bn1_bias'] = bn_params(cin)
    p['w1'], p['b1'] = conv_w(cin, cin), conv_b(cin)
    p['bn2_scale'], p['bn2_bias'] = bn_params(cin)
    p['w2'] = 0.1 * jax.random.normal(nk(), (9, cin, cin), jnp.float32)  # (ky*kx, in, out)
    p['b2'] = conv_b(cin)
    p['bn3_scale'], p['bn3_bias'] = bn_params(cin)
    p['w3'], p['b3'] = conv_w(cin, cout), conv_b(cout)
    p['wsc'], p['bsc'] = conv_w(cin, cout), conv_b(cout)
    p['bnsc_scale'], p['bnsc_bias'] = bn_params(cout)
    return p


def resblock_reference_nhwc(x, p):
    """Pure-JAX f32 reference (NHWC) used to validate the Pallas kernel."""
    def bn(y, s, b):
        return y * s.reshape(1, 1, 1, -1) + b.reshape(1, 1, 1, -1)

    def c1x1(y, w, b):
        return jnp.einsum('nhwc,co->nhwo', y, w) + b.reshape(1, 1, 1, -1)

    cin = p['w1'].shape[0]
    w2_hwio = p['w2'].reshape(3, 3, cin, cin)

    sc = bn(c1x1(x, p['wsc'], p['bsc']), p['bnsc_scale'], p['bnsc_bias'])
    h1 = jax.nn.relu(bn(x, p['bn1_scale'], p['bn1_bias']))
    x1 = c1x1(h1, p['w1'], p['b1'])
    h2 = jax.nn.relu(bn(x1, p['bn2_scale'], p['bn2_bias']))
    x2 = lax.conv_general_dilated(
        h2, w2_hwio, window_strides=(1, 1), padding='SAME',
        dimension_numbers=('NHWC', 'HWIO', 'NHWC')) + p['b2'].reshape(1, 1, 1, -1)
    h3 = jax.nn.relu(bn(x2, p['bn3_scale'], p['bn3_bias']))
    x3 = c1x1(h3, p['w3'], p['b3'])
    return x3 + sc


if __name__ == "__main__":
    N, Cin, H, W, Cout = 2, 4, 16, 16, 8
    key = jax.random.PRNGKey(0)
    kx, kp = jax.random.split(key)

    x_nchw = jax.random.normal(kx, (N, Cin, H, W), jnp.float32)   # PyTorch layout
    params = make_params(kp, Cin, Cout)

    x_nhwc = jnp.transpose(x_nchw, (0, 2, 3, 1))
    ref_nchw = jnp.transpose(resblock_reference_nhwc(x_nhwc, params), (0, 3, 1, 2))

    # Exercise both the multi-row-tile path (halo DMAs + batch prefetch, picked by
    # the default heuristic) and the single-tile-per-image path.
    for tile_h in (None, 16):
        out_nchw = resblock_forward_nchw(x_nchw, params, tile_h=tile_h)
        jax.block_until_ready(out_nchw)
        assert out_nchw.shape == (N, Cout, H, W), out_nchw.shape
        max_err = float(jnp.max(jnp.abs(out_nchw - ref_nchw)))
        # bf16 MXU inputs / bf16 output with f32 accumulation vs. all-f32 reference.
        assert jnp.allclose(out_nchw, ref_nchw, rtol=5e-2, atol=5e-2), max_err

    print("KERNEL_OK")
</pallas_src>

<mosaic_0001>
module attributes {stable_mosaic.version = 11 : i64} {
  func.func @resblock_kernel(%arg0: i32, %arg1: i32, %arg2: memref<32x16x128xbf16, #tpu.memory_space<any>>, %arg3: memref<1x128xbf16, #tpu.memory_space<vmem>>, %arg4: memref<1x128xbf16, #tpu.memory_space<vmem>>, %arg5: memref<128x128xbf16, #tpu.memory_space<vmem>>, %arg6: memref<1x128xf32, #tpu.memory_space<vmem>>, %arg7: memref<1152x128xbf16, #tpu.memory_space<vmem>>, %arg8: memref<1x128xf32, #tpu.memory_space<vmem>>, %arg9: memref<128x128xbf16, #tpu.memory_space<vmem>>, %arg10: memref<128x128xbf16, #tpu.memory_space<vmem>>, %arg11: memref<1x128xf32, #tpu.memory_space<vmem>>, %arg12: memref<1x8x16x128xbf16, #tpu.memory_space<vmem>>, %arg13: memref<20x16x128xbf16, #tpu.memory_space<vmem>>, %arg14: memref<2x3x!tpu.dma_semaphore, #tpu.memory_space<semaphore_mem>>, %arg15: memref<8x16x1152xbf16, #tpu.memory_space<vmem>>) attributes {dimension_semantics = [#tpu.dimension_semantics<parallel>, #tpu.dimension_semantics<arbitrary>], iteration_bounds = array<i64: 2, 2>, scalar_prefetch = 0 : i64, scratch_operands = 3 : i64, tpu.core_type = #tpu.core_type<tc>, window_params = [{}, {pipeline_mode = #tpu.pipeline_mode<synchronous>, transform_indices = @transform_1, window_bounds = array<i64: 1, 128>}, {pipeline_mode = #tpu.pipeline_mode<synchronous>, transform_indices = @transform_2, window_bounds = array<i64: 1, 128>}, {pipeline_mode = #tpu.pipeline_mode<synchronous>, transform_indices = @transform_3, window_bounds = array<i64: 128, 128>}, {pipeline_mode = #tpu.pipeline_mode<synchronous>, transform_indices = @transform_4, window_bounds = array<i64: 1, 128>}, {pipeline_mode = #tpu.pipeline_mode<synchronous>, transform_indices = @transform_5, window_bounds = array<i64: 1152, 128>}, {pipeline_mode = #tpu.pipeline_mode<synchronous>, transform_indices = @transform_6, window_bounds = array<i64: 1, 128>}, {pipeline_mode = #tpu.pipeline_mode<synchronous>, transform_indices = @transform_7, window_bounds = array<i64: 128, 128>}, {pipeline_mode = #tpu.pipeline_mode<synchronous>, transform_indices = @transform_8, window_bounds = array<i64: 128, 128>}, {pipeline_mode = #tpu.pipeline_mode<synchronous>, transform_indices = @transform_9, window_bounds = array<i64: 1, 128>}, {transform_indices = @transform_10, window_bounds = array<i64: 1, 8, 16, 128>}]} {
    %c2_i32 = arith.constant 2 : i32
    %c0_i32 = arith.constant 0 : i32
    %0 = arith.cmpi eq, %c2_i32, %c0_i32 : i32
    %c1_i32 = arith.constant 1 : i32
    %1 = arith.select %0, %c1_i32, %c2_i32 : i32
    %2 = arith.remsi %arg1, %1 : i32
    %c0_i32_0 = arith.constant 0 : i32
    %3 = arith.cmpi ne, %2, %c0_i32_0 : i32
    %c0_i32_1 = arith.constant 0 : i32
    %4 = arith.cmpi slt, %2, %c0_i32_1 : i32
    %c0_i32_2 = arith.constant 0 : i32
    %5 = arith.cmpi slt, %1, %c0_i32_2 : i32
    %6 = arith.xori %4, %5 : i1
    %7 = arith.andi %6, %3 : i1
    %8 = arith.addi %2, %1 : i32
    %9 = arith.select %7, %8, %2 : i32
    %c10_i32 = arith.constant 10 : i32
    %10 = arith.muli %9, %c10_i32 : i32
    %c0_i32_3 = arith.constant 0 : i32
    %11 = arith.cmpi eq, %arg1, %c0_i32_3 : i32
    %12 = arith.extui %11 : i1 to i32
    %c0_i32_4 = arith.constant 0 : i32
    %13 = arith.cmpi ne, %12, %c0_i32_4 : i32
    scf.if %13 {
      %c0_i32_88 = arith.constant 0 : i32
      %121 = arith.addi %c0_i32_88, %arg0 : i32
      %c8_i32_89 = arith.constant 8 : i32
      %122 = arith.muli %121, %c8_i32_89 : i32
      %c1_i32_90 = arith.constant 1 : i32
      %123 = arith.subi %122, %c1_i32_90 : i32
      %c0_i32_91 = arith.constant 0 : i32
      %124 = arith.maxsi %123, %c0_i32_91 : i32
      %c8_i32_92 = arith.constant 8 : i32
      %125 = arith.addi %122, %c8_i32_92 : i32
      %c31_i32_93 = arith.constant 31 : i32
      %126 = arith.minsi %125, %c31_i32_93 : i32
      %c0_i32_94 = arith.constant 0 : i32
      %c0_i32_95 = arith.constant 0 : i32
      %c0_i32_96 = arith.constant 0 : i32
      %c0_i32_97 = arith.constant 0 : i32
      %127 = tpu.memref_slice %arg2[%122, %c0_i32_96, %c0_i32_97] : memref<32x16x128xbf16, #tpu.memory_space<any>> -> memref<8x16x128xbf16, #tpu.memory_space<any>>
      %c1_i32_98 = arith.constant 1 : i32
      %c0_i32_99 = arith.constant 0 : i32
      %c0_i32_100 = arith.constant 0 : i32
      %128 = tpu.memref_slice %arg13[%c1_i32_98, %c0_i32_99, %c0_i32_100] : memref<20x16x128xbf16, #tpu.memory_space<vmem>> -> memref<8x16x128xbf16, #tpu.memory_space<vmem>>
      %129 = tpu.memref_slice %arg14[%c0_i32_94, %c0_i32_95] : memref<2x3x!tpu.dma_semaphore, #tpu.memory_space<semaphore_mem>> -> memref<1x1x!tpu.dma_semaphore, #tpu.memory_space<semaphore_mem>>
      %130 = tpu.memref_squeeze %129 : memref<1x1x!tpu.dma_semaphore, #tpu.memory_space<semaphore_mem>> -> memref<!tpu.dma_semaphore, #tpu.memory_space<semaphore_mem>>
      tpu.enqueue_dma source(%127 : memref<8x16x128xbf16, #tpu.memory_space<any>>) target(%128 : memref<8x16x128xbf16, #tpu.memory_space<vmem>>) target_semaphore(%130 : memref<!tpu.dma_semaphore, #tpu.memory_space<semaphore_mem>>)
      %c0_i32_101 = arith.constant 0 : i32
      %c1_i32_102 = arith.constant 1 : i32
      %c0_i32_103 = arith.constant 0 : i32
      %c0_i32_104 = arith.constant 0 : i32
      %131 = tpu.memref_slice %arg2[%124, %c0_i32_103, %c0_i32_104] : memref<32x16x128xbf16, #tpu.memory_space<any>> -> memref<1x16x128xbf16, #tpu.memory_space<any>>
      %c0_i32_105 = arith.constant 0 : i32
      %c0_i32_106 = arith.constant 0 : i32
      %c0_i32_107 = arith.constant 0 : i32
      %132 = tpu.memref_slice %arg13[%c0_i32_105, %c0_i32_106, %c0_i32_107] : memref<20x16x128xbf16, #tpu.memory_space<vmem>> -> memref<1x16x128xbf16, #tpu.memory_space<vmem>>
      %133 = tpu.memref_slice %arg14[%c0_i32_101, %c1_i32_102] : memref<2x3x!tpu.dma_semaphore, #tpu.memory_space<semaphore_mem>> -> memref<1x1x!tpu.dma_semaphore, #tpu.memory_space<semaphore_mem>>
      %134 = tpu.memref_squeeze %133 : memref<1x1x!tpu.dma_semaphore, #tpu.memory_space<semaphore_mem>> -> memref<!tpu.dma_semaphore, #tpu.memory_space<semaphore_mem>>
      tpu.enqueue_dma source(%131 : memref<1x16x128xbf16, #tpu.memory_space<any>>) target(%132 : memref<1x16x128xbf16, #tpu.memory_space<vmem>>) target_semaphore(%134 : memref<!tpu.dma_semaphore, #tpu.memory_space<semaphore_mem>>)
      %c0_i32_108 = arith.constant 0 : i32
      %c2_i32_109 = arith.constant 2 : i32
      %c0_i32_110 = arith.constant 0 : i32
      %c0_i32_111 = arith.constant 0 : i32
      %135 = tpu.memref_slice %arg2[%126, %c0_i32_110, %c0_i32_111] : memref<32x16x128xbf16, #tpu.memory_space<any>> -> memref<1x16x128xbf16, #tpu.memory_space<any>>
      %c9_i32 = arith.constant 9 : i32
      %c0_i32_112 = arith.constant 0 : i32
      %c0_i32_113 = arith.constant 0 : i32
      %136 = tpu.memref_slice %arg13[%c9_i32, %c0_i32_112, %c0_i32_113] : memref<20x16x128xbf16, #tpu.memory_space<vmem>> -> memref<1x16x128xbf16, #tpu.memory_space<vmem>>
      %137 = tpu.memref_slice %arg14[%c0_i32_108, %c2_i32_109] : memref<2x3x!tpu.dma_semaphore, #tpu.memory_space<semaphore_mem>> -> memref<1x1x!tpu.dma_semaphore, #tpu.memory_space<semaphore_mem>>
      %138 = tpu.memref_squeeze %137 : memref<1x1x!tpu.dma_semaphore, #tpu.memory_space<semaphore_mem>> -> memref<!tpu.dma_semaphore, #tpu.memory_space<semaphore_mem>>
      tpu.enqueue_dma source(%135 : memref<1x16x128xbf16, #tpu.memory_space<any>>) target(%136 : memref<1x16x128xbf16, #tpu.memory_space<vmem>>) target_semaphore(%138 : memref<!tpu.dma_semaphore, #tpu.memory_space<semaphore_mem>>)
    } else {
    }
    %c2_i32_5 = arith.constant 2 : i32
    %14 = arith.muli %arg1, %c2_i32_5 : i32
    %15 = arith.addi %14, %arg0 : i32
    %c8_i32 = arith.constant 8 : i32
    %16 = arith.muli %15, %c8_i32 : i32
    %c10_i32_6 = arith.constant 10 : i32
    %17 = arith.muli %9, %c10_i32_6 : i32
    %c1_i32_7 = arith.constant 1 : i32
    %18 = arith.subi %16, %c1_i32_7 : i32
    %c0_i32_8 = arith.constant 0 : i32
    %19 = arith.maxsi %18, %c0_i32_8 : i32
    %c8_i32_9 = arith.constant 8 : i32
    %20 = arith.addi %16, %c8_i32_9 : i32
    %c31_i32 = arith.constant 31 : i32
    %21 = arith.minsi %20, %c31_i32 : i32
    %c1_i32_10 = arith.constant 1 : i32
    %22 = arith.addi %17, %c1_i32_10 : i32
    %c8_i32_11 = arith.constant 8 : i32
    %23 = arith.addi %17, %c8_i32_11 : i32
    %c1_i32_12 = arith.constant 1 : i32
    %24 = arith.addi %23, %c1_i32_12 : i32
    %c0_i32_13 = arith.constant 0 : i32
    %c0_i32_14 = arith.constant 0 : i32
    %c0_i32_15 = arith.constant 0 : i32
    %25 = tpu.memref_slice %arg2[%16, %c0_i32_14, %c0_i32_15] : memref<32x16x128xbf16, #tpu.memory_space<any>> -> memref<8x16x128xbf16, #tpu.memory_space<any>>
    %c0_i32_16 = arith.constant 0 : i32
    %c0_i32_17 = arith.constant 0 : i32
    %26 = tpu.memref_slice %arg13[%22, %c0_i32_16, %c0_i32_17] : memref<20x16x128xbf16, #tpu.memory_space<vmem>> -> memref<8x16x128xbf16, #tpu.memory_space<vmem>>
    %27 = tpu.memref_slice %arg14[%9, %c0_i32_13] : memref<2x3x!tpu.dma_semaphore, #tpu.memory_space<semaphore_mem>> -> memref<1x1x!tpu.dma_semaphore, #tpu.memory_space<semaphore_mem>>
    %28 = tpu.memref_squeeze %27 : memref<1x1x!tpu.dma_semaphore, #tpu.memory_space<semaphore_mem>> -> memref<!tpu.dma_semaphore, #tpu.memory_space<semaphore_mem>>
    tpu.wait_dma2 semaphore(%28 : memref<!tpu.dma_semaphore, #tpu.memory_space<semaphore_mem>>) src(%25 : memref<8x16x128xbf16, #tpu.memory_space<any>>) dst(%26 : memref<8x16x128xbf16, #tpu.memory_space<vmem>>)
    %c1_i32_18 = arith.constant 1 : i32
    %c0_i32_19 = arith.constant 0 : i32
    %c0_i32_20 = arith.constant 0 : i32
    %29 = tpu.memref_slice %arg2[%19, %c0_i32_19, %c0_i32_20] : memref<32x16x128xbf16, #tpu.memory_space<any>> -> memref<1x16x128xbf16, #tpu.memory_space<any>>
    %c0_i32_21 = arith.constant 0 : i32
    %c0_i32_22 = arith.constant 0 : i32
    %30 = tpu.memref_slice %arg13[%17, %c0_i32_21, %c0_i32_22] : memref<20x16x128xbf16, #tpu.memory_space<vmem>> -> memref<1x16x128xbf16, #tpu.memory_space<vmem>>
    %31 = tpu.memref_slice %arg14[%9, %c1_i32_18] : memref<2x3x!tpu.dma_semaphore, #tpu.memory_space<semaphore_mem>> -> memref<1x1x!tpu.dma_semaphore, #tpu.memory_space<semaphore_mem>>
    %32 = tpu.memref_squeeze %31 : memref<1x1x!tpu.dma_semaphore, #tpu.memory_space<semaphore_mem>> -> memref<!tpu.dma_semaphore, #tpu.memory_space<semaphore_mem>>
    tpu.wait_dma2 semaphore(%32 : memref<!tpu.dma_semaphore, #tpu.memory_space<semaphore_mem>>) src(%29 : memref<1x16x128xbf16, #tpu.memory_space<any>>) dst(%30 : memref<1x16x128xbf16, #tpu.memory_space<vmem>>)
    %c2_i32_23 = arith.constant 2 : i32
    %c0_i32_24 = arith.constant 0 : i32
    %c0_i32_25 = arith.constant 0 : i32
    %33 = tpu.memref_slice %arg2[%21, %c0_i32_24, %c0_i32_25] : memref<32x16x128xbf16, #tpu.memory_space<any>> -> memref<1x16x128xbf16, #tpu.memory_space<any>>
    %c0_i32_26 = arith.constant 0 : i32
    %c0_i32_27 = arith.constant 0 : i32
    %34 = tpu.memref_slice %arg13[%24, %c0_i32_26, %c0_i32_27] : memref<20x16x128xbf16, #tpu.memory_space<vmem>> -> memref<1x16x128xbf16, #tpu.memory_space<vmem>>
    %35 = tpu.memref_slice %arg14[%9, %c2_i32_23] : memref<2x3x!tpu.dma_semaphore, #tpu.memory_space<semaphore_mem>> -> memref<1x1x!tpu.dma_semaphore, #tpu.memory_space<semaphore_mem>>
    %36 = tpu.memref_squeeze %35 : memref<1x1x!tpu.dma_semaphore, #tpu.memory_space<semaphore_mem>> -> memref<!tpu.dma_semaphore, #tpu.memory_space<semaphore_mem>>
    tpu.wait_dma2 semaphore(%36 : memref<!tpu.dma_semaphore, #tpu.memory_space<semaphore_mem>>) src(%33 : memref<1x16x128xbf16, #tpu.memory_space<any>>) dst(%34 : memref<1x16x128xbf16, #tpu.memory_space<vmem>>)
    %c1_i32_28 = arith.constant 1 : i32
    %37 = arith.addi %arg1, %c1_i32_28 : i32
    %c2_i32_29 = arith.constant 2 : i32
    %38 = arith.cmpi slt, %37, %c2_i32_29 : i32
    %39 = arith.extui %38 : i1 to i32
    %c0_i32_30 = arith.constant 0 : i32
    %40 = arith.cmpi ne, %39, %c0_i32_30 : i32
    scf.if %40 {
      %c1_i32_88 = arith.constant 1 : i32
      %121 = arith.addi %arg1, %c1_i32_88 : i32
      %c1_i32_89 = arith.constant 1 : i32
      %122 = arith.subi %c1_i32_89, %9 : i32
      %c2_i32_90 = arith.constant 2 : i32
      %123 = arith.muli %121, %c2_i32_90 : i32
      %124 = arith.addi %123, %arg0 : i32
      %c8_i32_91 = arith.constant 8 : i32
      %125 = arith.muli %124, %c8_i32_91 : i32
      %c10_i32_92 = arith.constant 10 : i32
      %126 = arith.muli %122, %c10_i32_92 : i32
      %c1_i32_93 = arith.constant 1 : i32
      %127 = arith.subi %125, %c1_i32_93 : i32
      %c0_i32_94 = arith.constant 0 : i32
      %128 = arith.maxsi %127, %c0_i32_94 : i32
      %c8_i32_95 = arith.constant 8 : i32
      %129 = arith.addi %125, %c8_i32_95 : i32
      %c31_i32_96 = arith.constant 31 : i32
      %130 = arith.minsi %129, %c31_i32_96 : i32
      %c1_i32_97 = arith.constant 1 : i32
      %131 = arith.addi %126, %c1_i32_97 : i32
      %c8_i32_98 = arith.constant 8 : i32
      %132 = arith.addi %126, %c8_i32_98 : i32
      %c1_i32_99 = arith.constant 1 : i32
      %133 = arith.addi %132, %c1_i32_99 : i32
      %c0_i32_100 = arith.constant 0 : i32
      %c0_i32_101 = arith.constant 0 : i32
      %c0_i32_102 = arith.constant 0 : i32
      %134 = tpu.memref_slice %arg2[%125, %c0_i32_101, %c0_i32_102] : memref<32x16x128xbf16, #tpu.memory_space<any>> -> memref<8x16x128xbf16, #tpu.memory_space<any>>
      %c0_i32_103 = arith.constant 0 : i32
      %c0_i32_104 = arith.constant 0 : i32
      %135 = tpu.memref_slice %arg13[%131, %c0_i32_103, %c0_i32_104] : memref<20x16x128xbf16, #tpu.memory_space<vmem>> -> memref<8x16x128xbf16, #tpu.memory_space<vmem>>
      %136 = tpu.memref_slice %arg14[%122, %c0_i32_100] : memref<2x3x!tpu.dma_semaphore, #tpu.memory_space<semaphore_mem>> -> memref<1x1x!tpu.dma_semaphore, #tpu.memory_space<semaphore_mem>>
      %137 = tpu.memref_squeeze %136 : memref<1x1x!tpu.dma_semaphore, #tpu.memory_space<semaphore_mem>> -> memref<!tpu.dma_semaphore, #tpu.memory_space<semaphore_mem>>
      tpu.enqueue_dma source(%134 : memref<8x16x128xbf16, #tpu.memory_space<any>>) target(%135 : memref<8x16x128xbf16, #tpu.memory_space<vmem>>) target_semaphore(%137 : memref<!tpu.dma_semaphore, #tpu.memory_space<semaphore_mem>>)
      %c1_i32_105 = arith.constant 1 : i32
      %c0_i32_106 = arith.constant 0 : i32
      %c0_i32_107 = arith.constant 0 : i32
      %138 = tpu.memref_slice %arg2[%128, %c0_i32_106, %c0_i32_107] : memref<32x16x128xbf16, #tpu.memory_space<any>> -> memref<1x16x128xbf16, #tpu.memory_space<any>>
      %c0_i32_108 = arith.constant 0 : i32
      %c0_i32_109 = arith.constant 0 : i32
      %139 = tpu.memref_slice %arg13[%126, %c0_i32_108, %c0_i32_109] : memref<20x16x128xbf16, #tpu.memory_space<vmem>> -> memref<1x16x128xbf16, #tpu.memory_space<vmem>>
      %140 = tpu.memref_slice %arg14[%122, %c1_i32_105] : memref<2x3x!tpu.dma_semaphore, #tpu.memory_space<semaphore_mem>> -> memref<1x1x!tpu.dma_semaphore, #tpu.memory_space<semaphore_mem>>
      %141 = tpu.memref_squeeze %140 : memref<1x1x!tpu.dma_semaphore, #tpu.memory_space<semaphore_mem>> -> memref<!tpu.dma_semaphore, #tpu.memory_space<semaphore_mem>>
      tpu.enqueue_dma source(%138 : memref<1x16x128xbf16, #tpu.memory_space<any>>) target(%139 : memref<1x16x128xbf16, #tpu.memory_space<vmem>>) target_semaphore(%141 : memref<!tpu.dma_semaphore, #tpu.memory_space<semaphore_mem>>)
      %c2_i32_110 = arith.constant 2 : i32
      %c0_i32_111 = arith.constant 0 : i32
      %c0_i32_112 = arith.constant 0 : i32
      %142 = tpu.memref_slice %arg2[%130, %c0_i32_111, %c0_i32_112] : memref<32x16x128xbf16, #tpu.memory_space<any>> -> memref<1x16x128xbf16, #tpu.memory_space<any>>
      %c0_i32_113 = arith.constant 0 : i32
      %c0_i32_114 = arith.constant 0 : i32
      %143 = tpu.memref_slice %arg13[%133, %c0_i32_113, %c0_i32_114] : memref<20x16x128xbf16, #tpu.memory_space<vmem>> -> memref<1x16x128xbf16, #tpu.memory_space<vmem>>
      %144 = tpu.memref_slice %arg14[%122, %c2_i32_110] : memref<2x3x!tpu.dma_semaphore, #tpu.memory_space<semaphore_mem>> -> memref<1x1x!tpu.dma_semaphore, #tpu.memory_space<semaphore_mem>>
      %145 = tpu.memref_squeeze %144 : memref<1x1x!tpu.dma_semaphore, #tpu.memory_space<semaphore_mem>> -> memref<!tpu.dma_semaphore, #tpu.memory_space<semaphore_mem>>
      tpu.enqueue_dma source(%142 : memref<1x16x128xbf16, #tpu.memory_space<any>>) target(%143 : memref<1x16x128xbf16, #tpu.memory_space<vmem>>) target_semaphore(%145 : memref<!tpu.dma_semaphore, #tpu.memory_space<semaphore_mem>>)
    } else {
    }
    %41 = arith.index_cast %10 : i32 to index
    %c0 = arith.constant 0 : index
    %c0_31 = arith.constant 0 : index
    %42 = vector.load %arg13[%41, %c0, %c0_31] : memref<20x16x128xbf16, #tpu.memory_space<vmem>>, vector<10x16x128xbf16>
    %43 = vector.shape_cast %42 : vector<10x16x128xbf16> to vector<160x128xbf16>
    %c0_32 = arith.constant 0 : index
    %c0_33 = arith.constant 0 : index
    %44 = vector.load %arg3[%c0_32, %c0_33] : memref<1x128xbf16, #tpu.memory_space<vmem>>, vector<1x128xbf16>
    %45 = vector.broadcast %44 : vector<1x128xbf16> to vector<160x128xbf16>
    %46 = arith.mulf %43, %45 : vector<160x128xbf16>
    %c0_34 = arith.constant 0 : index
    %c0_35 = arith.constant 0 : index
    %47 = vector.load %arg4[%c0_34, %c0_35] : memref<1x128xbf16, #tpu.memory_space<vmem>>, vector<1x128xbf16>
    %48 = vector.broadcast %47 : vector<1x128xbf16> to vector<160x128xbf16>
    %49 = arith.addf %46, %48 : vector<160x128xbf16>
    %cst = arith.constant 0.000000e+00 : bf16
    %50 = vector.broadcast %cst : bf16 to vector<160x128xbf16>
    %51 = arith.maximumf %49, %50 : vector<160x128xbf16>
    %c0_36 = arith.constant 0 : index
    %c0_37 = arith.constant 0 : index
    %52 = vector.load %arg5[%c0_36, %c0_37] : memref<128x128xbf16, #tpu.memory_space<vmem>>, vector<128x128xbf16>
    %cst_38 = arith.constant dense<0.000000e+00> : vector<160x128xf32>
    %53 = tpu.matmul %51, %52, %cst_38 {dimension_numbers = #tpu.dot_dimension_numbers<[1], [0], [0], [1], [0, 0, 1, 1], [], []>} : vector<160x128xbf16>, vector<128x128xbf16>, vector<160x128xf32> -> vector<160x128xf32>
    %c0_39 = arith.constant 0 : index
    %c0_40 = arith.constant 0 : index
    %54 = vector.load %arg6[%c0_39, %c0_40] : memref<1x128xf32, #tpu.memory_space<vmem>>, vector<1x128xf32>
    %55 = vector.broadcast %54 : vector<1x128xf32> to vector<160x128xf32>
    %56 = arith.addf %53, %55 : vector<160x128xf32>
    %cst_41 = arith.constant 0.000000e+00 : f32
    %57 = vector.broadcast %cst_41 : f32 to vector<160x128xf32>
    %58 = arith.maximumf %56, %57 : vector<160x128xf32>
    %59 = arith.truncf %58 : vector<160x128xf32> to vector<160x128xbf16>
    %60 = vector.shape_cast %59 : vector<160x128xbf16> to vector<10x16x128xbf16>
    %61 = tpu.iota {dimensions = array<i32: 0>} : vector<10x1x1xi32>
    %c1_i32_42 = arith.constant 1 : i32
    %62 = vector.broadcast %c1_i32_42 : i32 to vector<10x1x1xi32>
    %63 = arith.cmpi sge, %61, %62 : vector<10x1x1xi32>
    %c0_i32_43 = arith.constant 0 : i32
    %64 = arith.cmpi sgt, %arg0, %c0_i32_43 : i32
    %65 = vector.broadcast %64 : i1 to vector<10x1x1xi1>
    %66 = arith.ori %63, %65 : vector<10x1x1xi1>
    %c8_i32_44 = arith.constant 8 : i32
    %67 = vector.broadcast %c8_i32_44 : i32 to vector<10x1x1xi32>
    %68 = arith.cmpi sle, %61, %67 : vector<10x1x1xi32>
    %c1_i32_45 = arith.constant 1 : i32
    %69 = arith.cmpi slt, %arg0, %c1_i32_45 : i32
    %70 = vector.broadcast %69 : i1 to vector<10x1x1xi1>
    %71 = arith.ori %68, %70 : vector<10x1x1xi1>
    %72 = arith.andi %66, %71 : vector<10x1x1xi1>
    %c0_i32_46 = arith.constant 0 : i32
    %73 = arith.sitofp %c0_i32_46 : i32 to bf16
    %74 = vector.shape_cast %72 : vector<10x1x1xi1> to vector<10x1x1xi1>
    %75 = vector.broadcast %74 : vector<10x1x1xi1> to vector<10x16x128xi1>
    %76 = vector.broadcast %73 : bf16 to vector<10x16x128xbf16>
    %77 = arith.select %75, %60, %76 : vector<10x16x128xi1>, vector<10x16x128xbf16>
    %cst_47 = arith.constant 0.000000e+00 : bf16
    %78 = vector.broadcast %cst_47 : bf16 to vector<10x1x128xbf16>
    %79 = tpu.concatenate %78, %77, %78 in 1 : vector<10x1x128xbf16>, vector<10x16x128xbf16>, vector<10x1x128xbf16> -> vector<10x18x128xbf16>
    %80 = vector.extract_strided_slice %79 {offsets = [0, 0, 0], sizes = [8, 16, 128], strides = [1, 1, 1]} : vector<10x18x128xbf16> to vector<8x16x128xbf16>
    %c0_48 = arith.constant 0 : index
    %c0_49 = arith.constant 0 : index
    %c0_50 = arith.constant 0 : index
    %81 = vector.load %arg15[%c0_48, %c0_49, %c0_50] : memref<8x16x1152xbf16, #tpu.memory_space<vmem>>, vector<8x16x128xbf16>
    tpu.vector_store %arg15[%c0_48, %c0_49, %c0_50], %80 {strides = array<i32>} : memref<8x16x1152xbf16, #tpu.memory_space<vmem>>, vector<8x16x128xbf16>,
    %82 = vector.extract_strided_slice %79 {offsets = [0, 1, 0], sizes = [8, 16, 128], strides = [1, 1, 1]} : vector<10x18x128xbf16> to vector<8x16x128xbf16>
    %c0_51 = arith.constant 0 : index
    %c0_52 = arith.constant 0 : index
    %c128 = arith.constant 128 : index
    %83 = vector.load %arg15[%c0_51, %c0_52, %c128] : memref<8x16x1152xbf16, #tpu.memory_space<vmem>>, vector<8x16x128xbf16>
    tpu.vector_store %arg15[%c0_51, %c0_52, %c128], %82 {strides = array<i32>} : memref<8x16x1152xbf16, #tpu.memory_space<vmem>>, vector<8x16x128xbf16>,
    %84 = vector.extract_strided_slice %79 {offsets = [0, 2, 0], sizes = [8, 16, 128], strides = [1, 1, 1]} : vector<10x18x128xbf16> to vector<8x16x128xbf16>
    %c0_53 = arith.constant 0 : index
    %c0_54 = arith.constant 0 : index
    %c256 = arith.constant 256 : index
    %85 = vector.load %arg15[%c0_53, %c0_54, %c256] : memref<8x16x1152xbf16, #tpu.memory_space<vmem>>, vector<8x16x128xbf16>
    tpu.vector_store %arg15[%c0_53, %c0_54, %c256], %84 {strides = array<i32>} : memref<8x16x1152xbf16, #tpu.memory_space<vmem>>, vector<8x16x128xbf16>,
    %86 = vector.extract_strided_slice %79 {offsets = [1, 0, 0], sizes = [8, 16, 128], strides = [1, 1, 1]} : vector<10x18x128xbf16> to vector<8x16x128xbf16>
    %c0_55 = arith.constant 0 : index
    %c0_56 = arith.constant 0 : index
    %c384 = arith.constant 384 : index
    %87 = vector.load %arg15[%c0_55, %c0_56, %c384] : memref<8x16x1152xbf16, #tpu.memory_space<vmem>>, vector<8x16x128xbf16>
    tpu.vector_store %arg15[%c0_55, %c0_56, %c384], %86 {strides = array<i32>} : memref<8x16x1152xbf16, #tpu.memory_space<vmem>>, vector<8x16x128xbf16>,
    %88 = vector.extract_strided_slice %79 {offsets = [1, 1, 0], sizes = [8, 16, 128], strides = [1, 1, 1]} : vector<10x18x128xbf16> to vector<8x16x128xbf16>
    %c0_57 = arith.constant 0 : index
    %c0_58 = arith.constant 0 : index
    %c512 = arith.constant 512 : index
    %89 = vector.load %arg15[%c0_57, %c0_58, %c512] : memref<8x16x1152xbf16, #tpu.memory_space<vmem>>, vector<8x16x128xbf16>
    tpu.vector_store %arg15[%c0_57, %c0_58, %c512], %88 {strides = array<i32>} : memref<8x16x1152xbf16, #tpu.memory_space<vmem>>, vector<8x16x128xbf16>,
    %90 = vector.extract_strided_slice %79 {offsets = [1, 2, 0], sizes = [8, 16, 128], strides = [1, 1, 1]} : vector<10x18x128xbf16> to vector<8x16x128xbf16>
    %c0_59 = arith.constant 0 : index
    %c0_60 = arith.constant 0 : index
    %c640 = arith.constant 640 : index
    %91 = vector.load %arg15[%c0_59, %c0_60, %c640] : memref<8x16x1152xbf16, #tpu.memory_space<vmem>>, vector<8x16x128xbf16>
    tpu.vector_store %arg15[%c0_59, %c0_60, %c640], %90 {strides = array<i32>} : memref<8x16x1152xbf16, #tpu.memory_space<vmem>>, vector<8x16x128xbf16>,
    %92 = vector.extract_strided_slice %79 {offsets = [2, 0, 0], sizes = [8, 16, 128], strides = [1, 1, 1]} : vector<10x18x128xbf16> to vector<8x16x128xbf16>
    %c0_61 = arith.constant 0 : index
    %c0_62 = arith.constant 0 : index
    %c768 = arith.constant 768 : index
    %93 = vector.load %arg15[%c0_61, %c0_62, %c768] : memref<8x16x1152xbf16, #tpu.memory_space<vmem>>, vector<8x16x128xbf16>
    tpu.vector_store %arg15[%c0_61, %c0_62, %c768], %92 {strides = array<i32>} : memref<8x16x1152xbf16, #tpu.memory_space<vmem>>, vector<8x16x128xbf16>,
    %94 = vector.extract_strided_slice %79 {offsets = [2, 1, 0], sizes = [8, 16, 128], strides = [1, 1, 1]} : vector<10x18x128xbf16> to vector<8x16x128xbf16>
    %c0_63 = arith.constant 0 : index
    %c0_64 = arith.constant 0 : index
    %c896 = arith.constant 896 : index
    %95 = vector.load %arg15[%c0_63, %c0_64, %c896] : memref<8x16x1152xbf16, #tpu.memory_space<vmem>>, vector<8x16x128xbf16>
    tpu.vector_store %arg15[%c0_63, %c0_64, %c896], %94 {strides = array<i32>} : memref<8x16x1152xbf16, #tpu.memory_space<vmem>>, vector<8x16x128xbf16>,
    %96 = vector.extract_strided_slice %79 {offsets = [2, 2, 0], sizes = [8, 16, 128], strides = [1, 1, 1]} : vector<10x18x128xbf16> to vector<8x16x128xbf16>
    %c0_65 = arith.constant 0 : index
    %c0_66 = arith.constant 0 : index
    %c1024 = arith.constant 1024 : index
    %97 = vector.load %arg15[%c0_65, %c0_66, %c1024] : memref<8x16x1152xbf16, #tpu.memory_space<vmem>>, vector<8x16x128xbf16>
    tpu.vector_store %arg15[%c0_65, %c0_66, %c1024], %96 {strides = array<i32>} : memref<8x16x1152xbf16, #tpu.memory_space<vmem>>, vector<8x16x128xbf16>,
    %c0_67 = arith.constant 0 : index
    %c0_68 = arith.constant 0 : index
    %c0_69 = arith.constant 0 : index
    %98 = vector.load %arg15[%c0_67, %c0_68, %c0_69] : memref<8x16x1152xbf16, #tpu.memory_space<vmem>>, vector<8x16x1152xbf16>
    %99 = vector.shape_cast %98 : vector<8x16x1152xbf16> to vector<128x1152xbf16>
    %c0_70 = arith.constant 0 : index
    %c0_71 = arith.constant 0 : index
    %100 = vector.load %arg7[%c0_70, %c0_71] : memref<1152x128xbf16, #tpu.memory_space<vmem>>, vector<1152x128xbf16>
    %cst_72 = arith.constant dense<0.000000e+00> : vector<128x128xf32>
    %101 = tpu.matmul %99, %100, %cst_72 {dimension_numbers = #tpu.dot_dimension_numbers<[1], [0], [0], [1], [0, 0, 1, 1], [], []>} : vector<128x1152xbf16>, vector<1152x128xbf16>, vector<128x128xf32> -> vector<128x128xf32>
    %c0_73 = arith.constant 0 : index
    %c0_74 = arith.constant 0 : index
    %102 = vector.load %arg8[%c0_73, %c0_74] : memref<1x128xf32, #tpu.memory_space<vmem>>, vector<1x128xf32>
    %103 = vector.broadcast %102 : vector<1x128xf32> to vector<128x128xf32>
    %104 = arith.addf %101, %103 : vector<128x128xf32>
    %cst_75 = arith.constant 0.000000e+00 : f32
    %105 = vector.broadcast %cst_75 : f32 to vector<128x128xf32>
    %106 = arith.maximumf %104, %105 : vector<128x128xf32>
    %107 = arith.truncf %106 : vector<128x128xf32> to vector<128x128xbf16>
    %c0_76 = arith.constant 0 : index
    %c0_77 = arith.constant 0 : index
    %108 = vector.load %arg9[%c0_76, %c0_77] : memref<128x128xbf16, #tpu.memory_space<vmem>>, vector<128x128xbf16>
    %cst_78 = arith.constant dense<0.000000e+00> : vector<128x128xf32>
    %109 = tpu.matmul %107, %108, %cst_78 {dimension_numbers = #tpu.dot_dimension_numbers<[1], [0], [0], [1], [0, 0, 1, 1], [], []>} : vector<128x128xbf16>, vector<128x128xbf16>, vector<128x128xf32> -> vector<128x128xf32>
    %110 = vector.extract_strided_slice %42 {offsets = [1, 0, 0], sizes = [8, 16, 128], strides = [1, 1, 1]} : vector<10x16x128xbf16> to vector<8x16x128xbf16>
    %111 = vector.shape_cast %110 : vector<8x16x128xbf16> to vector<128x128xbf16>
    %c0_79 = arith.constant 0 : index
    %c0_80 = arith.constant 0 : index
    %112 = vector.load %arg10[%c0_79, %c0_80] : memref<128x128xbf16, #tpu.memory_space<vmem>>, vector<128x128xbf16>
    %cst_81 = arith.constant dense<0.000000e+00> : vector<128x128xf32>
    %113 = tpu.matmul %111, %112, %cst_81 {dimension_numbers = #tpu.dot_dimension_numbers<[1], [0], [0], [1], [0, 0, 1, 1], [], []>} : vector<128x128xbf16>, vector<128x128xbf16>, vector<128x128xf32> -> vector<128x128xf32>
    %114 = arith.addf %109, %113 : vector<128x128xf32>
    %c0_82 = arith.constant 0 : index
    %c0_83 = arith.constant 0 : index
    %115 = vector.load %arg11[%c0_82, %c0_83] : memref<1x128xf32, #tpu.memory_space<vmem>>, vector<1x128xf32>
    %116 = vector.broadcast %115 : vector<1x128xf32> to vector<128x128xf32>
    %117 = arith.addf %114, %116 : vector<128x128xf32>
    %118 = vector.shape_cast %117 : vector<128x128xf32> to vector<1x8x16x128xf32>
    %119 = arith.truncf %118 : vector<1x8x16x128xf32> to vector<1x8x16x128xbf16>
    %c0_84 = arith.constant 0 : index
    %c0_85 = arith.constant 0 : index
    %c0_86 = arith.constant 0 : index
    %c0_87 = arith.constant 0 : index
    %120 = vector.load %arg12[%c0_84, %c0_85, %c0_86, %c0_87] : memref<1x8x16x128xbf16, #tpu.memory_space<vmem>>, vector<1x8x16x128xbf16>
    tpu.vector_store %arg12[%c0_84, %c0_85, %c0_86, %c0_87], %119 {strides = array<i32>} : memref<1x8x16x128xbf16, #tpu.memory_space<vmem>>, vector<1x8x16x128xbf16>,
    return
  }
  func.func @transform_1(%arg0: i32, %arg1: i32) -> (i32, i32) {
    %c0_i32 = arith.constant 0 : i32
    %c0_i32_0 = arith.constant 0 : i32
    %c0_i32_1 = arith.constant 0 : i32
    return %c0_i32, %c0_i32_0 : i32, i32
  }
  func.func @transform_2(%arg0: i32, %arg1: i32) -> (i32, i32) {
    %c0_i32 = arith.constant 0 : i32
    %c0_i32_0 = arith.constant 0 : i32
    %c0_i32_1 = arith.constant 0 : i32
    return %c0_i32, %c0_i32_0 : i32, i32
  }
  func.func @transform_3(%arg0: i32, %arg1: i32) -> (i32, i32) {
    %c0_i32 = arith.constant 0 : i32
    %c0_i32_0 = arith.constant 0 : i32
    %c0_i32_1 = arith.constant 0 : i32
    return %c0_i32, %c0_i32_0 : i32, i32
  }
  func.func @transform_4(%arg0: i32, %arg1: i32) -> (i32, i32) {
    %c0_i32 = arith.constant 0 : i32
    %c0_i32_0 = arith.constant 0 : i32
    %c0_i32_1 = arith.constant 0 : i32
    return %c0_i32, %c0_i32_0 : i32, i32
  }
  func.func @transform_5(%arg0: i32, %arg1: i32) -> (i32, i32) {
    %c0_i32 = arith.constant 0 : i32
    %c0_i32_0 = arith.constant 0 : i32
    %c0_i32_1 = arith.constant 0 : i32
    return %c0_i32, %c0_i32_0 : i32, i32
  }
  func.func @transform_6(%arg0: i32, %arg1: i32) -> (i32, i32) {
    %c0_i32 = arith.constant 0 : i32
    %c0_i32_0 = arith.constant 0 : i32
    %c0_i32_1 = arith.constant 0 : i32
    return %c0_i32, %c0_i32_0 : i32, i32
  }
  func.func @transform_7(%arg0: i32, %arg1: i32) -> (i32, i32) {
    %c0_i32 = arith.constant 0 : i32
    %c0_i32_0 = arith.constant 0 : i32
    %c0_i32_1 = arith.constant 0 : i32
    return %c0_i32, %c0_i32_0 : i32, i32
  }
  func.func @transform_8(%arg0: i32, %arg1: i32) -> (i32, i32) {
    %c0_i32 = arith.constant 0 : i32
    %c0_i32_0 = arith.constant 0 : i32
    %c0_i32_1 = arith.constant 0 : i32
    return %c0_i32, %c0_i32_0 : i32, i32
  }
  func.func @transform_9(%arg0: i32, %arg1: i32) -> (i32, i32) {
    %c0_i32 = arith.constant 0 : i32
    %c0_i32_0 = arith.constant 0 : i32
    %c0_i32_1 = arith.constant 0 : i32
    return %c0_i32, %c0_i32_0 : i32, i32
  }
  func.func @transform_10(%arg0: i32, %arg1: i32) -> (i32, i32, i32, i32) {
    %c0_i32 = arith.constant 0 : i32
    %c0_i32_0 = arith.constant 0 : i32
    %c0_i32_1 = arith.constant 0 : i32
    return %arg1, %arg0, %c0_i32, %c0_i32_0 : i32, i32, i32, i32
  }
}

</mosaic_0001>

<llo_original>
// kernel: tpu_custom_call.1
$region0: #{tpu_custom_call.1}
  #allocation0 [shape = 'u32[]', space=smem, size = 0x4, offset = 0x4, fixed_abs, tag = 'smem constant byte address 0x4 - core index']
  #allocation1 [shape = 'u32[144,128]{1,0:T(1,128)}', space=vmem, size = 0x12000, scoped, tag = 'internal scratch']
  #allocation2 [shape = 'bf16[20,16,128]{2,1,0:T(16,128)(2,1)}', space=vmem, size = 0x14000, scoped, tag = 'scratch operand']
  #allocation3 [shape = 's32[6]{0}', space=sflag, size = 0x18, scoped, tag = 'scratch operand']
  #allocation4 [shape = 'bf16[8,16,1152]{2,1,0:T(16,128)(2,1)}', space=vmem, size = 0x48000, scoped, tag = 'scratch operand']
  #allocation21 [shape = 's32[]', space=sflag, size = 0x4, offset = 0, fixed_abs, tag = 'sflag constant byte address 0x0 - dummy sync flag']
  #allocation22 [shape = 's32[]', space=sflag, size = 0x4, offset = 0, fixed_abs, tag = 'sflag constant byte address 0x0 - dummy sync flag']
  #allocation23 [shape = 'u32[]', space=smem, size = 0x4, offset = 0x44, fixed_abs, tag = 'smem constant byte address 0x44 - assertion arg 0']
  #allocation24 [shape = 'u32[]', space=smem, size = 0x4, offset = 0x48, fixed_abs, tag = 'smem constant byte address 0x48 - assertion arg 1']
  #allocation25 [shape = 's32[]', space=sflag, size = 0x4, offset = 0, fixed_abs, tag = 'sflag constant byte address 0x0 - dummy sync flag']
  #allocation26 [shape = 's32[]', space=sflag, size = 0x4, offset = 0, fixed_abs, tag = 'sflag constant byte address 0x0 - dummy sync flag']
  #allocation27 [shape = 's32[]', space=sflag, size = 0x4, offset = 0, fixed_abs, tag = 'sflag constant byte address 0x0 - dummy sync flag']
  #allocation28 [shape = 's32[]', space=sflag, size = 0x4, offset = 0, fixed_abs, tag = 'sflag constant byte address 0x0 - dummy sync flag']
  #allocation29 [shape = 's32[]', space=sflag, size = 0x4, offset = 0, fixed_abs, tag = 'sflag constant byte address 0x0 - dummy sync flag']
  #allocation30 [shape = 's32[]', space=sflag, size = 0x4, offset = 0, fixed_abs, tag = 'sflag constant byte address 0x0 - dummy sync flag']
  #allocation31 [shape = 's32[]', space=sflag, size = 0x4, offset = 0, fixed_abs, tag = 'sflag constant byte address 0x0 - dummy sync flag']
  #allocation32 [shape = 's32[]', space=sflag, size = 0x4, offset = 0, fixed_abs, tag = 'sflag constant byte address 0x0 - dummy sync flag']
  #allocation33 [shape = 's32[]', space=sflag, size = 0x4, offset = 0, fixed_abs, tag = 'sflag constant byte address 0x0 - dummy sync flag']
  #allocation34 [shape = 's32[]', space=sflag, size = 0x4, offset = 0, fixed_abs, tag = 'sflag constant byte address 0x0 - dummy sync flag']
  %s0 = inlined_call_operand.hbm [shape: bf16[32,16,128], index: 0, kind: input, shape index: {}]
  %s1 = inlined_call_operand.hbm [shape: bf16[1,128], index: 1, kind: input, shape index: {}]
  %s2 = inlined_call_operand.hbm [shape: bf16[1,128], index: 2, kind: input, shape index: {}]
  %s3 = inlined_call_operand.hbm [shape: bf16[128,128], index: 3, kind: input, shape index: {}]
  %s4 = inlined_call_operand.hbm [shape: f32[1,128], index: 4, kind: input, shape index: {}]
  %s5 = inlined_call_operand.hbm [shape: bf16[1152,128], index: 5, kind: input, shape index: {}]
  %s6 = inlined_call_operand.hbm [shape: f32[1,128], index: 6, kind: input, shape index: {}]
  %s7 = inlined_call_operand.hbm [shape: bf16[128,128], index: 7, kind: input, shape index: {}]
  %s8 = inlined_call_operand.hbm [shape: bf16[128,128], index: 8, kind: input, shape index: {}]
  %s9 = inlined_call_operand.hbm [shape: f32[1,128], index: 9, kind: input, shape index: {}]
  %s10 = inlined_call_operand.hbm [shape: bf16[2,16,16,128], index: 10, kind: output, shape index: {}]
  %s11 = sld [smem:[#allocation0]]
  $region137: #{tpu_custom_call.1} parent=0
    _
  %s13 = ssub.s32 1, %s11
  %s14 = scalar_select 0, %s13, %s11
  $region1: #{tpu_custom_call.1} parent=0
    #allocation5 [shape = 'u8[512]{0}', space=vmem, size = 0x400, scoped, tag = 'input window, operand 1, single buffered']
    #allocation6 [shape = 's32[2]{0}', space=sflag, size = 0x8, scoped, tag = 'scoped memory for tpu_custom_call.1']
    #allocation7 [shape = 's32[2]{0}', space=sflag, size = 0x8, scoped, tag = 'scoped memory for tpu_custom_call.1']
    #allocation8 [shape = 'u8[512]{0}', space=vmem, size = 0x400, scoped, tag = 'input window, operand 2, single buffered']
    #allocation9 [shape = 's32[1]{0}', space=sflag, size = 0x4, scoped, tag = 'scoped memory for tpu_custom_call.1']
    #allocation10 [shape = 'u8[32768]{0}', space=vmem, size = 0x8000, scoped, tag = 'input window, operand 3, single buffered']
    #allocation11 [shape = 'u8[512]{0}', space=vmem, size = 0x400, scoped, tag = 'input window, operand 4, single buffered']
    #allocation12 [shape = 's32[1]{0}', space=sflag, size = 0x4, scoped, tag = 'scoped memory for tpu_custom_call.1']
    #allocation13 [shape = 'u8[294912]{0}', space=vmem, size = 0x48000, scoped, tag = 'input window, operand 5, single buffered']
    #allocation14 [shape = 'u8[512]{0}', space=vmem, size = 0x400, scoped, tag = 'input window, operand 6, single buffered']
    #allocation15 [shape = 's32[1]{0}', space=sflag, size = 0x4, scoped, tag = 'scoped memory for tpu_custom_call.1']
    #allocation16 [shape = 'u8[32768]{0}', space=vmem, size = 0x8000, scoped, tag = 'input window, operand 7, single buffered']
    #allocation17 [shape = 'u8[32768]{0}', space=vmem, size = 0x8000, scoped, tag = 'input window, operand 8, single buffered']
    #allocation18 [shape = 's32[1]{0}', space=sflag, size = 0x4, scoped, tag = 'scoped memory for tpu_custom_call.1']
    #allocation19 [shape = 'u8[512]{0}', space=vmem, size = 0x400, scoped, tag = 'input window, operand 9, single buffered']
    #allocation20 [shape = 'u8[65536]{0}', space=vmem, size = 0x10000, scoped, tag = 'output window, operand 0']
    %15 = vsyncpa [#allocation6], 0
    %16 = vsyncpa [#allocation9], 0
    %17 = vsyncpa [#allocation12], 0
    %18 = vsyncpa [#allocation15], 0
    %19 = vsyncpa [#allocation18], 0
    %20 = vsyncpa [#allocation7], 0
    %s21 = scalar_lea.sflag [#allocation7], 1
    %22 = vsyncpa %s21, 0
    loop: start=0, step=1, limit=6
    $region2: #{tpu_custom_call.1} parent=1 // loop_pre_header
      _
    $region3: #{tpu_custom_call.1} parent=1 // loop_header
      %s24 = sphi 0, %s28
      %p25 = scmp.ge.s32.totalorder %s24, 6
      %s31 = sphi 0, %s43
      %s32 = sphi 0, %s39
      %s33 = sphi 0, %s31
      %s34 = sphi 0, %s32
      %s35 = sphi 0, %s33
      %s36 = sphi 0, %s34
      %s44 = sphi 0, %s44
      %s46 = sphi 0, %s44
      %s47 = sphi 0, %s46
      %s61 = sphi 0, %s47
      %s65 = sphi 0, %s65
      %s67 = sphi 0, %s65
      %s68 = sphi 0, %s67
      %s82 = sphi 0, %s68
      %s86 = sphi 0, %s86
      %s88 = sphi 0, %s86
      %s89 = sphi 0, %s88
      %s103 = sphi 0, %s89
      %s107 = sphi 0, %s107
      %s109 = sphi 0, %s107
      %s110 = sphi 0, %s109
      %s124 = sphi 0, %s110
      %s128 = sphi 0, %s128
      %s130 = sphi 0, %s128
      %s131 = sphi 0, %s130
      %s145 = sphi 0, %s131
      %s149 = sphi 0, %s149
      %s151 = sphi 0, %s149
      %s152 = sphi 0, %s151
      %s166 = sphi 0, %s152
      %s170 = sphi 0, %s170
      %s172 = sphi 0, %s170
      %s173 = sphi 0, %s172
      %s187 = sphi 0, %s173
      %s191 = sphi 0, %s191
      %s193 = sphi 0, %s191
      %s194 = sphi 0, %s193
      %s208 = sphi 0, %s194
      %s212 = sphi 0, %s212
      %s214 = sphi 0, %s212
      %s215 = sphi 0, %s214
      %s229 = sphi 0, %s215
      %s237 = sphi 0, %s239
      %s240 = sphi 0, %s237
      %s241 = sphi 0, %s240
      %s257 = sphi 0, %s241
    $region4: #{tpu_custom_call.1} parent=1 // loop_header_branch
      %27 = sbr.rel (%p25) target = $region8
    $region5: #{tpu_custom_call.1} parent=1 // loop_body
      %s29 = ssub.s32 %s24, 1
      %s30 = ssub.s32 %s24, 2
      %s37 = sadd.s32 1, %s32
      %p38 = scmp.ge.s32.totalorder %s37, 2
      %s39 = scalar_select %p38, 0, %s37
      %s40 = sadd.s32 1, %s31
      %s41 = scalar_select %p38, %s40, %s31
      %p42 = scmp.ge.s32.totalorder %s41, 2
      %s43 = scalar_select %p42, 0, %s41
      %s45 = sadd.s32 %s44, 1
      %p48 = scmp.eq.s32.totalorder %s24, 3
      %p49 = scmp.ne.s32.totalorder %s44, %s46
      %p50 = scmp.eq.s32.totalorder %s24, 0
      %p51 = por %p49, %p50
      %p52 = scmp.ne.s32.totalorder %s44, %s46
      %p53 = scmp.eq.s32.totalorder %s29, 3
      %p54 = por %p52, %p53
      %p55 = scmp.ne.s32.totalorder %s46, %s47
      %p56 = scmp.eq.s32.totalorder %s29, 0
      %p57 = por %p55, %p56
      %p58 = scmp.ne.s32.totalorder %s46, %s47
      %p59 = scmp.eq.s32.totalorder %s30, 3
      %p60 = por %p58, %p59
      %p62 = scmp.ne.s32.totalorder %s47, %s61
      %p63 = scmp.eq.s32.totalorder %s30, 0
      %p64 = por %p62, %p63
      %s66 = sadd.s32 %s65, 1
      %p69 = scmp.eq.s32.totalorder %s24, 3
      %p70 = scmp.ne.s32.totalorder %s65, %s67
      %p71 = scmp.eq.s32.totalorder %s24, 0
      %p72 = por %p70, %p71
      %p73 = scmp.ne.s32.totalorder %s65, %s67
      %p74 = scmp.eq.s32.totalorder %s29, 3
      %p75 = por %p73, %p74
      %p76 = scmp.ne.s32.totalorder %s67, %s68
      %p77 = scmp.eq.s32.totalorder %s29, 0
      %p78 = por %p76, %p77
      %p79 = scmp.ne.s32.totalorder %s67, %s68
      %p80 = scmp.eq.s32.totalorder %s30, 3
      %p81 = por %p79, %p80
      %p83 = scmp.ne.s32.totalorder %s68, %s82
      %p84 = scmp.eq.s32.totalorder %s30, 0
      %p85 = por %p83, %p84
      %s87 = sadd.s32 %s86, 1
      %p90 = scmp.eq.s32.totalorder %s24, 3
      %p91 = scmp.ne.s32.totalorder %s86, %s88
      %p92 = scmp.eq.s32.totalorder %s24, 0
      %p93 = por %p91, %p92
      %p94 = scmp.ne.s32.totalorder %s86, %s88
      %p95 = scmp.eq.s32.totalorder %s29, 3
      %p96 = por %p94, %p95
      %p97 = scmp.ne.s32.totalorder %s88, %s89
      %p98 = scmp.eq.s32.totalorder %s29, 0
      %p99 = por %p97, %p98
      %p100 = scmp.ne.s32.totalorder %s88, %s89
      %p101 = scmp.eq.s32.totalorder %s30, 3
      %p102 = por %p100, %p101
      %p104 = scmp.ne.s32.totalorder %s89, %s103
      %p105 = scmp.eq.s32.totalorder %s30, 0
      %p106 = por %p104, %p105
      %s108 = sadd.s32 %s107, 1
      %p111 = scmp.eq.s32.totalorder %s24, 3
      %p112 = scmp.ne.s32.totalorder %s107, %s109
      %p113 = scmp.eq.s32.totalorder %s24, 0
      %p114 = por %p112, %p113
      %p115 = scmp.ne.s32.totalorder %s107, %s109
      %p116 = scmp.eq.s32.totalorder %s29, 3
      %p117 = por %p115, %p116
      %p118 = scmp.ne.s32.totalorder %s109, %s110
      %p119 = scmp.eq.s32.totalorder %s29, 0
      %p120 = por %p118, %p119
      %p121 = scmp.ne.s32.totalorder %s109, %s110
      %p122 = scmp.eq.s32.totalorder %s30, 3
      %p123 = por %p121, %p122
      %p125 = scmp.ne.s32.totalorder %s110, %s124
      %p126 = scmp.eq.s32.totalorder %s30, 0
      %p127 = por %p125, %p126
      %s129 = sadd.s32 %s128, 1
      %p132 = scmp.eq.s32.totalorder %s24, 3
      %p133 = scmp.ne.s32.totalorder %s128, %s130
      %p134 = scmp.eq.s32.totalorder %s24, 0
      %p135 = por %p133, %p134
      %p136 = scmp.ne.s32.totalorder %s128, %s130
      %p137 = scmp.eq.s32.totalorder %s29, 3
      %p138 = por %p136, %p137
      %p139 = scmp.ne.s32.totalorder %s130, %s131
      %p140 = scmp.eq.s32.totalorder %s29, 0
      %p141 = por %p139, %p140
      %p142 = scmp.ne.s32.totalorder %s130, %s131
      %p143 = scmp.eq.s32.totalorder %s30, 3
      %p144 = por %p142, %p143
      %p146 = scmp.ne.s32.totalorder %s131, %s145
      %p147 = scmp.eq.s32.totalorder %s30, 0
      %p148 = por %p146, %p147
      %s150 = sadd.s32 %s149, 1
      %p153 = scmp.eq.s32.totalorder %s24, 3
      %p154 = scmp.ne.s32.totalorder %s149, %s151
      %p155 = scmp.eq.s32.totalorder %s24, 0
      %p156 = por %p154, %p155
      %p157 = scmp.ne.s32.totalorder %s149, %s151
      %p158 = scmp.eq.s32.totalorder %s29, 3
      %p159 = por %p157, %p158
      %p160 = scmp.ne.s32.totalorder %s151, %s152
      %p161 = scmp.eq.s32.totalorder %s29, 0
      %p162 = por %p160, %p161
      %p163 = scmp.ne.s32.totalorder %s151, %s152
      %p164 = scmp.eq.s32.totalorder %s30, 3
      %p165 = por %p163, %p164
      %p167 = scmp.ne.s32.totalorder %s152, %s166
      %p168 = scmp.eq.s32.totalorder %s30, 0
      %p169 = por %p167, %p168
      %s171 = sadd.s32 %s170, 1
      %p174 = scmp.eq.s32.totalorder %s24, 3
      %p175 = scmp.ne.s32.totalorder %s170, %s172
      %p176 = scmp.eq.s32.totalorder %s24, 0
      %p177 = por %p175, %p176
      %p178 = scmp.ne.s32.totalorder %s170, %s172
      %p179 = scmp.eq.s32.totalorder %s29, 3
      %p180 = por %p178, %p179
      %p181 = scmp.ne.s32.totalorder %s172, %s173
      %p182 = scmp.eq.s32.totalorder %s29, 0
      %p183 = por %p181, %p182
      %p184 = scmp.ne.s32.totalorder %s172, %s173
      %p185 = scmp.eq.s32.totalorder %s30, 3
      %p186 = por %p184, %p185
      %p188 = scmp.ne.s32.totalorder %s173, %s187
      %p189 = scmp.eq.s32.totalorder %s30, 0
      %p190 = por %p188, %p189
      %s192 = sadd.s32 %s191, 1
      %p195 = scmp.eq.s32.totalorder %s24, 3
      %p196 = scmp.ne.s32.totalorder %s191, %s193
      %p197 = scmp.eq.s32.totalorder %s24, 0
      %p198 = por %p196, %p197
      %p199 = scmp.ne.s32.totalorder %s191, %s193
      %p200 = scmp.eq.s32.totalorder %s29, 3
      %p201 = por %p199, %p200
      %p202 = scmp.ne.s32.totalorder %s193, %s194
      %p203 = scmp.eq.s32.totalorder %s29, 0
      %p204 = por %p202, %p203
      %p205 = scmp.ne.s32.totalorder %s193, %s194
      %p206 = scmp.eq.s32.totalorder %s30, 3
      %p207 = por %p205, %p206
      %p209 = scmp.ne.s32.totalorder %s194, %s208
      %p210 = scmp.eq.s32.totalorder %s30, 0
      %p211 = por %p209, %p210
      %s213 = sadd.s32 %s212, 1
      %p216 = scmp.eq.s32.totalorder %s24, 3
      %p217 = scmp.ne.s32.totalorder %s212, %s214
      %p218 = scmp.eq.s32.totalorder %s24, 0
      %p219 = por %p217, %p218
      %p220 = scmp.ne.s32.totalorder %s212, %s214
      %p221 = scmp.eq.s32.totalorder %s29, 3
      %p222 = por %p220, %p221
      %p223 = scmp.ne.s32.totalorder %s214, %s215
      %p224 = scmp.eq.s32.totalorder %s29, 0
      %p225 = por %p223, %p224
      %p226 = scmp.ne.s32.totalorder %s214, %s215
      %p227 = scmp.eq.s32.totalorder %s30, 3
      %p228 = por %p226, %p227
      %p230 = scmp.ne.s32.totalorder %s215, %s229
      %p231 = scmp.eq.s32.totalorder %s30, 0
      %p232 = por %p230, %p231
      %s233 = ssub.s32 %s32, %s39
      %s234 = ssub.s32 %s31, %s43
      %s235 = sor.u32 %s233, %s234
      %p236 = scmp.eq.s32.totalorder %s235, 0
      %s238 = sadd.s32 %s237, 1
      %s239 = scalar_select %p236, %s237, %s238
      %p242 = pneg %p236
      %p243 = scmp.eq.s32.totalorder %s24, 3
      %p244 = por %p242, %p243
      %p245 = scmp.ne.s32.totalorder %s237, %s240
      %p246 = scmp.eq.s32.totalorder %s24, 0
      %p247 = por %p245, %p246
      %p248 = scmp.ne.s32.totalorder %s237, %s240
      %p249 = scmp.eq.s32.totalorder %s29, 3
      %p250 = por %p248, %p249
      %p251 = scmp.ne.s32.totalorder %s240, %s241
      %p252 = scmp.eq.s32.totalorder %s29, 0
      %p253 = por %p251, %p252
      %p254 = scmp.ne.s32.totalorder %s240, %s241
      %p255 = scmp.eq.s32.totalorder %s30, 3
      %p256 = por %p254, %p255
      %p258 = scmp.ne.s32.totalorder %s241, %s257
      %p259 = scmp.eq.s32.totalorder %s30, 0
      %p260 = por %p258, %p259
      %p261 = scmp.le.s32.totalorder 1, %s24
      %p262 = scmp.lt.s32.totalorder %s24, 5
      %p263 = pnand %p261, %p262
      %p264 = pneg %p263
      // Predicated region
      $region9: #{tpu_custom_call.1} parent=5 // pred_check
        _
      $region10: #{tpu_custom_call.1} parent=5 // pred_check_branch
        %266 = sbr.rel (%p263) target = $region12
      $region11: #{tpu_custom_call.1} parent=5 // pred_region
        %s267 = ssub.s32 %s24, 1
        // Predicated region
        $region13: #{tpu_custom_call.1} parent=11 // pred_check
          %p268 = pneg %p57
        $region14: #{tpu_custom_call.1} parent=11 // pred_check_branch
          %270 = sbr.rel (%p268) target = $region16
        $region15: #{tpu_custom_call.1} parent=11 // pred_region
          %s272 = ssub.s32 16, 16
          %273 = vsyncadd [#allocation6], %s272
          %s275 = sshll.u32 [#allocation5], 4
          %s276 = int_to_ptr.vmem [resolvable:$true] %s275
          %278 = dma.hbm_to_vmem [thread:$0]  %s1, 16, %s276, [#allocation6]
        $region16: #{tpu_custom_call.1} parent=11 // pred_fallthru
          _
        // Predicated region
        $region17: #{tpu_custom_call.1} parent=11 // pred_check
          %p279 = pneg %p78
        $region18: #{tpu_custom_call.1} parent=11 // pred_check_branch
          %281 = sbr.rel (%p279) target = $region20
        $region19: #{tpu_custom_call.1} parent=11 // pred_region
          %s283 = ssub.s32 16, 16
          %284 = vsyncadd [#allocation9], %s283
          %s286 = sshll.u32 [#allocation8], 4
          %s287 = int_to_ptr.vmem [resolvable:$true] %s286
          %289 = dma.hbm_to_vmem [thread:$0]  %s2, 16, %s287, [#allocation9]
        $region20: #{tpu_custom_call.1} parent=11 // pred_fallthru
          _
        // Predicated region
        $region21: #{tpu_custom_call.1} parent=11 // pred_check
          %p290 = pneg %p99
        $region22: #{tpu_custom_call.1} parent=11 // pred_check_branch
          %292 = sbr.rel (%p290) target = $region24
        $region23: #{tpu_custom_call.1} parent=11 // pred_region
          %s294 = ssub.s32 1024, 1024
          %295 = vsyncadd [#allocation9], %s294
          %s296 = sshll.u32 [#allocation10], 4
          %s297 = int_to_ptr.vmem [resolvable:$true] %s296
          %302 = dma.hbm_to_vmem [thread:$0]  %s3, 1024, %s297, [#allocation9], 64, 64, 4
        $region24: #{tpu_custom_call.1} parent=11 // pred_fallthru
          _
        // Predicated region
        $region25: #{tpu_custom_call.1} parent=11 // pred_check
          %p303 = pneg %p120
        $region26: #{tpu_custom_call.1} parent=11 // pred_check_branch
          %305 = sbr.rel (%p303) target = $region28
        $region27: #{tpu_custom_call.1} parent=11 // pred_region
          %s307 = ssub.s32 16, 16
          %308 = vsyncadd [#allocation12], %s307
          %s310 = sshll.u32 [#allocation11], 4
          %s311 = int_to_ptr.vmem [resolvable:$true] %s310
          %313 = dma.hbm_to_vmem [thread:$0]  %s4, 16, %s311, [#allocation12]
        $region28: #{tpu_custom_call.1} parent=11 // pred_fallthru
          _
        // Predicated region
        $region29: #{tpu_custom_call.1} parent=11 // pred_check
          %p314 = pneg %p141
        $region30: #{tpu_custom_call.1} parent=11 // pred_check_branch
          %316 = sbr.rel (%p314) target = $region32
        $region31: #{tpu_custom_call.1} parent=11 // pred_region
          %s318 = ssub.s32 9216, 9216
          %319 = vsyncadd [#allocation12], %s318
          %s320 = sshll.u32 [#allocation13], 4
          %s321 = int_to_ptr.vmem [resolvable:$true] %s320
          %326 = dma.hbm_to_vmem [thread:$0]  %s5, 9216, %s321, [#allocation12], 64, 64, 4
        $region32: #{tpu_custom_call.1} parent=11 // pred_fallthru
          _
        // Predicated region
        $region33: #{tpu_custom_call.1} parent=11 // pred_check
          %p327 = pneg %p162
        $region34: #{tpu_custom_call.1} parent=11 // pred_check_branch
          %329 = sbr.rel (%p327) target = $region36
        $region35: #{tpu_custom_call.1} parent=11 // pred_region
          %s331 = ssub.s32 16, 16
          %332 = vsyncadd [#allocation15], %s331
          %s334 = sshll.u32 [#allocation14], 4
          %s335 = int_to_ptr.vmem [resolvable:$true] %s334
          %337 = dma.hbm_to_vmem [thread:$0]  %s6, 16, %s335, [#allocation15]
        $region36: #{tpu_custom_call.1} parent=11 // pred_fallthru
          _
        // Predicated region
        $region37: #{tpu_custom_call.1} parent=11 // pred_check
          %p338 = pneg %p183
        $region38: #{tpu_custom_call.1} parent=11 // pred_check_branch
          %340 = sbr.rel (%p338) target = $region40
        $region39: #{tpu_custom_call.1} parent=11 // pred_region
          %s342 = ssub.s32 1024, 1024
          %343 = vsyncadd [#allocation15], %s342
          %s344 = sshll.u32 [#allocation16], 4
          %s345 = int_to_ptr.vmem [resolvable:$true] %s344
          %350 = dma.hbm_to_vmem [thread:$0]  %s7, 1024, %s345, [#allocation15], 64, 64, 4
        $region40: #{tpu_custom_call.1} parent=11 // pred_fallthru
          _
        // Predicated region
        $region41: #{tpu_custom_call.1} parent=11 // pred_check
          %p351 = pneg %p204
        $region42: #{tpu_custom_call.1} parent=11 // pred_check_branch
          %353 = sbr.rel (%p351) target = $region44
        $region43: #{tpu_custom_call.1} parent=11 // pred_region
          %s355 = ssub.s32 1024, 1024
          %356 = vsyncadd [#allocation18], %s355
          %s357 = sshll.u32 [#allocation17], 4
          %s358 = int_to_ptr.vmem [resolvable:$true] %s357
          %363 = dma.hbm_to_vmem [thread:$0]  %s8, 1024, %s358, [#allocation18], 64, 64, 4
        $region44: #{tpu_custom_call.1} parent=11 // pred_fallthru
          _
        // Predicated region
        $region45: #{tpu_custom_call.1} parent=11 // pred_check
          %p364 = pneg %p225
        $region46: #{tpu_custom_call.1} parent=11 // pred_check_branch
          %366 = sbr.rel (%p364) target = $region48
        $region47: #{tpu_custom_call.1} parent=11 // pred_region
          %s368 = ssub.s32 16, 16
          %369 = vsyncadd [#allocation18], %s368
          %s371 = sshll.u32 [#allocation19], 4
          %s372 = int_to_ptr.vmem [resolvable:$true] %s371
          %374 = dma.hbm_to_vmem [thread:$0]  %s9, 16, %s372, [#allocation18]
        $region48: #{tpu_custom_call.1} parent=11 // pred_fallthru
          _
      $region12: #{tpu_custom_call.1} parent=5 // pred_fallthru
        _
      %p375 = scmp.lt.s32.totalorder %s24, 4
      // Predicated region
      $region49: #{tpu_custom_call.1} parent=5 // pred_check
        %p376 = pneg %p375
      $region50: #{tpu_custom_call.1} parent=5 // pred_check_branch
        %378 = sbr.rel (%p376) target = $region52
      $region51: #{tpu_custom_call.1} parent=5 // pred_region
        _
      $region52: #{tpu_custom_call.1} parent=5 // pred_fallthru
        _
      %p379 = scmp.le.s32.totalorder 1, %s24
      %p380 = scmp.lt.s32.totalorder %s24, 5
      %p381 = pnand %p379, %p380
      %p382 = pneg %p381
      // Predicated region
      $region53: #{tpu_custom_call.1} parent=5 // pred_check
        _
      $region54: #{tpu_custom_call.1} parent=5 // pred_check_branch
        %384 = sbr.rel (%p381) target = $region56
      $region55: #{tpu_custom_call.1} parent=5 // pred_region
        %s385 = ssub.s32 %s24, 1
        // Predicated region
        $region57: #{tpu_custom_call.1} parent=55 // pred_check
          %p386 = pneg %p57
        $region58: #{tpu_custom_call.1} parent=55 // pred_check_branch
          %388 = sbr.rel (%p386) target = $region60
        $region59: #{tpu_custom_call.1} parent=55 // pred_region
          %389 = dma.done [#allocation6], 16
        $region60: #{tpu_custom_call.1} parent=55 // pred_fallthru
          _
        // Predicated region
        $region61: #{tpu_custom_call.1} parent=55 // pred_check
          %p390 = pneg %p78
        $region62: #{tpu_custom_call.1} parent=55 // pred_check_branch
          %392 = sbr.rel (%p390) target = $region64
        $region63: #{tpu_custom_call.1} parent=55 // pred_region
          %393 = dma.done [#allocation9], 16
        $region64: #{tpu_custom_call.1} parent=55 // pred_fallthru
          _
        // Predicated region
        $region65: #{tpu_custom_call.1} parent=55 // pred_check
          %p394 = pneg %p99
        $region66: #{tpu_custom_call.1} parent=55 // pred_check_branch
          %396 = sbr.rel (%p394) target = $region68
        $region67: #{tpu_custom_call.1} parent=55 // pred_region
          %397 = dma.done [#allocation9], 1024
        $region68: #{tpu_custom_call.1} parent=55 // pred_fallthru
          _
        // Predicated region
        $region69: #{tpu_custom_call.1} parent=55 // pred_check
          %p398 = pneg %p120
        $region70: #{tpu_custom_call.1} parent=55 // pred_check_branch
          %400 = sbr.rel (%p398) target = $region72
        $region71: #{tpu_custom_call.1} parent=55 // pred_region
          %401 = dma.done [#allocation12], 16
        $region72: #{tpu_custom_call.1} parent=55 // pred_fallthru
          _
        // Predicated region
        $region73: #{tpu_custom_call.1} parent=55 // pred_check
          %p402 = pneg %p141
        $region74: #{tpu_custom_call.1} parent=55 // pred_check_branch
          %404 = sbr.rel (%p402) target = $region76
        $region75: #{tpu_custom_call.1} parent=55 // pred_region
          %405 = dma.done [#allocation12], 9216
        $region76: #{tpu_custom_call.1} parent=55 // pred_fallthru
          _
        // Predicated region
        $region77: #{tpu_custom_call.1} parent=55 // pred_check
          %p406 = pneg %p162
        $region78: #{tpu_custom_call.1} parent=55 // pred_check_branch
          %408 = sbr.rel (%p406) target = $region80
        $region79: #{tpu_custom_call.1} parent=55 // pred_region
          %409 = dma.done [#allocation15], 16
        $region80: #{tpu_custom_call.1} parent=55 // pred_fallthru
          _
        // Predicated region
        $region81: #{tpu_custom_call.1} parent=55 // pred_check
          %p410 = pneg %p183
        $region82: #{tpu_custom_call.1} parent=55 // pred_check_branch
          %412 = sbr.rel (%p410) target = $region84
        $region83: #{tpu_custom_call.1} parent=55 // pred_region
          %413 = dma.done [#allocation15], 1024
        $region84: #{tpu_custom_call.1} parent=55 // pred_fallthru
          _
        // Predicated region
        $region85: #{tpu_custom_call.1} parent=55 // pred_check
          %p414 = pneg %p204
        $region86: #{tpu_custom_call.1} parent=55 // pred_check_branch
          %416 = sbr.rel (%p414) target = $region88
        $region87: #{tpu_custom_call.1} parent=55 // pred_region
          %417 = dma.done [#allocation18], 1024
        $region88: #{tpu_custom_call.1} parent=55 // pred_fallthru
          _
        // Predicated region
        $region89: #{tpu_custom_call.1} parent=55 // pred_check
          %p418 = pneg %p225
        $region90: #{tpu_custom_call.1} parent=55 // pred_check_branch
          %420 = sbr.rel (%p418) target = $region92
        $region91: #{tpu_custom_call.1} parent=55 // pred_region
          %421 = dma.done [#allocation18], 16
        $region92: #{tpu_custom_call.1} parent=55 // pred_fallthru
          _
        %p422 = pneg %p57
        %p423 = pneg %p54
        %p424 = pneg %p78
        %p425 = pneg %p75
        %p426 = pneg %p99
        %p427 = pneg %p96
        %p428 = pneg %p120
        %p429 = pneg %p117
        %p430 = pneg %p141
        %p431 = pneg %p138
        %p432 = pneg %p162
        %p433 = pneg %p159
        %p434 = pneg %p183
        %p435 = pneg %p180
        %p436 = pneg %p204
        %p437 = pneg %p201
        %p438 = pneg %p225
        %p439 = pneg %p222
        %p440 = pneg %p253
        %p441 = pneg %p250
        %s442 = sand.u32 %s240, 1
        %s443 = scalar_lea.sflag [#allocation7], %s442
        %s444 = sand.u32 %s240, 1
        %s445 = smul.addr %s444, 64
        %s446 = scalar_lea.vmem [#allocation20], %s445
        %s447 = smul.u32 8, %s33
        %p449 = scmp.lt.s32.totalorder %s34, 0
        %s450 = ssub.s32 0, %s34
        %s451 = scalar_select %p449, %s450, %s34
        %s452 = sand.u32 %s451, 1
        %s453 = ssub.s32 0, %s452
        %s454 = scalar_select %p449, %s453, %s452
        %p455 = scmp.ne.s32.totalorder %s454, 0
        %p456 = scmp.lt.s32.totalorder %s454, 0
        %p457 = pnand %p456, %p455
        %p458 = pneg %p457
        %s459 = sadd.s32 %s454, 2
        %s460 = scalar_select %p458, %s459, %s454
        %s461 = smul.u32 %s460, 10
        %p462 = scmp.eq.s32.totalorder %s34, 0
        // Predicated region
        $region93: #{tpu_custom_call.1} parent=55 // pred_check
          %p463 = pneg %p462
        $region94: #{tpu_custom_call.1} parent=55 // pred_check_branch
          %465 = sbr.rel (%p463) target = $region96
        $region95: #{tpu_custom_call.1} parent=55 // pred_region
          %s466 = smul.u32 %s33, 8
          %s467 = ssub.s32 %s466, 1
          %p468 = scmp.gt.s32.totalorder %s467, 0
          %s469 = scalar_select %p468, %s467, 0
          %s470 = sadd.s32 %s466, 8
          %p471 = scmp.lt.s32.totalorder %s470, 31
          %s472 = scalar_select %p471, %s470, 31
          %s473 = smul.u32 %s466, 2
          %s474 = smul.addr %s473, 64
          %s475 = scalar_lea.hbm %s0, %s474
          %s476 = scalar_lea.vmem [#allocation2], 8
          // Predicated region
          $region97: #{tpu_custom_call.1} parent=95 // pred_check
            _
          $region98: #{tpu_custom_call.1} parent=95 // pred_check_branch
            %478 = sbr.rel target = $region100
          $region99: #{tpu_custom_call.1} parent=95 // pred_region
            %479 = sst [smem:[#allocation23]] [#allocation22]
            %480 = sst [smem:[#allocation24]] [#allocation21]
          $region100: #{tpu_custom_call.1} parent=95 // pred_fallthru
            _
          %482 = shalt.err (0)
          %s484 = sshll.u32 %s476, 4
          %s485 = int_to_ptr.vmem [resolvable:$true] %s484
          %487 = dma.hbm_to_vmem [thread:$0]  %s475, 1024, %s485, [#allocation3]
          %s488 = smul.u32 %s469, 2
          %s489 = smul.addr %s488, 64
          %s490 = scalar_lea.hbm %s0, %s489
          %s491 = scalar_lea.sflag [#allocation3], 1
          // Predicated region
          $region101: #{tpu_custom_call.1} parent=95 // pred_check
            _
          $region102: #{tpu_custom_call.1} parent=95 // pred_check_branch
            %493 = sbr.rel target = $region104
          $region103: #{tpu_custom_call.1} parent=95 // pred_region
            %494 = sst [smem:[#allocation23]] [#allocation26]
            %495 = sst [smem:[#allocation24]] [#allocation25]
          $region104: #{tpu_custom_call.1} parent=95 // pred_fallthru
            _
          %497 = shalt.err (0)
          %s499 = sshll.u32 [#allocation2], 4
          %s500 = int_to_ptr.vmem [resolvable:$true] %s499
          %502 = dma.hbm_to_vmem [thread:$0]  %s490, 128, %s500, %s491
          %s503 = smul.u32 %s472, 2
          %s504 = smul.addr %s503, 64
          %s505 = scalar_lea.hbm %s0, %s504
          %s506 = scalar_lea.vmem [#allocation2], 72
          %s507 = scalar_lea.sflag [#allocation3], 2
          // Predicated region
          $region105: #{tpu_custom_call.1} parent=95 // pred_check
            _
          $region106: #{tpu_custom_call.1} parent=95 // pred_check_branch
            %509 = sbr.rel target = $region108
          $region107: #{tpu_custom_call.1} parent=95 // pred_region
            %510 = sst [smem:[#allocation23]] [#allocation28]
            %511 = sst [smem:[#allocation24]] [#allocation27]
          $region108: #{tpu_custom_call.1} parent=95 // pred_fallthru
            _
          %513 = shalt.err (0)
          %s515 = sshll.u32 %s506, 4
          %s516 = int_to_ptr.vmem [resolvable:$true] %s515
          %518 = dma.hbm_to_vmem [thread:$0]  %s505, 128, %s516, %s507
        $region96: #{tpu_custom_call.1} parent=55 // pred_fallthru
          _
        %s519 = smul.u32 %s460, 3
        %s520 = scalar_lea.sflag [#allocation3], %s519
        %s521 = smul.u32 4, 8
        %s522 = smul.u32 %s521, 2
        %s523 = smul.u32 %s522, 1
        %s524 = sshll.u32 %s523, 4
        %525 = dma.done %s520, %s524
        %s526 = sadd.s32 1, %s519
        %s527 = scalar_lea.sflag [#allocation3], %s526
        %s528 = smul.u32 4, 1
        %s529 = smul.u32 %s528, 2
        %s530 = smul.u32 %s529, 1
        %s531 = sshll.u32 %s530, 4
        %532 = dma.done %s527, %s531
        %s533 = sadd.s32 2, %s519
        %s534 = scalar_lea.sflag [#allocation3], %s533
        %s535 = sshll.u32 %s530, 4
        %536 = dma.done %s534, %s535
        %s537 = sadd.s32 %s34, 1
        %p538 = scmp.lt.s32.totalorder %s537, 2
        // Predicated region
        $region109: #{tpu_custom_call.1} parent=55 // pred_check
          %p539 = pneg %p538
        $region110: #{tpu_custom_call.1} parent=55 // pred_check_branch
          %541 = sbr.rel (%p539) target = $region112
        $region111: #{tpu_custom_call.1} parent=55 // pred_region
          %s542 = ssub.s32 1, %s460
          %s543 = smul.u32 %s537, 2
          %s544 = sadd.s32 %s543, %s33
          %s545 = smul.u32 %s544, 8
          %s546 = smul.u32 %s542, 10
          %s547 = ssub.s32 %s545, 1
          %p548 = scmp.gt.s32.totalorder %s547, 0
          %s549 = scalar_select %p548, %s547, 0
          %s550 = sadd.s32 %s545, 8
          %p551 = scmp.lt.s32.totalorder %s550, 31
          %s552 = scalar_select %p551, %s550, 31
          %s553 = sadd.s32 %s546, 1
          %s554 = sadd.s32 %s546, 9
          %s555 = smul.u32 %s545, 2
          %s556 = smul.addr %s555, 64
          %s557 = scalar_lea.hbm %s0, %s556
          %s558 = smul.addr %s553, 8
          %s559 = scalar_lea.vmem [#allocation2], %s558
          %s560 = smul.u32 %s542, 3
          %s561 = scalar_lea.sflag [#allocation3], %s560
          // Predicated region
          $region113: #{tpu_custom_call.1} parent=111 // pred_check
            _
          $region114: #{tpu_custom_call.1} parent=111 // pred_check_branch
            %563 = sbr.rel target = $region116
          $region115: #{tpu_custom_call.1} parent=111 // pred_region
            %564 = sst [smem:[#allocation23]] [#allocation30]
            %565 = sst [smem:[#allocation24]] [#allocation29]
          $region116: #{tpu_custom_call.1} parent=111 // pred_fallthru
            _
          %567 = shalt.err (0)
          %s569 = sshll.u32 %s559, 4
          %s570 = int_to_ptr.vmem [resolvable:$true] %s569
          %572 = dma.hbm_to_vmem [thread:$0]  %s557, 1024, %s570, %s561
          %s573 = smul.u32 %s549, 2
          %s574 = smul.addr %s573, 64
          %s575 = scalar_lea.hbm %s0, %s574
          %s576 = smul.addr %s546, 8
          %s577 = scalar_lea.vmem [#allocation2], %s576
          %s578 = sadd.s32 1, %s560
          %s579 = scalar_lea.sflag [#allocation3], %s578
          // Predicated region
          $region117: #{tpu_custom_call.1} parent=111 // pred_check
            _
          $region118: #{tpu_custom_call.1} parent=111 // pred_check_branch
            %581 = sbr.rel target = $region120
          $region119: #{tpu_custom_call.1} parent=111 // pred_region
            %582 = sst [smem:[#allocation23]] [#allocation32]
            %583 = sst [smem:[#allocation24]] [#allocation31]
          $region120: #{tpu_custom_call.1} parent=111 // pred_fallthru
            _
          %585 = shalt.err (0)
          %s587 = sshll.u32 %s577, 4
          %s588 = int_to_ptr.vmem [resolvable:$true] %s587
          %590 = dma.hbm_to_vmem [thread:$0]  %s575, 128, %s588, %s579
          %s591 = smul.u32 %s552, 2
          %s592 = smul.addr %s591, 64
          %s593 = scalar_lea.hbm %s0, %s592
          %s594 = smul.addr %s554, 8
          %s595 = scalar_lea.vmem [#allocation2], %s594
          %s596 = sadd.s32 2, %s560
          %s597 = scalar_lea.sflag [#allocation3], %s596
          // Predicated region
          $region121: #{tpu_custom_call.1} parent=111 // pred_check
            _
          $region122: #{tpu_custom_call.1} parent=111 // pred_check_branch
            %599 = sbr.rel target = $region124
          $region123: #{tpu_custom_call.1} parent=111 // pred_region
            %600 = sst [smem:[#allocation23]] [#allocation34]
            %601 = sst [smem:[#allocation24]] [#allocation33]
          $region124: #{tpu_custom_call.1} parent=111 // pred_fallthru
            _
          %603 = shalt.err (0)
          %s605 = sshll.u32 %s595, 4
          %s606 = int_to_ptr.vmem [resolvable:$true] %s605
          %608 = dma.hbm_to_vmem [thread:$0]  %s593, 128, %s606, %s597
        $region112: #{tpu_custom_call.1} parent=55 // pred_fallthru
          _
        %s609 = smul.addr %s461, 8
        %s610 = scalar_lea.vmem [#allocation2], %s609
        %v611 = vld [vmem:[%s610] sm:$0xff]
        %v612 = vld [vmem:[%s610 + $0x8] sm:$0xff]
        %v613 = vld [vmem:[%s610 + $0x10] sm:$0xff]
        %v614 = vld [vmem:[%s610 + $0x18] sm:$0xff]
        %v615 = vld [vmem:[%s610 + $0x20] sm:$0xff]
        %v616 = vld [vmem:[%s610 + $0x28] sm:$0xff]
        %v617 = vld [vmem:[%s610 + $0x30] sm:$0xff]
        %v618 = vld [vmem:[%s610 + $0x38] sm:$0xff]
        %v619 = vld [vmem:[%s610 + $0x40] sm:$0xff]
        %v620 = vld [vmem:[%s610 + $0x48] sm:$0xff]
        %v621 = vld [vmem:[#allocation5] sm:$0x1]
        %v623 = vpack.i.b16 %v621, %v621
        %v625 = vlaneseq
        %v626 = vshrl.u32 %v625, 7
        %v627 = vsub.s32 0, %v626
        %v628 = vrot.slane %v623, %v627
        %v629 = vmul.bf16 %v611, %v628
        %v630 = vmul.bf16 %v612, %v628
        %v631 = vmul.bf16 %v613, %v628
        %v632 = vmul.bf16 %v614, %v628
        %v633 = vmul.bf16 %v615, %v628
        %v634 = vmul.bf16 %v616, %v628
        %v635 = vmul.bf16 %v617, %v628
        %v636 = vmul.bf16 %v618, %v628
        %v637 = vmul.bf16 %v619, %v628
        %v638 = vmul.bf16 %v620, %v628
        %v639 = vld [vmem:[#allocation8] sm:$0x1]
        %v641 = vpack.i.b16 %v639, %v639
        %v643 = vlaneseq
        %v644 = vshrl.u32 %v643, 7
        %v645 = vsub.s32 0, %v644
        %v646 = vrot.slane %v641, %v645
        %v647 = vadd.bf16 %v629, %v646
        %v648 = vadd.bf16 %v630, %v646
        %v649 = vadd.bf16 %v631, %v646
        %v650 = vadd.bf16 %v632, %v646
        %v651 = vadd.bf16 %v633, %v646
        %v652 = vadd.bf16 %v634, %v646
        %v653 = vadd.bf16 %v635, %v646
        %v654 = vadd.bf16 %v636, %v646
        %v655 = vadd.bf16 %v637, %v646
        %v656 = vadd.bf16 %v638, %v646
        %v657 = vmax.bf16 %v647, 0
        %v658 = vmax.bf16 %v648, 0
        %v659 = vmax.bf16 %v649, 0
        %v660 = vmax.bf16 %v650, 0
        %v661 = vmax.bf16 %v651, 0
        %v662 = vmax.bf16 %v652, 0
        %v663 = vmax.bf16 %v653, 0
        %v664 = vmax.bf16 %v654, 0
        %v665 = vmax.bf16 %v655, 0
        %v666 = vmax.bf16 %v656, 0
        %v667 = vld [vmem:[#allocation10] sm:$0xf]
        %v668 = vld [vmem:[#allocation10 + $0x4] sm:$0xf]
        %v669 = vld [vmem:[#allocation10 + $0x8] sm:$0xf]
        %v670 = vld [vmem:[#allocation10 + $0xc] sm:$0xf]
        %v671 = vld [vmem:[#allocation10 + $0x10] sm:$0xf]
        %v672 = vld [vmem:[#allocation10 + $0x14] sm:$0xf]
        %v673 = vld [vmem:[#allocation10 + $0x18] sm:$0xf]
        %v674 = vld [vmem:[#allocation10 + $0x1c] sm:$0xf]
        %v675 = vld [vmem:[#allocation10 + $0x20] sm:$0xf]
        %v676 = vld [vmem:[#allocation10 + $0x24] sm:$0xf]
        %v677 = vld [vmem:[#allocation10 + $0x28] sm:$0xf]
        %v678 = vld [vmem:[#allocation10 + $0x2c] sm:$0xf]
        %v679 = vld [vmem:[#allocation10 + $0x30] sm:$0xf]
        %v680 = vld [vmem:[#allocation10 + $0x34] sm:$0xf]
        %v681 = vld [vmem:[#allocation10 + $0x38] sm:$0xf]
        %v682 = vld [vmem:[#allocation10 + $0x3c] sm:$0xf]
        %v683 = vld [vmem:[#allocation11] sm:$0x1]
        %v685 = vlaneseq
        %v686 = vshrl.u32 %v685, 7
        %v687 = vsub.s32 0, %v686
        %v688 = vrot.slane %v683, %v687
        %v706 = vunpack.c.l.b16 %v667
        %v707 = vunpack.c.l.b16 %v668
        %v708 = vunpack.c.l.b16 %v669
        %v709 = vunpack.c.l.b16 %v670
        %v710 = vunpack.c.l.b16 %v671
        %v711 = vunpack.c.l.b16 %v672
        %v712 = vunpack.c.l.b16 %v673
        %v713 = vunpack.c.l.b16 %v674
        %v714 = vunpack.c.l.b16 %v675
        %v715 = vunpack.c.l.b16 %v676
        %v716 = vunpack.c.l.b16 %v677
        %v717 = vunpack.c.l.b16 %v678
        %v718 = vunpack.c.l.b16 %v679
        %v719 = vunpack.c.l.b16 %v680
        %v720 = vunpack.c.l.b16 %v681
        %v721 = vunpack.c.l.b16 %v682
        %v722 = vpack.c.b16 %v707, %v706
        %v723 = vpack.c.b16 %v709, %v708
        %v724 = vpack.c.b16 %v711, %v710
        %v725 = vpack.c.b16 %v713, %v712
        %v726 = vpack.c.b16 %v715, %v714
        %v727 = vpack.c.b16 %v717, %v716
        %v728 = vpack.c.b16 %v719, %v718
        %v729 = vpack.c.b16 %v721, %v720
        %738 = vmatprep.subr.bf16.mxu0 0
        %739 = vmatpush1.bf16.msra.mxu0 %v722
        %740 = vmatprep.subr.bf16.mxu0 0
        %741 = vmatpush1.bf16.msra.mxu0 %v723
        %742 = vmatprep.subr.bf16.mxu0 0
        %743 = vmatpush1.bf16.msra.mxu0 %v724
        %744 = vmatprep.subr.bf16.mxu0 0
        %745 = vmatpush1.bf16.msra.mxu0 %v725
        %746 = vmatprep.subr.bf16.mxu0 0
        %747 = vmatpush1.bf16.msra.mxu0 %v726
        %748 = vmatprep.subr.bf16.mxu0 0
        %749 = vmatpush1.bf16.msra.mxu0 %v727
        %750 = vmatprep.subr.bf16.mxu0 0
        %751 = vmatpush1.bf16.msra.mxu0 %v728
        %752 = vmatprep.subr.bf16.mxu0 0
        %753 = vmatpush1.bf16.msra.mxu0 %v729
        %754 = vmatprep.subr.bf16.mxu0 0
        %755 = vmatpush1.bf16.msra.mxu0 0
        %756 = vmatprep.subr.bf16.mxu0 0
        %757 = vmatpush1.bf16.msra.mxu0 0
        %758 = vmatprep.subr.bf16.mxu0 0
        %759 = vmatpush1.bf16.msra.mxu0 0
        %760 = vmatprep.subr.bf16.mxu0 0
        %761 = vmatpush1.bf16.msra.mxu0 0
        %762 = vmatprep.subr.bf16.mxu0 0
        %763 = vmatpush1.bf16.msra.mxu0 0
        %764 = vmatprep.subr.bf16.mxu0 0
        %765 = vmatpush1.bf16.msra.mxu0 0
        %766 = vmatprep.subr.bf16.mxu0 0
        %767 = vmatpush1.bf16.msra.mxu0 0
        %768 = vmatprep.subr.bf16.mxu0 0
        %769 = vmatpush1.bf16.msra.mxu0 0
        %770 = vmatprep.mubr.bf16.mxu0 0
        %771 = vmatmul.mubr.bf16.gmra.mrb[0].mxu0 %v657
        %v772 = vpop.f32.mrb[0].mxu0
        %v773 = vadd.f32 %v688, %v772
        %v774 = vpop.f32.mrb[0].mxu0
        %v775 = vpop.f32.mrb[0].mxu0
        %v776 = vadd.f32 %v688, %v775
        %v777 = vpop.f32.mrb[0].mxu0
        %778 = vmatprep.mubr.bf16.mxu0 0
        %779 = vmatmul.mubr.bf16.gmra.mrb[0].mxu0 %v658
        %v780 = vpop.f32.mrb[0].mxu0
        %v781 = vadd.f32 %v688, %v780
        %v782 = vpop.f32.mrb[0].mxu0
        %v783 = vpop.f32.mrb[0].mxu0
        %v784 = vadd.f32 %v688, %v783
        %v785 = vpop.f32.mrb[0].mxu0
        %786 = vmatprep.mubr.bf16.mxu0 0
        %787 = vmatmul.mubr.bf16.gmra.mrb[0].mxu0 %v659
        %v788 = vpop.f32.mrb[0].mxu0
        %v789 = vadd.f32 %v688, %v788
        %v790 = vpop.f32.mrb[0].mxu0
        %v791 = vpop.f32.mrb[0].mxu0
        %v792 = vadd.f32 %v688, %v791
        %v793 = vpop.f32.mrb[0].mxu0
        %794 = vmatprep.mubr.bf16.mxu0 0
        %795 = vmatmul.mubr.bf16.gmra.mrb[0].mxu0 %v660
        %v796 = vpop.f32.mrb[0].mxu0
        %v797 = vadd.f32 %v688, %v796
        %v798 = vpop.f32.mrb[0].mxu0
        %v799 = vpop.f32.mrb[0].mxu0
        %v800 = vadd.f32 %v688, %v799
        %v801 = vpop.f32.mrb[0].mxu0
        %802 = vmatprep.mubr.bf16.mxu0 0
        %803 = vmatmul.mubr.bf16.gmra.mrb[0].mxu0 %v661
        %v804 = vpop.f32.mrb[0].mxu0
        %v805 = vadd.f32 %v688, %v804
        %v806 = vpop.f32.mrb[0].mxu0
        %v807 = vpop.f32.mrb[0].mxu0
        %v808 = vadd.f32 %v688, %v807
        %v809 = vpop.f32.mrb[0].mxu0
        %810 = vmatprep.mubr.bf16.mxu0 0
        %811 = vmatmul.mubr.bf16.gmra.mrb[0].mxu0 %v662
        %v812 = vpop.f32.mrb[0].mxu0
        %v813 = vadd.f32 %v688, %v812
        %v814 = vpop.f32.mrb[0].mxu0
        %v815 = vpop.f32.mrb[0].mxu0
        %v816 = vadd.f32 %v688, %v815
        %v817 = vpop.f32.mrb[0].mxu0
        %818 = vmatprep.mubr.bf16.mxu0 0
        %819 = vmatmul.mubr.bf16.gmra.mrb[0].mxu0 %v663
        %v820 = vpop.f32.mrb[0].mxu0
        %v821 = vadd.f32 %v688, %v820
        %v822 = vpop.f32.mrb[0].mxu0
        %v823 = vpop.f32.mrb[0].mxu0
        %v824 = vadd.f32 %v688, %v823
        %v825 = vpop.f32.mrb[0].mxu0
        %826 = vmatprep.mubr.bf16.mxu0 0
        %827 = vmatmul.mubr.bf16.gmra.mrb[0].mxu0 %v664
        %v828 = vpop.f32.mrb[0].mxu0
        %v829 = vadd.f32 %v688, %v828
        %v830 = vpop.f32.mrb[0].mxu0
        %v831 = vpop.f32.mrb[0].mxu0
        %v832 = vadd.f32 %v688, %v831
        %v833 = vpop.f32.mrb[0].mxu0
        %834 = vmatprep.mubr.bf16.mxu0 0
        %835 = vmatmul.mubr.bf16.gmra.mrb[0].mxu0 %v665
        %v836 = vpop.f32.mrb[0].mxu0
        %v837 = vadd.f32 %v688, %v836
        %v838 = vpop.f32.mrb[0].mxu0
        %v839 = vpop.f32.mrb[0].mxu0
        %v840 = vadd.f32 %v688, %v839
        %v841 = vpop.f32.mrb[0].mxu0
        %842 = vmatprep.mubr.bf16.mxu0 0
        %843 = vmatmul.mubr.bf16.gmra.mrb[0].mxu0 %v666
        %v844 = vpop.f32.mrb[0].mxu0
        %v845 = vadd.f32 %v688, %v844
        %v846 = vpop.f32.mrb[0].mxu0
        %v847 = vpop.f32.mrb[0].mxu0
        %v848 = vadd.f32 %v688, %v847
        %v849 = vpop.f32.mrb[0].mxu0
        %850 = vdwg.mxu0
        %v851 = vmax.f32 %v773, 0.0
        %v852 = vmax.f32 %v776, 0.0
        %v853 = vmax.f32 %v781, 0.0
        %v854 = vmax.f32 %v784, 0.0
        %v855 = vmax.f32 %v789, 0.0
        %v856 = vmax.f32 %v792, 0.0
        %v857 = vmax.f32 %v797, 0.0
        %v858 = vmax.f32 %v800, 0.0
        %v859 = vmax.f32 %v805, 0.0
        %v860 = vmax.f32 %v808, 0.0
        %v861 = vmax.f32 %v813, 0.0
        %v862 = vmax.f32 %v816, 0.0
        %v863 = vmax.f32 %v821, 0.0
        %v864 = vmax.f32 %v824, 0.0
        %v865 = vmax.f32 %v829, 0.0
        %v866 = vmax.f32 %v832, 0.0
        %v867 = vmax.f32 %v837, 0.0
        %v868 = vmax.f32 %v840, 0.0
        %v869 = vmax.f32 %v845, 0.0
        %v870 = vmax.f32 %v848, 0.0
        %v871 = vpack.c.bf16 %v852, %v851
        %v872 = vpack.c.bf16 %v854, %v853
        %v873 = vpack.c.bf16 %v856, %v855
        %v874 = vpack.c.bf16 %v858, %v857
        %v875 = vpack.c.bf16 %v860, %v859
        %v876 = vpack.c.bf16 %v862, %v861
        %v877 = vpack.c.bf16 %v864, %v863
        %v878 = vpack.c.bf16 %v866, %v865
        %v879 = vpack.c.bf16 %v868, %v867
        %v880 = vpack.c.bf16 %v870, %v869
        %p881 = scmp.gt.s32.totalorder %s33, 0
        %s882 = scalar_select %p881, 1, 0
        %v883 = vstv %s882
        %vm884 = vcmp.eq.s32.totalorder %v883, 1
        %p885 = scmp.lt.s32.totalorder %s33, 1
        %s886 = scalar_select %p885, 1, 0
        %v887 = vstv %s886
        %vm888 = vcmp.eq.s32.totalorder %v887, 1
        %v889 = vsel %vm884, 1, 0
        %v890 = vsel %vm888, 1, 0
        %vm891 = vcmp.eq.s32.totalorder %v889, 1
        %vm892 = vcmp.eq.s32.totalorder %v890, 1
        %v893 = vsel %vm891, %v871, 0
        %v894 = vsel 1, %v872, 0
        %v895 = vsel 1, %v873, 0
        %v896 = vsel 1, %v874, 0
        %v897 = vsel 1, %v875, 0
        %v898 = vsel 1, %v876, 0
        %v899 = vsel 1, %v877, 0
        %v900 = vsel 1, %v878, 0
        %v901 = vsel 1, %v879, 0
        %v902 = vsel %vm892, %v880, 0
        %v904 = vshrl.u32 %v893, 16
        %v906 = vrot.slane %v904, 7
        %v907 = vshll.u32 %v893, 16
        %v909 = vor.u32 %v906, %v907
        %v911 = vshrl.u32 %v894, 16
        %v913 = vrot.slane %v911, 7
        %v914 = vshll.u32 %v894, 16
        %v916 = vor.u32 %v913, %v914
        %v918 = vshrl.u32 %v895, 16
        %v920 = vrot.slane %v918, 7
        %v921 = vshll.u32 %v895, 16
        %v923 = vor.u32 %v920, %v921
        %v925 = vshrl.u32 %v896, 16
        %v927 = vrot.slane %v925, 7
        %v928 = vshll.u32 %v896, 16
        %v930 = vor.u32 %v927, %v928
        %v932 = vshrl.u32 %v897, 16
        %v934 = vrot.slane %v932, 7
        %v935 = vshll.u32 %v897, 16
        %v937 = vor.u32 %v934, %v935
        %v939 = vshrl.u32 %v898, 16
        %v941 = vrot.slane %v939, 7
        %v942 = vshll.u32 %v898, 16
        %v944 = vor.u32 %v941, %v942
        %v946 = vshrl.u32 %v899, 16
        %v948 = vrot.slane %v946, 7
        %v949 = vshll.u32 %v899, 16
        %v951 = vor.u32 %v948, %v949
        %v953 = vshrl.u32 %v900, 16
        %v955 = vrot.slane %v953, 7
        %v956 = vshll.u32 %v900, 16
        %v958 = vor.u32 %v955, %v956
        %v960 = vshrl.u32 %v901, 16
        %v962 = vrot.slane %v960, 7
        %v963 = vshll.u32 %v901, 16
        %v965 = vor.u32 %v962, %v963
        %v967 = vshrl.u32 %v902, 16
        %v969 = vrot.slane %v967, 7
        %v970 = vshll.u32 %v902, 16
        %v972 = vor.u32 %v969, %v970
        %vm993 = vcmask 1040384
        %vm994 = vsmask.f32 256
        %vm995 = vmand %vm993, %vm994
        %v996 = vsel %vm995, 0, %v909
        %v997 = vsel %vm995, 0, %v916
        %v998 = vsel %vm995, 0, %v923
        %v999 = vsel %vm995, 0, %v930
        %v1000 = vsel %vm995, 0, %v937
        %v1001 = vsel %vm995, 0, %v944
        %v1002 = vsel %vm995, 0, %v951
        %v1003 = vsel %vm995, 0, %v958
        %v1004 = vsel %vm995, 0, %v965
        %v1005 = vsel %vm995, 0, %v972
        %v1006 = vsel %vm995, %v906, 0
        %v1007 = vsel %vm995, %v913, 0
        %v1008 = vsel %vm995, %v920, 0
        %v1009 = vsel %vm995, %v927, 0
        %v1010 = vsel %vm995, %v934, 0
        %v1011 = vsel %vm995, %v941, 0
        %v1012 = vsel %vm995, %v948, 0
        %v1013 = vsel %vm995, %v955, 0
        %v1014 = vsel %vm995, %v962, 0
        %v1015 = vsel %vm995, %v969, 0
        %1016 = vst [vmem:[#allocation4] sm:$0xff] %v996
        %1017 = vst [vmem:[#allocation4 + $0x48] sm:$0xff] %v997
        %1018 = vst [vmem:[#allocation4 + $0x90] sm:$0xff] %v998
        %1019 = vst [vmem:[#allocation4 + $0xd8] sm:$0xff] %v999
        %1020 = vst [vmem:[#allocation4 + $0x120] sm:$0xff] %v1000
        %1021 = vst [vmem:[#allocation4 + $0x168] sm:$0xff] %v1001
        %1022 = vst [vmem:[#allocation4 + $0x1b0] sm:$0xff] %v1002
        %1023 = vst [vmem:[#allocation4 + $0x1f8] sm:$0xff] %v1003
        %vm1024 = vsmask.f32 7424
        %v1026 = vshrl.u32 %v996, 16
        %v1028 = vshll.u32 %v996, 16
        %v1030 = vrot.slane %v1028, 1
        %v1031 = vor.u32 %v1026, %v1030
        %v1033 = vshll.u32 %v1006, 16
        %v1035 = vrot.slane %v1033, 1
        %v1036 = vsel %vm1024, %v1031, %v1035
        %v1038 = vshrl.u32 %v997, 16
        %v1040 = vshll.u32 %v997, 16
        %v1042 = vrot.slane %v1040, 1
        %v1043 = vor.u32 %v1038, %v1042
        %v1045 = vshll.u32 %v1007, 16
        %v1047 = vrot.slane %v1045, 1
        %v1048 = vsel %vm1024, %v1043, %v1047
        %v1050 = vshrl.u32 %v998, 16
        %v1052 = vshll.u32 %v998, 16
        %v1054 = vrot.slane %v1052, 1
        %v1055 = vor.u32 %v1050, %v1054
        %v1057 = vshll.u32 %v1008, 16
        %v1059 = vrot.slane %v1057, 1
        %v1060 = vsel %vm1024, %v1055, %v1059
        %v1062 = vshrl.u32 %v999, 16
        %v1064 = vshll.u32 %v999, 16
        %v1066 = vrot.slane %v1064, 1
        %v1067 = vor.u32 %v1062, %v1066
        %v1069 = vshll.u32 %v1009, 16
        %v1071 = vrot.slane %v1069, 1
        %v1072 = vsel %vm1024, %v1067, %v1071
        %v1074 = vshrl.u32 %v1000, 16
        %v1076 = vshll.u32 %v1000, 16
        %v1078 = vrot.slane %v1076, 1
        %v1079 = vor.u32 %v1074, %v1078
        %v1081 = vshll.u32 %v1010, 16
        %v1083 = vrot.slane %v1081, 1
        %v1084 = vsel %vm1024, %v1079, %v1083
        %v1086 = vshrl.u32 %v1001, 16
        %v1088 = vshll.u32 %v1001, 16
        %v1090 = vrot.slane %v1088, 1
        %v1091 = vor.u32 %v1086, %v1090
        %v1093 = vshll.u32 %v1011, 16
        %v1095 = vrot.slane %v1093, 1
        %v1096 = vsel %vm1024, %v1091, %v1095
        %v1098 = vshrl.u32 %v1002, 16
        %v1100 = vshll.u32 %v1002, 16
        %v1102 = vrot.slane %v1100, 1
        %v1103 = vor.u32 %v1098, %v1102
        %v1105 = vshll.u32 %v1012, 16
        %v1107 = vrot.slane %v1105, 1
        %v1108 = vsel %vm1024, %v1103, %v1107
        %v1110 = vshrl.u32 %v1003, 16
        %v1112 = vshll.u32 %v1003, 16
        %v1114 = vrot.slane %v1112, 1
        %v1115 = vor.u32 %v1110, %v1114
        %v1117 = vshll.u32 %v1013, 16
        %v1119 = vrot.slane %v1117, 1
        %v1120 = vsel %vm1024, %v1115, %v1119
        %1129 = vst [vmem:[#allocation4 + $0x8] sm:$0xff] %v1036
        %1130 = vst [vmem:[#allocation4 + $0x50] sm:$0xff] %v1048
        %1131 = vst [vmem:[#allocation4 + $0x98] sm:$0xff] %v1060
        %1132 = vst [vmem:[#allocation4 + $0xe0] sm:$0xff] %v1072
        %1133 = vst [vmem:[#allocation4 + $0x128] sm:$0xff] %v1084
        %1134 = vst [vmem:[#allocation4 + $0x170] sm:$0xff] %v1096
        %1135 = vst [vmem:[#allocation4 + $0x1b8] sm:$0xff] %v1108
        %1136 = vst [vmem:[#allocation4 + $0x200] sm:$0xff] %v1120
        %vm1153 = vcmask 1046528
        %v1154 = vrot.slane %v996, 1
        %v1155 = vrot.slane %v1006, 1
        %v1156 = vsel %vm1153, %v1154, %v1155
        %v1157 = vrot.slane %v997, 1
        %v1158 = vrot.slane %v1007, 1
        %v1159 = vsel %vm1153, %v1157, %v1158
        %v1160 = vrot.slane %v998, 1
        %v1161 = vrot.slane %v1008, 1
        %v1162 = vsel %vm1153, %v1160, %v1161
        %v1163 = vrot.slane %v999, 1
        %v1164 = vrot.slane %v1009, 1
        %v1165 = vsel %vm1153, %v1163, %v1164
        %v1166 = vrot.slane %v1000, 1
        %v1167 = vrot.slane %v1010, 1
        %v1168 = vsel %vm1153, %v1166, %v1167
        %v1169 = vrot.slane %v1001, 1
        %v1170 = vrot.slane %v1011, 1
        %v1171 = vsel %vm1153, %v1169, %v1170
        %v1172 = vrot.slane %v1002, 1
        %v1173 = vrot.slane %v1012, 1
        %v1174 = vsel %vm1153, %v1172, %v1173
        %v1175 = vrot.slane %v1003, 1
        %v1176 = vrot.slane %v1013, 1
        %v1177 = vsel %vm1153, %v1175, %v1176
        %1186 = vst [vmem:[#allocation4 + $0x10] sm:$0xff] %v1156
        %1187 = vst [vmem:[#allocation4 + $0x58] sm:$0xff] %v1159
        %1188 = vst [vmem:[#allocation4 + $0xa0] sm:$0xff] %v1162
        %1189 = vst [vmem:[#allocation4 + $0xe8] sm:$0xff] %v1165
        %1190 = vst [vmem:[#allocation4 + $0x130] sm:$0xff] %v1168
        %1191 = vst [vmem:[#allocation4 + $0x178] sm:$0xff] %v1171
        %1192 = vst [vmem:[#allocation4 + $0x1c0] sm:$0xff] %v1174
        %1193 = vst [vmem:[#allocation4 + $0x208] sm:$0xff] %v1177
        %1194 = vst [vmem:[#allocation4 + $0x18] sm:$0xff] %v997
        %1195 = vst [vmem:[#allocation4 + $0x60] sm:$0xff] %v998
        %1196 = vst [vmem:[#allocation4 + $0xa8] sm:$0xff] %v999
        %1197 = vst [vmem:[#allocation4 + $0xf0] sm:$0xff] %v1000
        %1198 = vst [vmem:[#allocation4 + $0x138] sm:$0xff] %v1001
        %1199 = vst [vmem:[#allocation4 + $0x180] sm:$0xff] %v1002
        %1200 = vst [vmem:[#allocation4 + $0x1c8] sm:$0xff] %v1003
        %1201 = vst [vmem:[#allocation4 + $0x210] sm:$0xff] %v1004
        %v1203 = vshrl.u32 %v1004, 16
        %v1205 = vshll.u32 %v1004, 16
        %v1207 = vrot.slane %v1205, 1
        %v1208 = vor.u32 %v1203, %v1207
        %v1210 = vshll.u32 %v1014, 16
        %v1212 = vrot.slane %v1210, 1
        %v1213 = vsel %vm1024, %v1208, %v1212
        %1215 = vst [vmem:[#allocation4 + $0x20] sm:$0xff] %v1048
        %1216 = vst [vmem:[#allocation4 + $0x68] sm:$0xff] %v1060
        %1217 = vst [vmem:[#allocation4 + $0xb0] sm:$0xff] %v1072
        %1218 = vst [vmem:[#allocation4 + $0xf8] sm:$0xff] %v1084
        %1219 = vst [vmem:[#allocation4 + $0x140] sm:$0xff] %v1096
        %1220 = vst [vmem:[#allocation4 + $0x188] sm:$0xff] %v1108
        %1221 = vst [vmem:[#allocation4 + $0x1d0] sm:$0xff] %v1120
        %1222 = vst [vmem:[#allocation4 + $0x218] sm:$0xff] %v1213
        %v1225 = vrot.slane %v1004, 1
        %v1226 = vrot.slane %v1014, 1
        %v1227 = vsel %vm1153, %v1225, %v1226
        %1229 = vst [vmem:[#allocation4 + $0x28] sm:$0xff] %v1159
        %1230 = vst [vmem:[#allocation4 + $0x70] sm:$0xff] %v1162
        %1231 = vst [vmem:[#allocation4 + $0xb8] sm:$0xff] %v1165
        %1232 = vst [vmem:[#allocation4 + $0x100] sm:$0xff] %v1168
        %1233 = vst [vmem:[#allocation4 + $0x148] sm:$0xff] %v1171
        %1234 = vst [vmem:[#allocation4 + $0x190] sm:$0xff] %v1174
        %1235 = vst [vmem:[#allocation4 + $0x1d8] sm:$0xff] %v1177
        %1236 = vst [vmem:[#allocation4 + $0x220] sm:$0xff] %v1227
        %1237 = vst [vmem:[#allocation4 + $0x30] sm:$0xff] %v998
        %1238 = vst [vmem:[#allocation4 + $0x78] sm:$0xff] %v999
        %1239 = vst [vmem:[#allocation4 + $0xc0] sm:$0xff] %v1000
        %1240 = vst [vmem:[#allocation4 + $0x108] sm:$0xff] %v1001
        %1241 = vst [vmem:[#allocation4 + $0x150] sm:$0xff] %v1002
        %1242 = vst [vmem:[#allocation4 + $0x198] sm:$0xff] %v1003
        %1243 = vst [vmem:[#allocation4 + $0x1e0] sm:$0xff] %v1004
        %1244 = vst [vmem:[#allocation4 + $0x228] sm:$0xff] %v1005
        %v1246 = vshrl.u32 %v1005, 16
        %v1248 = vshll.u32 %v1005, 16
        %v1250 = vrot.slane %v1248, 1
        %v1251 = vor.u32 %v1246, %v1250
        %v1253 = vshll.u32 %v1015, 16
        %v1255 = vrot.slane %v1253, 1
        %v1256 = vsel %vm1024, %v1251, %v1255
        %1258 = vst [vmem:[#allocation4 + $0x38] sm:$0xff] %v1060
        %1259 = vst [vmem:[#allocation4 + $0x80] sm:$0xff] %v1072
        %1260 = vst [vmem:[#allocation4 + $0xc8] sm:$0xff] %v1084
        %1261 = vst [vmem:[#allocation4 + $0x110] sm:$0xff] %v1096
        %1262 = vst [vmem:[#allocation4 + $0x158] sm:$0xff] %v1108
        %1263 = vst [vmem:[#allocation4 + $0x1a0] sm:$0xff] %v1120
        %1264 = vst [vmem:[#allocation4 + $0x1e8] sm:$0xff] %v1213
        %1265 = vst [vmem:[#allocation4 + $0x230] sm:$0xff] %v1256
        %v1268 = vrot.slane %v1005, 1
        %v1269 = vrot.slane %v1015, 1
        %v1270 = vsel %vm1153, %v1268, %v1269
        %1272 = vst [vmem:[#allocation4 + $0x40] sm:$0xff] %v1162
        %1273 = vst [vmem:[#allocation4 + $0x88] sm:$0xff] %v1165
        %1274 = vst [vmem:[#allocation4 + $0xd0] sm:$0xff] %v1168
        %1275 = vst [vmem:[#allocation4 + $0x118] sm:$0xff] %v1171
        %1276 = vst [vmem:[#allocation4 + $0x160] sm:$0xff] %v1174
        %1277 = vst [vmem:[#allocation4 + $0x1a8] sm:$0xff] %v1177
        %1278 = vst [vmem:[#allocation4 + $0x1f0] sm:$0xff] %v1227
        %1279 = vst [vmem:[#allocation4 + $0x238] sm:$0xff] %v1270
        %v1280 = vld [vmem:[#allocation4] sm:$0xff]
        %v1281 = vld [vmem:[#allocation4 + $0x8] sm:$0xff]
        %v1282 = vld [vmem:[#allocation4 + $0x10] sm:$0xff]
        %v1283 = vld [vmem:[#allocation4 + $0x18] sm:$0xff]
        %v1284 = vld [vmem:[#allocation4 + $0x20] sm:$0xff]
        %v1285 = vld [vmem:[#allocation4 + $0x28] sm:$0xff]
        %v1286 = vld [vmem:[#allocation4 + $0x30] sm:$0xff]
        %v1287 = vld [vmem:[#allocation4 + $0x38] sm:$0xff]
        %v1288 = vld [vmem:[#allocation4 + $0x40] sm:$0xff]
        %v1289 = vld [vmem:[#allocation4 + $0x48] sm:$0xff]
        %v1290 = vld [vmem:[#allocation4 + $0x50] sm:$0xff]
        %v1291 = vld [vmem:[#allocation4 + $0x58] sm:$0xff]
        %v1292 = vld [vmem:[#allocation4 + $0x60] sm:$0xff]
        %v1293 = vld [vmem:[#allocation4 + $0x68] sm:$0xff]
        %v1294 = vld [vmem:[#allocation4 + $0x70] sm:$0xff]
        %v1295 = vld [vmem:[#allocation4 + $0x78] sm:$0xff]
        %v1296 = vld [vmem:[#allocation4 + $0x80] sm:$0xff]
        %v1297 = vld [vmem:[#allocation4 + $0x88] sm:$0xff]
        %v1298 = vld [vmem:[#allocation4 + $0x90] sm:$0xff]
        %v1299 = vld [vmem:[#allocation4 + $0x98] sm:$0xff]
        %v1300 = vld [vmem:[#allocation4 + $0xa0] sm:$0xff]
        %v1301 = vld [vmem:[#allocation4 + $0xa8] sm:$0xff]
        %v1302 = vld [vmem:[#allocation4 + $0xb0] sm:$0xff]
        %v1303 = vld [vmem:[#allocation4 + $0xb8] sm:$0xff]
        %v1304 = vld [vmem:[#allocation4 + $0xc0] sm:$0xff]
        %v1305 = vld [vmem:[#allocation4 + $0xc8] sm:$0xff]
        %v1306 = vld [vmem:[#allocation4 + $0xd0] sm:$0xff]
        %v1307 = vld [vmem:[#allocation4 + $0xd8] sm:$0xff]
        %v1308 = vld [vmem:[#allocation4 + $0xe0] sm:$0xff]
        %v1309 = vld [vmem:[#allocation4 + $0xe8] sm:$0xff]
        %v1310 = vld [vmem:[#allocation4 + $0xf0] sm:$0xff]
        %v1311 = vld [vmem:[#allocation4 + $0xf8] sm:$0xff]
        %v1312 = vld [vmem:[#allocation4 + $0x100] sm:$0xff]
        %v1313 = vld [vmem:[#allocation4 + $0x108] sm:$0xff]
        %v1314 = vld [vmem:[#allocation4 + $0x110] sm:$0xff]
        %v1315 = vld [vmem:[#allocation4 + $0x118] sm:$0xff]
        %v1316 = vld [vmem:[#allocation4 + $0x120] sm:$0xff]
        %v1317 = vld [vmem:[#allocation4 + $0x128] sm:$0xff]
        %v1318 = vld [vmem:[#allocation4 + $0x130] sm:$0xff]
        %v1319 = vld [vmem:[#allocation4 + $0x138] sm:$0xff]
        %v1320 = vld [vmem:[#allocation4 + $0x140] sm:$0xff]
        %v1321 = vld [vmem:[#allocation4 + $0x148] sm:$0xff]
        %v1322 = vld [vmem:[#allocation4 + $0x150] sm:$0xff]
        %v1323 = vld [vmem:[#allocation4 + $0x158] sm:$0xff]
        %v1324 = vld [vmem:[#allocation4 + $0x160] sm:$0xff]
        %v1325 = vld [vmem:[#allocation4 + $0x168] sm:$0xff]
        %v1326 = vld [vmem:[#allocation4 + $0x170] sm:$0xff]
        %v1327 = vld [vmem:[#allocation4 + $0x178] sm:$0xff]
        %v1328 = vld [vmem:[#allocation4 + $0x180] sm:$0xff]
        %v1329 = vld [vmem:[#allocation4 + $0x188] sm:$0xff]
        %v1330 = vld [vmem:[#allocation4 + $0x190] sm:$0xff]
        %v1331 = vld [vmem:[#allocation4 + $0x198] sm:$0xff]
        %v1332 = vld [vmem:[#allocation4 + $0x1a0] sm:$0xff]
        %v1333 = vld [vmem:[#allocation4 + $0x1a8] sm:$0xff]
        %v1334 = vld [vmem:[#allocation4 + $0x1b0] sm:$0xff]
        %v1335 = vld [vmem:[#allocation4 + $0x1b8] sm:$0xff]
        %v1336 = vld [vmem:[#allocation4 + $0x1c0] sm:$0xff]
        %v1337 = vld [vmem:[#allocation4 + $0x1c8] sm:$0xff]
        %v1338 = vld [vmem:[#allocation4 + $0x1d0] sm:$0xff]
        %v1339 = vld [vmem:[#allocation4 + $0x1d8] sm:$0xff]
        %v1340 = vld [vmem:[#allocation4 + $0x1e0] sm:$0xff]
        %v1341 = vld [vmem:[#allocation4 + $0x1e8] sm:$0xff]
        %v1342 = vld [vmem:[#allocation4 + $0x1f0] sm:$0xff]
        %v1343 = vld [vmem:[#allocation4 + $0x1f8] sm:$0xff]
        %v1344 = vld [vmem:[#allocation4 + $0x200] sm:$0xff]
        %v1345 = vld [vmem:[#allocation4 + $0x208] sm:$0xff]
        %v1346 = vld [vmem:[#allocation4 + $0x210] sm:$0xff]
        %v1347 = vld [vmem:[#allocation4 + $0x218] sm:$0xff]
        %v1348 = vld [vmem:[#allocation4 + $0x220] sm:$0xff]
        %v1349 = vld [vmem:[#allocation4 + $0x228] sm:$0xff]
        %v1350 = vld [vmem:[#allocation4 + $0x230] sm:$0xff]
        %v1351 = vld [vmem:[#allocation4 + $0x238] sm:$0xff]
        %v1352 = vld [vmem:[#allocation13] sm:$0xf]
        %v1353 = vld [vmem:[#allocation13 + $0x4] sm:$0xf]
        %v1354 = vld [vmem:[#allocation13 + $0x8] sm:$0xf]
        %v1355 = vld [vmem:[#allocation13 + $0xc] sm:$0xf]
        %v1356 = vld [vmem:[#allocation13 + $0x10] sm:$0xf]
        %v1357 = vld [vmem:[#allocation13 + $0x14] sm:$0xf]
        %v1358 = vld [vmem:[#allocation13 + $0x18] sm:$0xf]
        %v1359 = vld [vmem:[#allocation13 + $0x1c] sm:$0xf]
        %v1360 = vld [vmem:[#allocation13 + $0x20] sm:$0xf]
        %v1361 = vld [vmem:[#allocation13 + $0x24] sm:$0xf]
        %v1362 = vld [vmem:[#allocation13 + $0x28] sm:$0xf]
        %v1363 = vld [vmem:[#allocation13 + $0x2c] sm:$0xf]
        %v1364 = vld [vmem:[#allocation13 + $0x30] sm:$0xf]
        %v1365 = vld [vmem:[#allocation13 + $0x34] sm:$0xf]
        %v1366 = vld [vmem:[#allocation13 + $0x38] sm:$0xf]
        %v1367 = vld [vmem:[#allocation13 + $0x3c] sm:$0xf]
        %v1368 = vld [vmem:[#allocation13 + $0x40] sm:$0xf]
        %v1369 = vld [vmem:[#allocation13 + $0x44] sm:$0xf]
        %v1370 = vld [vmem:[#allocation13 + $0x48] sm:$0xf]
        %v1371 = vld [vmem:[#allocation13 + $0x4c] sm:$0xf]
        %v1372 = vld [vmem:[#allocation13 + $0x50] sm:$0xf]
        %v1373 = vld [vmem:[#allocation13 + $0x54] sm:$0xf]
        %v1374 = vld [vmem:[#allocation13 + $0x58] sm:$0xf]
        %v1375 = vld [vmem:[#allocation13 + $0x5c] sm:$0xf]
        %v1376 = vld [vmem:[#allocation13 + $0x60] sm:$0xf]
        %v1377 = vld [vmem:[#allocation13 + $0x64] sm:$0xf]
        %v1378 = vld [vmem:[#allocation13 + $0x68] sm:$0xf]
        %v1379 = vld [vmem:[#allocation13 + $0x6c] sm:$0xf]
        %v1380 = vld [vmem:[#allocation13 + $0x70] sm:$0xf]
        %v1381 = vld [vmem:[#allocation13 + $0x74] sm:$0xf]
        %v1382 = vld [vmem:[#allocation13 + $0x78] sm:$0xf]
        %v1383 = vld [vmem:[#allocation13 + $0x7c] sm:$0xf]
        %v1384 = vld [vmem:[#allocation13 + $0x80] sm:$0xf]
        %v1385 = vld [vmem:[#allocation13 + $0x84] sm:$0xf]
        %v1386 = vld [vmem:[#allocation13 + $0x88] sm:$0xf]
        %v1387 = vld [vmem:[#allocation13 + $0x8c] sm:$0xf]
        %v1388 = vld [vmem:[#allocation13 + $0x90] sm:$0xf]
        %v1389 = vld [vmem:[#allocation13 + $0x94] sm:$0xf]
        %v1390 = vld [vmem:[#allocation13 + $0x98] sm:$0xf]
        %v1391 = vld [vmem:[#allocation13 + $0x9c] sm:$0xf]
        %v1392 = vld [vmem:[#allocation13 + $0xa0] sm:$0xf]
        %v1393 = vld [vmem:[#allocation13 + $0xa4] sm:$0xf]
        %v1394 = vld [vmem:[#allocation13 + $0xa8] sm:$0xf]
        %v1395 = vld [vmem:[#allocation13 + $0xac] sm:$0xf]
        %v1396 = vld [vmem:[#allocation13 + $0xb0] sm:$0xf]
        %v1397 = vld [vmem:[#allocation13 + $0xb4] sm:$0xf]
        %v1398 = vld [vmem:[#allocation13 + $0xb8] sm:$0xf]
        %v1399 = vld [vmem:[#allocation13 + $0xbc] sm:$0xf]
        %v1400 = vld [vmem:[#allocation13 + $0xc0] sm:$0xf]
        %v1401 = vld [vmem:[#allocation13 + $0xc4] sm:$0xf]
        %v1402 = vld [vmem:[#allocation13 + $0xc8] sm:$0xf]
        %v1403 = vld [vmem:[#allocation13 + $0xcc] sm:$0xf]
        %v1404 = vld [vmem:[#allocation13 + $0xd0] sm:$0xf]
        %v1405 = vld [vmem:[#allocation13 + $0xd4] sm:$0xf]
        %v1406 = vld [vmem:[#allocation13 + $0xd8] sm:$0xf]
        %v1407 = vld [vmem:[#allocation13 + $0xdc] sm:$0xf]
        %v1408 = vld [vmem:[#allocation13 + $0xe0] sm:$0xf]
        %v1409 = vld [vmem:[#allocation13 + $0xe4] sm:$0xf]
        %v1410 = vld [vmem:[#allocation13 + $0xe8] sm:$0xf]
        %v1411 = vld [vmem:[#allocation13 + $0xec] sm:$0xf]
        %v1412 = vld [vmem:[#allocation13 + $0xf0] sm:$0xf]
        %v1413 = vld [vmem:[#allocation13 + $0xf4] sm:$0xf]
        %v1414 = vld [vmem:[#allocation13 + $0xf8] sm:$0xf]
        %v1415 = vld [vmem:[#allocation13 + $0xfc] sm:$0xf]
        %v1416 = vld [vmem:[#allocation13 + $0x100] sm:$0xf]
        %v1417 = vld [vmem:[#allocation13 + $0x104] sm:$0xf]
        %v1418 = vld [vmem:[#allocation13 + $0x108] sm:$0xf]
        %v1419 = vld [vmem:[#allocation13 + $0x10c] sm:$0xf]
        %v1420 = vld [vmem:[#allocation13 + $0x110] sm:$0xf]
        %v1421 = vld [vmem:[#allocation13 + $0x114] sm:$0xf]
        %v1422 = vld [vmem:[#allocation13 + $0x118] sm:$0xf]
        %v1423 = vld [vmem:[#allocation13 + $0x11c] sm:$0xf]
        %v1424 = vld [vmem:[#allocation13 + $0x120] sm:$0xf]
        %v1425 = vld [vmem:[#allocation13 + $0x124] sm:$0xf]
        %v1426 = vld [vmem:[#allocation13 + $0x128] sm:$0xf]
        %v1427 = vld [vmem:[#allocation13 + $0x12c] sm:$0xf]
        %v1428 = vld [vmem:[#allocation13 + $0x130] sm:$0xf]
        %v1429 = vld [vmem:[#allocation13 + $0x134] sm:$0xf]
        %v1430 = vld [vmem:[#allocation13 + $0x138] sm:$0xf]
        %v1431 = vld [vmem:[#allocation13 + $0x13c] sm:$0xf]
        %v1432 = vld [vmem:[#allocation13 + $0x140] sm:$0xf]
        %v1433 = vld [vmem:[#allocation13 + $0x144] sm:$0xf]
        %v1434 = vld [vmem:[#allocation13 + $0x148] sm:$0xf]
        %v1435 = vld [vmem:[#allocation13 + $0x14c] sm:$0xf]
        %v1436 = vld [vmem:[#allocation13 + $0x150] sm:$0xf]
        %v1437 = vld [vmem:[#allocation13 + $0x154] sm:$0xf]
        %v1438 = vld [vmem:[#allocation13 + $0x158] sm:$0xf]
        %v1439 = vld [vmem:[#allocation13 + $0x15c] sm:$0xf]
        %v1440 = vld [vmem:[#allocation13 + $0x160] sm:$0xf]
        %v1441 = vld [vmem:[#allocation13 + $0x164] sm:$0xf]
        %v1442 = vld [vmem:[#allocation13 + $0x168] sm:$0xf]
        %v1443 = vld [vmem:[#allocation13 + $0x16c] sm:$0xf]
        %v1444 = vld [vmem:[#allocation13 + $0x170] sm:$0xf]
        %v1445 = vld [vmem:[#allocation13 + $0x174] sm:$0xf]
        %v1446 = vld [vmem:[#allocation13 + $0x178] sm:$0xf]
        %v1447 = vld [vmem:[#allocation13 + $0x17c] sm:$0xf]
        %v1448 = vld [vmem:[#allocation13 + $0x180] sm:$0xf]
        %v1449 = vld [vmem:[#allocation13 + $0x184] sm:$0xf]
        %v1450 = vld [vmem:[#allocation13 + $0x188] sm:$0xf]
        %v1451 = vld [vmem:[#allocation13 + $0x18c] sm:$0xf]
        %v1452 = vld [vmem:[#allocation13 + $0x190] sm:$0xf]
        %v1453 = vld [vmem:[#allocation13 + $0x194] sm:$0xf]
        %v1454 = vld [vmem:[#allocation13 + $0x198] sm:$0xf]
        %v1455 = vld [vmem:[#allocation13 + $0x19c] sm:$0xf]
        %v1456 = vld [vmem:[#allocation13 + $0x1a0] sm:$0xf]
        %v1457 = vld [vmem:[#allocation13 + $0x1a4] sm:$0xf]
        %v1458 = vld [vmem:[#allocation13 + $0x1a8] sm:$0xf]
        %v1459 = vld [vmem:[#allocation13 + $0x1ac] sm:$0xf]
        %v1460 = vld [vmem:[#allocation13 + $0x1b0] sm:$0xf]
        %v1461 = vld [vmem:[#allocation13 + $0x1b4] sm:$0xf]
        %v1462 = vld [vmem:[#allocation13 + $0x1b8] sm:$0xf]
        %v1463 = vld [vmem:[#allocation13 + $0x1bc] sm:$0xf]
        %v1464 = vld [vmem:[#allocation13 + $0x1c0] sm:$0xf]
        %v1465 = vld [vmem:[#allocation13 + $0x1c4] sm:$0xf]
        %v1466 = vld [vmem:[#allocation13 + $0x1c8] sm:$0xf]
        %v1467 = vld [vmem:[#allocation13 + $0x1cc] sm:$0xf]
        %v1468 = vld [vmem:[#allocation13 + $0x1d0] sm:$0xf]
        %v1469 = vld [vmem:[#allocation13 + $0x1d4] sm:$0xf]
        %v1470 = vld [vmem:[#allocation13 + $0x1d8] sm:$0xf]
        %v1471 = vld [vmem:[#allocation13 + $0x1dc] sm:$0xf]
        %v1472 = vld [vmem:[#allocation13 + $0x1e0] sm:$0xf]
        %v1473 = vld [vmem:[#allocation13 + $0x1e4] sm:$0xf]
        %v1474 = vld [vmem:[#allocation13 + $0x1e8] sm:$0xf]
        %v1475 = vld [vmem:[#allocation13 + $0x1ec] sm:$0xf]
        %v1476 = vld [vmem:[#allocation13 + $0x1f0] sm:$0xf]
        %v1477 = vld [vmem:[#allocation13 + $0x1f4] sm:$0xf]
        %v1478 = vld [vmem:[#allocation13 + $0x1f8] sm:$0xf]
        %v1479 = vld [vmem:[#allocation13 + $0x1fc] sm:$0xf]
        %v1480 = vld [vmem:[#allocation13 + $0x200] sm:$0xf]
        %v1481 = vld [vmem:[#allocation13 + $0x204] sm:$0xf]
        %v1482 = vld [vmem:[#allocation13 + $0x208] sm:$0xf]
        %v1483 = vld [vmem:[#allocation13 + $0x20c] sm:$0xf]
        %v1484 = vld [vmem:[#allocation13 + $0x210] sm:$0xf]
        %v1485 = vld [vmem:[#allocation13 + $0x214] sm:$0xf]
        %v1486 = vld [vmem:[#allocation13 + $0x218] sm:$0xf]
        %v1487 = vld [vmem:[#allocation13 + $0x21c] sm:$0xf]
        %v1488 = vld [vmem:[#allocation13 + $0x220] sm:$0xf]
        %v1489 = vld [vmem:[#allocation13 + $0x224] sm:$0xf]
        %v1490 = vld [vmem:[#allocation13 + $0x228] sm:$0xf]
        %v1491 = vld [vmem:[#allocation13 + $0x22c] sm:$0xf]
        %v1492 = vld [vmem:[#allocation13 + $0x230] sm:$0xf]
        %v1493 = vld [vmem:[#allocation13 + $0x234] sm:$0xf]
        %v1494 = vld [vmem:[#allocation13 + $0x238] sm:$0xf]
        %v1495 = vld [vmem:[#allocation13 + $0x23c] sm:$0xf]
        %v1496 = vld [vmem:[#allocation14] sm:$0x1]
        %v1498 = vlaneseq
        %v1499 = vshrl.u32 %v1498, 7
        %v1500 = vsub.s32 0, %v1499
        %v1501 = vrot.slane %v1496, %v1500
        %v1647 = vunpack.c.l.b16 %v1352
        %v1648 = vunpack.c.l.b16 %v1353
        %v1649 = vunpack.c.l.b16 %v1354
        %v1650 = vunpack.c.l.b16 %v1355
        %v1651 = vunpack.c.l.b16 %v1356
        %v1652 = vunpack.c.l.b16 %v1357
        %v1653 = vunpack.c.l.b16 %v1358
        %v1654 = vunpack.c.l.b16 %v1359
        %v1655 = vunpack.c.l.b16 %v1360
        %v1656 = vunpack.c.l.b16 %v1361
        %v1657 = vunpack.c.l.b16 %v1362
        %v1658 = vunpack.c.l.b16 %v1363
        %v1659 = vunpack.c.l.b16 %v1364
        %v1660 = vunpack.c.l.b16 %v1365
        %v1661 = vunpack.c.l.b16 %v1366
        %v1662 = vunpack.c.l.b16 %v1367
        %v1663 = vunpack.c.l.b16 %v1368
        %v1664 = vunpack.c.l.b16 %v1369
        %v1665 = vunpack.c.l.b16 %v1370
        %v1666 = vunpack.c.l.b16 %v1371
        %v1667 = vunpack.c.l.b16 %v1372
        %v1668 = vunpack.c.l.b16 %v1373
        %v1669 = vunpack.c.l.b16 %v1374
        %v1670 = vunpack.c.l.b16 %v1375
        %v1671 = vunpack.c.l.b16 %v1376
        %v1672 = vunpack.c.l.b16 %v1377
        %v1673 = vunpack.c.l.b16 %v1378
        %v1674 = vunpack.c.l.b16 %v1379
        %v1675 = vunpack.c.l.b16 %v1380
        %v1676 = vunpack.c.l.b16 %v1381
        %v1677 = vunpack.c.l.b16 %v1382
        %v1678 = vunpack.c.l.b16 %v1383
        %v1679 = vunpack.c.l.b16 %v1384
        %v1680 = vunpack.c.l.b16 %v1385
        %v1681 = vunpack.c.l.b16 %v1386
        %v1682 = vunpack.c.l.b16 %v1387
        %v1683 = vunpack.c.l.b16 %v1388
        %v1684 = vunpack.c.l.b16 %v1389
        %v1685 = vunpack.c.l.b16 %v1390
        %v1686 = vunpack.c.l.b16 %v1391
        %v1687 = vunpack.c.l.b16 %v1392
        %v1688 = vunpack.c.l.b16 %v1393
        %v1689 = vunpack.c.l.b16 %v1394
        %v1690 = vunpack.c.l.b16 %v1395
        %v1691 = vunpack.c.l.b16 %v1396
        %v1692 = vunpack.c.l.b16 %v1397
        %v1693 = vunpack.c.l.b16 %v1398
        %v1694 = vunpack.c.l.b16 %v1399
        %v1695 = vunpack.c.l.b16 %v1400
        %v1696 = vunpack.c.l.b16 %v1401
        %v1697 = vunpack.c.l.b16 %v1402
        %v1698 = vunpack.c.l.b16 %v1403
        %v1699 = vunpack.c.l.b16 %v1404
        %v1700 = vunpack.c.l.b16 %v1405
        %v1701 = vunpack.c.l.b16 %v1406
        %v1702 = vunpack.c.l.b16 %v1407
        %v1703 = vunpack.c.l.b16 %v1408
        %v1704 = vunpack.c.l.b16 %v1409
        %v1705 = vunpack.c.l.b16 %v1410
        %v1706 = vunpack.c.l.b16 %v1411
        %v1707 = vunpack.c.l.b16 %v1412
        %v1708 = vunpack.c.l.b16 %v1413
        %v1709 = vunpack.c.l.b16 %v1414
        %v1710 = vunpack.c.l.b16 %v1415
        %v1711 = vunpack.c.l.b16 %v1416
        %v1712 = vunpack.c.l.b16 %v1417
        %v1713 = vunpack.c.l.b16 %v1418
        %v1714 = vunpack.c.l.b16 %v1419
        %v1715 = vunpack.c.l.b16 %v1420
        %v1716 = vunpack.c.l.b16 %v1421
        %v1717 = vunpack.c.l.b16 %v1422
        %v1718 = vunpack.c.l.b16 %v1423
        %v1719 = vunpack.c.l.b16 %v1424
        %v1720 = vunpack.c.l.b16 %v1425
        %v1721 = vunpack.c.l.b16 %v1426
        %v1722 = vunpack.c.l.b16 %v1427
        %v1723 = vunpack.c.l.b16 %v1428
        %v1724 = vunpack.c.l.b16 %v1429
        %v1725 = vunpack.c.l.b16 %v1430
        %v1726 = vunpack.c.l.b16 %v1431
        %v1727 = vunpack.c.l.b16 %v1432
        %v1728 = vunpack.c.l.b16 %v1433
        %v1729 = vunpack.c.l.b16 %v1434
        %v1730 = vunpack.c.l.b16 %v1435
        %v1731 = vunpack.c.l.b16 %v1436
        %v1732 = vunpack.c.l.b16 %v1437
        %v1733 = vunpack.c.l.b16 %v1438
        %v1734 = vunpack.c.l.b16 %v1439
        %v1735 = vunpack.c.l.b16 %v1440
        %v1736 = vunpack.c.l.b16 %v1441
        %v1737 = vunpack.c.l.b16 %v1442
        %v1738 = vunpack.c.l.b16 %v1443
        %v1739 = vunpack.c.l.b16 %v1444
        %v1740 = vunpack.c.l.b16 %v1445
        %v1741 = vunpack.c.l.b16 %v1446
        %v1742 = vunpack.c.l.b16 %v1447
        %v1743 = vunpack.c.l.b16 %v1448
        %v1744 = vunpack.c.l.b16 %v1449
        %v1745 = vunpack.c.l.b16 %v1450
        %v1746 = vunpack.c.l.b16 %v1451
        %v1747 = vunpack.c.l.b16 %v1452
        %v1748 = vunpack.c.l.b16 %v1453
        %v1749 = vunpack.c.l.b16 %v1454
        %v1750 = vunpack.c.l.b16 %v1455
        %v1751 = vunpack.c.l.b16 %v1456
        %v1752 = vunpack.c.l.b16 %v1457
        %v1753 = vunpack.c.l.b16 %v1458
        %v1754 = vunpack.c.l.b16 %v1459
        %v1755 = vunpack.c.l.b16 %v1460
        %v1756 = vunpack.c.l.b16 %v1461
        %v1757 = vunpack.c.l.b16 %v1462
        %v1758 = vunpack.c.l.b16 %v1463
        %v1759 = vunpack.c.l.b16 %v1464
        %v1760 = vunpack.c.l.b16 %v1465
        %v1761 = vunpack.c.l.b16 %v1466
        %v1762 = vunpack.c.l.b16 %v1467
        %v1763 = vunpack.c.l.b16 %v1468
        %v1764 = vunpack.c.l.b16 %v1469
        %v1765 = vunpack.c.l.b16 %v1470
        %v1766 = vunpack.c.l.b16 %v1471
        %v1767 = vunpack.c.l.b16 %v1472
        %v1768 = vunpack.c.l.b16 %v1473
        %v1769 = vunpack.c.l.b16 %v1474
        %v1770 = vunpack.c.l.b16 %v1475
        %v1771 = vunpack.c.l.b16 %v1476
        %v1772 = vunpack.c.l.b16 %v1477
        %v1773 = vunpack.c.l.b16 %v1478
        %v1774 = vunpack.c.l.b16 %v1479
        %v1775 = vunpack.c.l.b16 %v1480
        %v1776 = vunpack.c.l.b16 %v1481
        %v1777 = vunpack.c.l.b16 %v1482
        %v1778 = vunpack.c.l.b16 %v1483
        %v1779 = vunpack.c.l.b16 %v1484
        %v1780 = vunpack.c.l.b16 %v1485
        %v1781 = vunpack.c.l.b16 %v1486
        %v1782 = vunpack.c.l.b16 %v1487
        %v1783 = vunpack.c.l.b16 %v1488
        %v1784 = vunpack.c.l.b16 %v1489
        %v1785 = vunpack.c.l.b16 %v1490
        %v1786 = vunpack.c.l.b16 %v1491
        %v1787 = vunpack.c.l.b16 %v1492
        %v1788 = vunpack.c.l.b16 %v1493
        %v1789 = vunpack.c.l.b16 %v1494
        %v1790 = vunpack.c.l.b16 %v1495
        %v1791 = vpack.c.b16 %v1648, %v1647
        %v1792 = vpack.c.b16 %v1650, %v1649
        %v1793 = vpack.c.b16 %v1652, %v1651
        %v1794 = vpack.c.b16 %v1654, %v1653
        %v1795 = vpack.c.b16 %v1656, %v1655
        %v1796 = vpack.c.b16 %v1658, %v1657
        %v1797 = vpack.c.b16 %v1660, %v1659
        %v1798 = vpack.c.b16 %v1662, %v1661
        %v1799 = vpack.c.b16 %v1664, %v1663
        %v1800 = vpack.c.b16 %v1666, %v1665
        %v1801 = vpack.c.b16 %v1668, %v1667
        %v1802 = vpack.c.b16 %v1670, %v1669
        %v1803 = vpack.c.b16 %v1672, %v1671
        %v1804 = vpack.c.b16 %v1674, %v1673
        %v1805 = vpack.c.b16 %v1676, %v1675
        %v1806 = vpack.c.b16 %v1678, %v1677
        %v1807 = vpack.c.b16 %v1680, %v1679
        %v1808 = vpack.c.b16 %v1682, %v1681
        %v1809 = vpack.c.b16 %v1684, %v1683
        %v1810 = vpack.c.b16 %v1686, %v1685
        %v1811 = vpack.c.b16 %v1688, %v1687
        %v1812 = vpack.c.b16 %v1690, %v1689
        %v1813 = vpack.c.b16 %v1692, %v1691
        %v1814 = vpack.c.b16 %v1694, %v1693
        %v1815 = vpack.c.b16 %v1696, %v1695
        %v1816 = vpack.c.b16 %v1698, %v1697
        %v1817 = vpack.c.b16 %v1700, %v1699
        %v1818 = vpack.c.b16 %v1702, %v1701
        %v1819 = vpack.c.b16 %v1704, %v1703
        %v1820 = vpack.c.b16 %v1706, %v1705
        %v1821 = vpack.c.b16 %v1708, %v1707
        %v1822 = vpack.c.b16 %v1710, %v1709
        %v1823 = vpack.c.b16 %v1712, %v1711
        %v1824 = vpack.c.b16 %v1714, %v1713
        %v1825 = vpack.c.b16 %v1716, %v1715
        %v1826 = vpack.c.b16 %v1718, %v1717
        %v1827 = vpack.c.b16 %v1720, %v1719
        %v1828 = vpack.c.b16 %v1722, %v1721
        %v1829 = vpack.c.b16 %v1724, %v1723
        %v1830 = vpack.c.b16 %v1726, %v1725
        %v1831 = vpack.c.b16 %v1728, %v1727
        %v1832 = vpack.c.b16 %v1730, %v1729
        %v1833 = vpack.c.b16 %v1732, %v1731
        %v1834 = vpack.c.b16 %v1734, %v1733
        %v1835 = vpack.c.b16 %v1736, %v1735
        %v1836 = vpack.c.b16 %v1738, %v1737
        %v1837 = vpack.c.b16 %v1740, %v1739
        %v1838 = vpack.c.b16 %v1742, %v1741
        %v1839 = vpack.c.b16 %v1744, %v1743
        %v1840 = vpack.c.b16 %v1746, %v1745
        %v1841 = vpack.c.b16 %v1748, %v1747
        %v1842 = vpack.c.b16 %v1750, %v1749
        %v1843 = vpack.c.b16 %v1752, %v1751
        %v1844 = vpack.c.b16 %v1754, %v1753
        %v1845 = vpack.c.b16 %v1756, %v1755
        %v1846 = vpack.c.b16 %v1758, %v1757
        %v1847 = vpack.c.b16 %v1760, %v1759
        %v1848 = vpack.c.b16 %v1762, %v1761
        %v1849 = vpack.c.b16 %v1764, %v1763
        %v1850 = vpack.c.b16 %v1766, %v1765
        %v1851 = vpack.c.b16 %v1768, %v1767
        %v1852 = vpack.c.b16 %v1770, %v1769
        %v1853 = vpack.c.b16 %v1772, %v1771
        %v1854 = vpack.c.b16 %v1774, %v1773
        %v1855 = vpack.c.b16 %v1776, %v1775
        %v1856 = vpack.c.b16 %v1778, %v1777
        %v1857 = vpack.c.b16 %v1780, %v1779
        %v1858 = vpack.c.b16 %v1782, %v1781
        %v1859 = vpack.c.b16 %v1784, %v1783
        %v1860 = vpack.c.b16 %v1786, %v1785
        %v1861 = vpack.c.b16 %v1788, %v1787
        %v1862 = vpack.c.b16 %v1790, %v1789
        %1935 = vmatprep.subr.bf16.mxu0 0
        %1936 = vmatpush1.bf16.msra.mxu0 %v1791
        %1937 = vmatprep.subr.bf16.mxu0 0
        %1938 = vmatpush1.bf16.msra.mxu0 %v1792
        %1939 = vmatprep.subr.bf16.mxu0 0
        %1940 = vmatpush1.bf16.msra.mxu0 %v1793
        %1941 = vmatprep.subr.bf16.mxu0 0
        %1942 = vmatpush1.bf16.msra.mxu0 %v1794
        %1943 = vmatprep.subr.bf16.mxu0 0
        %1944 = vmatpush1.bf16.msra.mxu0 %v1795
        %1945 = vmatprep.subr.bf16.mxu0 0
        %1946 = vmatpush1.bf16.msra.mxu0 %v1796
        %1947 = vmatprep.subr.bf16.mxu0 0
        %1948 = vmatpush1.bf16.msra.mxu0 %v1797
        %1949 = vmatprep.subr.bf16.mxu0 0
        %1950 = vmatpush1.bf16.msra.mxu0 %v1798
        %1951 = vmatprep.subr.bf16.mxu0 0
        %1952 = vmatpush1.bf16.msra.mxu0 %v1799
        %1953 = vmatprep.subr.bf16.mxu0 0
        %1954 = vmatpush1.bf16.msra.mxu0 %v1800
        %1955 = vmatprep.subr.bf16.mxu0 0
        %1956 = vmatpush1.bf16.msra.mxu0 %v1801
        %1957 = vmatprep.subr.bf16.mxu0 0
        %1958 = vmatpush1.bf16.msra.mxu0 %v1802
        %1959 = vmatprep.subr.bf16.mxu0 0
        %1960 = vmatpush1.bf16.msra.mxu0 %v1803
        %1961 = vmatprep.subr.bf16.mxu0 0
        %1962 = vmatpush1.bf16.msra.mxu0 %v1804
        %1963 = vmatprep.subr.bf16.mxu0 0
        %1964 = vmatpush1.bf16.msra.mxu0 %v1805
        %1965 = vmatprep.subr.bf16.mxu0 0
        %1966 = vmatpush1.bf16.msra.mxu0 %v1806
        %1967 = vmatprep.mubr.bf16.mxu0 %v1281
        %1968 = vmatmul.mubr.bf16.gmra.mrb[0].mxu0 %v1280
        %v1969 = vpop.f32.mrb[0].mxu0
        %v1970 = vadd.f32 %v1501, %v1969
        %v1971 = vpop.f32.mrb[0].mxu0
        %v1972 = vpop.f32.mrb[0].mxu0
        %v1973 = vadd.f32 %v1501, %v1972
        %v1974 = vpop.f32.mrb[0].mxu0
        %1975 = vmatprep.mubr.bf16.mxu0 %v1290
        %1976 = vmatmul.mubr.bf16.gmra.mrb[0].mxu0 %v1289
        %v1977 = vpop.f32.mrb[0].mxu0
        %v1978 = vadd.f32 %v1501, %v1977
        %v1979 = vpop.f32.mrb[0].mxu0
        %v1980 = vpop.f32.mrb[0].mxu0
        %v1981 = vadd.f32 %v1501, %v1980
        %v1982 = vpop.f32.mrb[0].mxu0
        %1983 = vmatprep.mubr.bf16.mxu0 %v1299
        %1984 = vmatmul.mubr.bf16.gmra.mrb[0].mxu0 %v1298
        %v1985 = vpop.f32.mrb[0].mxu0
        %v1986 = vadd.f32 %v1501, %v1985
        %v1987 = vpop.f32.mrb[0].mxu0
        %v1988 = vpop.f32.mrb[0].mxu0
        %v1989 = vadd.f32 %v1501, %v1988
        %v1990 = vpop.f32.mrb[0].mxu0
        %1991 = vmatprep.mubr.bf16.mxu0 %v1308
        %1992 = vmatmul.mubr.bf16.gmra.mrb[0].mxu0 %v1307
        %v1993 = vpop.f32.mrb[0].mxu0
        %v1994 = vadd.f32 %v1501, %v1993
        %v1995 = vpop.f32.mrb[0].mxu0
        %v1996 = vpop.f32.mrb[0].mxu0
        %v1997 = vadd.f32 %v1501, %v1996
        %v1998 = vpop.f32.mrb[0].mxu0
        %1999 = vmatprep.mubr.bf16.mxu0 %v1317
        %2000 = vmatmul.mubr.bf16.gmra.mrb[0].mxu0 %v1316
        %v2001 = vpop.f32.mrb[0].mxu0
        %v2002 = vadd.f32 %v1501, %v2001
        %v2003 = vpop.f32.mrb[0].mxu0
        %v2004 = vpop.f32.mrb[0].mxu0
        %v2005 = vadd.f32 %v1501, %v2004
        %v2006 = vpop.f32.mrb[0].mxu0
        %2007 = vmatprep.mubr.bf16.mxu0 %v1326
        %2008 = vmatmul.mubr.bf16.gmra.mrb[0].mxu0 %v1325
        %v2009 = vpop.f32.mrb[0].mxu0
        %v2010 = vadd.f32 %v1501, %v2009
        %v2011 = vpop.f32.mrb[0].mxu0
        %v2012 = vpop.f32.mrb[0].mxu0
        %v2013 = vadd.f32 %v1501, %v2012
        %v2014 = vpop.f32.mrb[0].mxu0
        %2015 = vmatprep.mubr.bf16.mxu0 %v1335
        %2016 = vmatmul.mubr.bf16.gmra.mrb[0].mxu0 %v1334
        %v2017 = vpop.f32.mrb[0].mxu0
        %v2018 = vadd.f32 %v1501, %v2017
        %v2019 = vpop.f32.mrb[0].mxu0
        %v2020 = vpop.f32.mrb[0].mxu0
        %v2021 = vadd.f32 %v1501, %v2020
        %v2022 = vpop.f32.mrb[0].mxu0
        %2023 = vmatprep.mubr.bf16.mxu0 %v1344
        %2024 = vmatmul.mubr.bf16.gmra.mrb[0].mxu0 %v1343
        %v2025 = vpop.f32.mrb[0].mxu0
        %v2026 = vadd.f32 %v1501, %v2025
        %v2027 = vpop.f32.mrb[0].mxu0
        %v2028 = vpop.f32.mrb[0].mxu0
        %v2029 = vadd.f32 %v1501, %v2028
        %v2030 = vpop.f32.mrb[0].mxu0
        %2031 = vdwg.mxu0
        %2032 = vmatprep.subr.bf16.mxu0 0
        %2033 = vmatpush1.bf16.msra.mxu0 %v1807
        %2034 = vmatprep.subr.bf16.mxu0 0
        %2035 = vmatpush1.bf16.msra.mxu0 %v1808
        %2036 = vmatprep.subr.bf16.mxu0 0
        %2037 = vmatpush1.bf16.msra.mxu0 %v1809
        %2038 = vmatprep.subr.bf16.mxu0 0
        %2039 = vmatpush1.bf16.msra.mxu0 %v1810
        %2040 = vmatprep.subr.bf16.mxu0 0
        %2041 = vmatpush1.bf16.msra.mxu0 %v1811
        %2042 = vmatprep.subr.bf16.mxu0 0
        %2043 = vmatpush1.bf16.msra.mxu0 %v1812
        %2044 = vmatprep.subr.bf16.mxu0 0
        %2045 = vmatpush1.bf16.msra.mxu0 %v1813
        %2046 = vmatprep.subr.bf16.mxu0 0
        %2047 = vmatpush1.bf16.msra.mxu0 %v1814
        %2048 = vmatprep.subr.bf16.mxu0 0
        %2049 = vmatpush1.bf16.msra.mxu0 %v1815
        %2050 = vmatprep.subr.bf16.mxu0 0
        %2051 = vmatpush1.bf16.msra.mxu0 %v1816
        %2052 = vmatprep.subr.bf16.mxu0 0
        %2053 = vmatpush1.bf16.msra.mxu0 %v1817
        %2054 = vmatprep.subr.bf16.mxu0 0
        %2055 = vmatpush1.bf16.msra.mxu0 %v1818
        %2056 = vmatprep.subr.bf16.mxu0 0
        %2057 = vmatpush1.bf16.msra.mxu0 %v1819
        %2058 = vmatprep.subr.bf16.mxu0 0
        %2059 = vmatpush1.bf16.msra.mxu0 %v1820
        %2060 = vmatprep.subr.bf16.mxu0 0
        %2061 = vmatpush1.bf16.msra.mxu0 %v1821
        %2062 = vmatprep.subr.bf16.mxu0 0
        %2063 = vmatpush1.bf16.msra.mxu0 %v1822
        %2064 = vmatprep.mubr.bf16.mxu0 %v1283
        %2065 = vmatmul.mubr.bf16.gmra.mrb[0].mxu0 %v1282
        %v2066 = vpop.f32.mrb[0].mxu0
        %v2067 = vadd.f32 %v1970, %v2066
        %v2068 = vpop.f32.mrb[0].mxu0
        %v2069 = vpop.f32.mrb[0].mxu0
        %v2070 = vadd.f32 %v1973, %v2069
        %v2071 = vpop.f32.mrb[0].mxu0
        %2072 = vmatprep.mubr.bf16.mxu0 %v1292
        %2073 = vmatmul.mubr.bf16.gmra.mrb[0].mxu0 %v1291
        %v2074 = vpop.f32.mrb[0].mxu0
        %v2075 = vadd.f32 %v1978, %v2074
        %v2076 = vpop.f32.mrb[0].mxu0
        %v2077 = vpop.f32.mrb[0].mxu0
        %v2078 = vadd.f32 %v1981, %v2077
        %v2079 = vpop.f32.mrb[0].mxu0
        %2080 = vmatprep.mubr.bf16.mxu0 %v1301
        %2081 = vmatmul.mubr.bf16.gmra.mrb[0].mxu0 %v1300
        %v2082 = vpop.f32.mrb[0].mxu0
        %v2083 = vadd.f32 %v1986, %v2082
        %v2084 = vpop.f32.mrb[0].mxu0
        %v2085 = vpop.f32.mrb[0].mxu0
        %v2086 = vadd.f32 %v1989, %v2085
        %v2087 = vpop.f32.mrb[0].mxu0
        %2088 = vmatprep.mubr.bf16.mxu0 %v1310
        %2089 = vmatmul.mubr.bf16.gmra.mrb[0].mxu0 %v1309
        %v2090 = vpop.f32.mrb[0].mxu0
        %v2091 = vadd.f32 %v1994, %v2090
        %v2092 = vpop.f32.mrb[0].mxu0
        %v2093 = vpop.f32.mrb[0].mxu0
        %v2094 = vadd.f32 %v1997, %v2093
        %v2095 = vpop.f32.mrb[0].mxu0
        %2096 = vmatprep.mubr.bf16.mxu0 %v1319
        %2097 = vmatmul.mubr.bf16.gmra.mrb[0].mxu0 %v1318
        %v2098 = vpop.f32.mrb[0].mxu0
        %v2099 = vadd.f32 %v2002, %v2098
        %v2100 = vpop.f32.mrb[0].mxu0
        %v2101 = vpop.f32.mrb[0].mxu0
        %v2102 = vadd.f32 %v2005, %v2101
        %v2103 = vpop.f32.mrb[0].mxu0
        %2104 = vmatprep.mubr.bf16.mxu0 %v1328
        %2105 = vmatmul.mubr.bf16.gmra.mrb[0].mxu0 %v1327
        %v2106 = vpop.f32.mrb[0].mxu0
        %v2107 = vadd.f32 %v2010, %v2106
        %v2108 = vpop.f32.mrb[0].mxu0
        %v2109 = vpop.f32.mrb[0].mxu0
        %v2110 = vadd.f32 %v2013, %v2109
        %v2111 = vpop.f32.mrb[0].mxu0
        %2112 = vmatprep.mubr.bf16.mxu0 %v1337
        %2113 = vmatmul.mubr.bf16.gmra.mrb[0].mxu0 %v1336
        %v2114 = vpop.f32.mrb[0].mxu0
        %v2115 = vadd.f32 %v2018, %v2114
        %v2116 = vpop.f32.mrb[0].mxu0
        %v2117 = vpop.f32.mrb[0].mxu0
        %v2118 = vadd.f32 %v2021, %v2117
        %v2119 = vpop.f32.mrb[0].mxu0
        %2120 = vmatprep.mubr.bf16.mxu0 %v1346
        %2121 = vmatmul.mubr.bf16.gmra.mrb[0].mxu0 %v1345
        %v2122 = vpop.f32.mrb[0].mxu0
        %v2123 = vadd.f32 %v2026, %v2122
        %v2124 = vpop.f32.mrb[0].mxu0
        %v2125 = vpop.f32.mrb[0].mxu0
        %v2126 = vadd.f32 %v2029, %v2125
        %v2127 = vpop.f32.mrb[0].mxu0
        %2128 = vdwg.mxu0
        %2129 = vmatprep.subr.bf16.mxu0 0
        %2130 = vmatpush1.bf16.msra.mxu0 %v1823
        %2131 = vmatprep.subr.bf16.mxu0 0
        %2132 = vmatpush1.bf16.msra.mxu0 %v1824
        %2133 = vmatprep.subr.bf16.mxu0 0
        %2134 = vmatpush1.bf16.msra.mxu0 %v1825
        %2135 = vmatprep.subr.bf16.mxu0 0
        %2136 = vmatpush1.bf16.msra.mxu0 %v1826
        %2137 = vmatprep.subr.bf16.mxu0 0
        %2138 = vmatpush1.bf16.msra.mxu0 %v1827
        %2139 = vmatprep.subr.bf16.mxu0 0
        %2140 = vmatpush1.bf16.msra.mxu0 %v1828
        %2141 = vmatprep.subr.bf16.mxu0 0
        %2142 = vmatpush1.bf16.msra.mxu0 %v1829
        %2143 = vmatprep.subr.bf16.mxu0 0
        %2144 = vmatpush1.bf16.msra.mxu0 %v1830
        %2145 = vmatprep.subr.bf16.mxu0 0
        %2146 = vmatpush1.bf16.msra.mxu0 %v1831
        %2147 = vmatprep.subr.bf16.mxu0 0
        %2148 = vmatpush1.bf16.msra.mxu0 %v1832
        %2149 = vmatprep.subr.bf16.mxu0 0
        %2150 = vmatpush1.bf16.msra.mxu0 %v1833
        %2151 = vmatprep.subr.bf16.mxu0 0
        %2152 = vmatpush1.bf16.msra.mxu0 %v1834
        %2153 = vmatprep.subr.bf16.mxu0 0
        %2154 = vmatpush1.bf16.msra.mxu0 %v1835
        %2155 = vmatprep.subr.bf16.mxu0 0
        %2156 = vmatpush1.bf16.msra.mxu0 %v1836
        %2157 = vmatprep.subr.bf16.mxu0 0
        %2158 = vmatpush1.bf16.msra.mxu0 %v1837
        %2159 = vmatprep.subr.bf16.mxu0 0
        %2160 = vmatpush1.bf16.msra.mxu0 %v1838
        %2161 = vmatprep.mubr.bf16.mxu0 %v1285
        %2162 = vmatmul.mubr.bf16.gmra.mrb[0].mxu0 %v1284
        %v2163 = vpop.f32.mrb[0].mxu0
        %v2164 = vadd.f32 %v2067, %v2163
        %v2165 = vpop.f32.mrb[0].mxu0
        %v2166 = vpop.f32.mrb[0].mxu0
        %v2167 = vadd.f32 %v2070, %v2166
        %v2168 = vpop.f32.mrb[0].mxu0
        %2169 = vmatprep.mubr.bf16.mxu0 %v1294
        %2170 = vmatmul.mubr.bf16.gmra.mrb[0].mxu0 %v1293
        %v2171 = vpop.f32.mrb[0].mxu0
        %v2172 = vadd.f32 %v2075, %v2171
        %v2173 = vpop.f32.mrb[0].mxu0
        %v2174 = vpop.f32.mrb[0].mxu0
        %v2175 = vadd.f32 %v2078, %v2174
        %v2176 = vpop.f32.mrb[0].mxu0
        %2177 = vmatprep.mubr.bf16.mxu0 %v1303
        %2178 = vmatmul.mubr.bf16.gmra.mrb[0].mxu0 %v1302
        %v2179 = vpop.f32.mrb[0].mxu0
        %v2180 = vadd.f32 %v2083, %v2179
        %v2181 = vpop.f32.mrb[0].mxu0
        %v2182 = vpop.f32.mrb[0].mxu0
        %v2183 = vadd.f32 %v2086, %v2182
        %v2184 = vpop.f32.mrb[0].mxu0
        %2185 = vmatprep.mubr.bf16.mxu0 %v1312
        %2186 = vmatmul.mubr.bf16.gmra.mrb[0].mxu0 %v1311
        %v2187 = vpop.f32.mrb[0].mxu0
        %v2188 = vadd.f32 %v2091, %v2187
        %v2189 = vpop.f32.mrb[0].mxu0
        %v2190 = vpop.f32.mrb[0].mxu0
        %v2191 = vadd.f32 %v2094, %v2190
        %v2192 = vpop.f32.mrb[0].mxu0
        %2193 = vmatprep.mubr.bf16.mxu0 %v1321
        %2194 = vmatmul.mubr.bf16.gmra.mrb[0].mxu0 %v1320
        %v2195 = vpop.f32.mrb[0].mxu0
        %v2196 = vadd.f32 %v2099, %v2195
        %v2197 = vpop.f32.mrb[0].mxu0
        %v2198 = vpop.f32.mrb[0].mxu0
        %v2199 = vadd.f32 %v2102, %v2198
        %v2200 = vpop.f32.mrb[0].mxu0
        %2201 = vmatprep.mubr.bf16.mxu0 %v1330
        %2202 = vmatmul.mubr.bf16.gmra.mrb[0].mxu0 %v1329
        %v2203 = vpop.f32.mrb[0].mxu0
        %v2204 = vadd.f32 %v2107, %v2203
        %v2205 = vpop.f32.mrb[0].mxu0
        %v2206 = vpop.f32.mrb[0].mxu0
        %v2207 = vadd.f32 %v2110, %v2206
        %v2208 = vpop.f32.mrb[0].mxu0
        %2209 = vmatprep.mubr.bf16.mxu0 %v1339
        %2210 = vmatmul.mubr.bf16.gmra.mrb[0].mxu0 %v1338
        %v2211 = vpop.f32.mrb[0].mxu0
        %v2212 = vadd.f32 %v2115, %v2211
        %v2213 = vpop.f32.mrb[0].mxu0
        %v2214 = vpop.f32.mrb[0].mxu0
        %v2215 = vadd.f32 %v2118, %v2214
        %v2216 = vpop.f32.mrb[0].mxu0
        %2217 = vmatprep.mubr.bf16.mxu0 %v1348
        %2218 = vmatmul.mubr.bf16.gmra.mrb[0].mxu0 %v1347
        %v2219 = vpop.f32.mrb[0].mxu0
        %v2220 = vadd.f32 %v2123, %v2219
        %v2221 = vpop.f32.mrb[0].mxu0
        %v2222 = vpop.f32.mrb[0].mxu0
        %v2223 = vadd.f32 %v2126, %v2222
        %v2224 = vpop.f32.mrb[0].mxu0
        %2225 = vdwg.mxu0
        %2226 = vmatprep.subr.bf16.mxu0 0
        %2227 = vmatpush1.bf16.msra.mxu0 %v1839
        %2228 = vmatprep.subr.bf16.mxu0 0
        %2229 = vmatpush1.bf16.msra.mxu0 %v1840
        %2230 = vmatprep.subr.bf16.mxu0 0
        %2231 = vmatpush1.bf16.msra.mxu0 %v1841
        %2232 = vmatprep.subr.bf16.mxu0 0
        %2233 = vmatpush1.bf16.msra.mxu0 %v1842
        %2234 = vmatprep.subr.bf16.mxu0 0
        %2235 = vmatpush1.bf16.msra.mxu0 %v1843
        %2236 = vmatprep.subr.bf16.mxu0 0
        %2237 = vmatpush1.bf16.msra.mxu0 %v1844
        %2238 = vmatprep.subr.bf16.mxu0 0
        %2239 = vmatpush1.bf16.msra.mxu0 %v1845
        %2240 = vmatprep.subr.bf16.mxu0 0
        %2241 = vmatpush1.bf16.msra.mxu0 %v1846
        %2242 = vmatprep.subr.bf16.mxu0 0
        %2243 = vmatpush1.bf16.msra.mxu0 %v1847
        %2244 = vmatprep.subr.bf16.mxu0 0
        %2245 = vmatpush1.bf16.msra.mxu0 %v1848
        %2246 = vmatprep.subr.bf16.mxu0 0
        %2247 = vmatpush1.bf16.msra.mxu0 %v1849
        %2248 = vmatprep.subr.bf16.mxu0 0
        %2249 = vmatpush1.bf16.msra.mxu0 %v1850
        %2250 = vmatprep.subr.bf16.mxu0 0
        %2251 = vmatpush1.bf16.msra.mxu0 %v1851
        %2252 = vmatprep.subr.bf16.mxu0 0
        %2253 = vmatpush1.bf16.msra.mxu0 %v1852
        %2254 = vmatprep.subr.bf16.mxu0 0
        %2255 = vmatpush1.bf16.msra.mxu0 %v1853
        %2256 = vmatprep.subr.bf16.mxu0 0
        %2257 = vmatpush1.bf16.msra.mxu0 %v1854
        %2258 = vmatprep.mubr.bf16.mxu0 %v1287
        %2259 = vmatmul.mubr.bf16.gmra.mrb[0].mxu0 %v1286
        %v2260 = vpop.f32.mrb[0].mxu0
        %v2261 = vadd.f32 %v2164, %v2260
        %v2262 = vpop.f32.mrb[0].mxu0
        %v2263 = vpop.f32.mrb[0].mxu0
        %v2264 = vadd.f32 %v2167, %v2263
        %v2265 = vpop.f32.mrb[0].mxu0
        %2266 = vmatprep.mubr.bf16.mxu0 %v1296
        %2267 = vmatmul.mubr.bf16.gmra.mrb[0].mxu0 %v1295
        %v2268 = vpop.f32.mrb[0].mxu0
        %v2269 = vadd.f32 %v2172, %v2268
        %v2270 = vpop.f32.mrb[0].mxu0
        %v2271 = vpop.f32.mrb[0].mxu0
        %v2272 = vadd.f32 %v2175, %v2271
        %v2273 = vpop.f32.mrb[0].mxu0
        %2274 = vmatprep.mubr.bf16.mxu0 %v1305
        %2275 = vmatmul.mubr.bf16.gmra.mrb[0].mxu0 %v1304
        %v2276 = vpop.f32.mrb[0].mxu0
        %v2277 = vadd.f32 %v2180, %v2276
        %v2278 = vpop.f32.mrb[0].mxu0
        %v2279 = vpop.f32.mrb[0].mxu0
        %v2280 = vadd.f32 %v2183, %v2279
        %v2281 = vpop.f32.mrb[0].mxu0
        %2282 = vmatprep.mubr.bf16.mxu0 %v1314
        %2283 = vmatmul.mubr.bf16.gmra.mrb[0].mxu0 %v1313
        %v2284 = vpop.f32.mrb[0].mxu0
        %v2285 = vadd.f32 %v2188, %v2284
        %v2286 = vpop.f32.mrb[0].mxu0
        %v2287 = vpop.f32.mrb[0].mxu0
        %v2288 = vadd.f32 %v2191, %v2287
        %v2289 = vpop.f32.mrb[0].mxu0
        %2290 = vmatprep.mubr.bf16.mxu0 %v1323
        %2291 = vmatmul.mubr.bf16.gmra.mrb[0].mxu0 %v1322
        %v2292 = vpop.f32.mrb[0].mxu0
        %v2293 = vadd.f32 %v2196, %v2292
        %v2294 = vpop.f32.mrb[0].mxu0
        %v2295 = vpop.f32.mrb[0].mxu0
        %v2296 = vadd.f32 %v2199, %v2295
        %v2297 = vpop.f32.mrb[0].mxu0
        %2298 = vmatprep.mubr.bf16.mxu0 %v1332
        %2299 = vmatmul.mubr.bf16.gmra.mrb[0].mxu0 %v1331
        %v2300 = vpop.f32.mrb[0].mxu0
        %v2301 = vadd.f32 %v2204, %v2300
        %v2302 = vpop.f32.mrb[0].mxu0
        %v2303 = vpop.f32.mrb[0].mxu0
        %v2304 = vadd.f32 %v2207, %v2303
        %v2305 = vpop.f32.mrb[0].mxu0
        %2306 = vmatprep.mubr.bf16.mxu0 %v1341
        %2307 = vmatmul.mubr.bf16.gmra.mrb[0].mxu0 %v1340
        %v2308 = vpop.f32.mrb[0].mxu0
        %v2309 = vadd.f32 %v2212, %v2308
        %v2310 = vpop.f32.mrb[0].mxu0
        %v2311 = vpop.f32.mrb[0].mxu0
        %v2312 = vadd.f32 %v2215, %v2311
        %v2313 = vpop.f32.mrb[0].mxu0
        %2314 = vmatprep.mubr.bf16.mxu0 %v1350
        %2315 = vmatmul.mubr.bf16.gmra.mrb[0].mxu0 %v1349
        %v2316 = vpop.f32.mrb[0].mxu0
        %v2317 = vadd.f32 %v2220, %v2316
        %v2318 = vpop.f32.mrb[0].mxu0
        %v2319 = vpop.f32.mrb[0].mxu0
        %v2320 = vadd.f32 %v2223, %v2319
        %v2321 = vpop.f32.mrb[0].mxu0
        %2322 = vdwg.mxu0
        %2323 = vmatprep.subr.bf16.mxu0 0
        %2324 = vmatpush1.bf16.msra.mxu0 %v1855
        %2325 = vmatprep.subr.bf16.mxu0 0
        %2326 = vmatpush1.bf16.msra.mxu0 %v1856
        %2327 = vmatprep.subr.bf16.mxu0 0
        %2328 = vmatpush1.bf16.msra.mxu0 %v1857
        %2329 = vmatprep.subr.bf16.mxu0 0
        %2330 = vmatpush1.bf16.msra.mxu0 %v1858
        %2331 = vmatprep.subr.bf16.mxu0 0
        %2332 = vmatpush1.bf16.msra.mxu0 %v1859
        %2333 = vmatprep.subr.bf16.mxu0 0
        %2334 = vmatpush1.bf16.msra.mxu0 %v1860
        %2335 = vmatprep.subr.bf16.mxu0 0
        %2336 = vmatpush1.bf16.msra.mxu0 %v1861
        %2337 = vmatprep.subr.bf16.mxu0 0
        %2338 = vmatpush1.bf16.msra.mxu0 %v1862
        %2339 = vmatprep.subr.bf16.mxu0 0
        %2340 = vmatpush1.bf16.msra.mxu0 0
        %2341 = vmatprep.subr.bf16.mxu0 0
        %2342 = vmatpush1.bf16.msra.mxu0 0
        %2343 = vmatprep.subr.bf16.mxu0 0
        %2344 = vmatpush1.bf16.msra.mxu0 0
        %2345 = vmatprep.subr.bf16.mxu0 0
        %2346 = vmatpush1.bf16.msra.mxu0 0
        %2347 = vmatprep.subr.bf16.mxu0 0
        %2348 = vmatpush1.bf16.msra.mxu0 0
        %2349 = vmatprep.subr.bf16.mxu0 0
        %2350 = vmatpush1.bf16.msra.mxu0 0
        %2351 = vmatprep.subr.bf16.mxu0 0
        %2352 = vmatpush1.bf16.msra.mxu0 0
        %2353 = vmatprep.subr.bf16.mxu0 0
        %2354 = vmatpush1.bf16.msra.mxu0 0
        %2355 = vmatprep.mubr.bf16.mxu0 0
        %2356 = vmatmul.mubr.bf16.gmra.mrb[0].mxu0 %v1288
        %v2357 = vpop.f32.mrb[0].mxu0
        %v2358 = vadd.f32 %v2261, %v2357
        %v2359 = vpop.f32.mrb[0].mxu0
        %v2360 = vpop.f32.mrb[0].mxu0
        %v2361 = vadd.f32 %v2264, %v2360
        %v2362 = vpop.f32.mrb[0].mxu0
        %2363 = vmatprep.mubr.bf16.mxu0 0
        %2364 = vmatmul.mubr.bf16.gmra.mrb[0].mxu0 %v1297
        %v2365 = vpop.f32.mrb[0].mxu0
        %v2366 = vadd.f32 %v2269, %v2365
        %v2367 = vpop.f32.mrb[0].mxu0
        %v2368 = vpop.f32.mrb[0].mxu0
        %v2369 = vadd.f32 %v2272, %v2368
        %v2370 = vpop.f32.mrb[0].mxu0
        %2371 = vmatprep.mubr.bf16.mxu0 0
        %2372 = vmatmul.mubr.bf16.gmra.mrb[0].mxu0 %v1306
        %v2373 = vpop.f32.mrb[0].mxu0
        %v2374 = vadd.f32 %v2277, %v2373
        %v2375 = vpop.f32.mrb[0].mxu0
        %v2376 = vpop.f32.mrb[0].mxu0
        %v2377 = vadd.f32 %v2280, %v2376
        %v2378 = vpop.f32.mrb[0].mxu0
        %2379 = vmatprep.mubr.bf16.mxu0 0
        %2380 = vmatmul.mubr.bf16.gmra.mrb[0].mxu0 %v1315
        %v2381 = vpop.f32.mrb[0].mxu0
        %v2382 = vadd.f32 %v2285, %v2381
        %v2383 = vpop.f32.mrb[0].mxu0
        %v2384 = vpop.f32.mrb[0].mxu0
        %v2385 = vadd.f32 %v2288, %v2384
        %v2386 = vpop.f32.mrb[0].mxu0
        %2387 = vmatprep.mubr.bf16.mxu0 0
        %2388 = vmatmul.mubr.bf16.gmra.mrb[0].mxu0 %v1324
        %v2389 = vpop.f32.mrb[0].mxu0
        %v2390 = vadd.f32 %v2293, %v2389
        %v2391 = vpop.f32.mrb[0].mxu0
        %v2392 = vpop.f32.mrb[0].mxu0
        %v2393 = vadd.f32 %v2296, %v2392
        %v2394 = vpop.f32.mrb[0].mxu0
        %2395 = vmatprep.mubr.bf16.mxu0 0
        %2396 = vmatmul.mubr.bf16.gmra.mrb[0].mxu0 %v1333
        %v2397 = vpop.f32.mrb[0].mxu0
        %v2398 = vadd.f32 %v2301, %v2397
        %v2399 = vpop.f32.mrb[0].mxu0
        %v2400 = vpop.f32.mrb[0].mxu0
        %v2401 = vadd.f32 %v2304, %v2400
        %v2402 = vpop.f32.mrb[0].mxu0
        %2403 = vmatprep.mubr.bf16.mxu0 0
        %2404 = vmatmul.mubr.bf16.gmra.mrb[0].mxu0 %v1342
        %v2405 = vpop.f32.mrb[0].mxu0
        %v2406 = vadd.f32 %v2309, %v2405
        %v2407 = vpop.f32.mrb[0].mxu0
        %v2408 = vpop.f32.mrb[0].mxu0
        %v2409 = vadd.f32 %v2312, %v2408
        %v2410 = vpop.f32.mrb[0].mxu0
        %2411 = vmatprep.mubr.bf16.mxu0 0
        %2412 = vmatmul.mubr.bf16.gmra.mrb[0].mxu0 %v1351
        %v2413 = vpop.f32.mrb[0].mxu0
        %v2414 = vadd.f32 %v2317, %v2413
        %v2415 = vpop.f32.mrb[0].mxu0
        %v2416 = vpop.f32.mrb[0].mxu0
        %v2417 = vadd.f32 %v2320, %v2416
        %v2418 = vpop.f32.mrb[0].mxu0
        %2419 = vdwg.mxu0
        %v2420 = vmax.f32 %v2358, 0.0
        %v2421 = vmax.f32 %v2361, 0.0
        %v2422 = vmax.f32 %v2366, 0.0
        %v2423 = vmax.f32 %v2369, 0.0
        %v2424 = vmax.f32 %v2374, 0.0
        %v2425 = vmax.f32 %v2377, 0.0
        %v2426 = vmax.f32 %v2382, 0.0
        %v2427 = vmax.f32 %v2385, 0.0
        %v2428 = vmax.f32 %v2390, 0.0
        %v2429 = vmax.f32 %v2393, 0.0
        %v2430 = vmax.f32 %v2398, 0.0
        %v2431 = vmax.f32 %v2401, 0.0
        %v2432 = vmax.f32 %v2406, 0.0
        %v2433 = vmax.f32 %v2409, 0.0
        %v2434 = vmax.f32 %v2414, 0.0
        %v2435 = vmax.f32 %v2417, 0.0
        %v2436 = vpack.c.bf16 %v2421, %v2420
        %v2437 = vpack.c.bf16 %v2423, %v2422
        %v2438 = vpack.c.bf16 %v2425, %v2424
        %v2439 = vpack.c.bf16 %v2427, %v2426
        %v2440 = vpack.c.bf16 %v2429, %v2428
        %v2441 = vpack.c.bf16 %v2431, %v2430
        %v2442 = vpack.c.bf16 %v2433, %v2432
        %v2443 = vpack.c.bf16 %v2435, %v2434
        %v2444 = vld [vmem:[#allocation16] sm:$0xf]
        %v2445 = vld [vmem:[#allocation16 + $0x4] sm:$0xf]
        %v2446 = vld [vmem:[#allocation16 + $0x8] sm:$0xf]
        %v2447 = vld [vmem:[#allocation16 + $0xc] sm:$0xf]
        %v2448 = vld [vmem:[#allocation16 + $0x10] sm:$0xf]
        %v2449 = vld [vmem:[#allocation16 + $0x14] sm:$0xf]
        %v2450 = vld [vmem:[#allocation16 + $0x18] sm:$0xf]
        %v2451 = vld [vmem:[#allocation16 + $0x1c] sm:$0xf]
        %v2452 = vld [vmem:[#allocation16 + $0x20] sm:$0xf]
        %v2453 = vld [vmem:[#allocation16 + $0x24] sm:$0xf]
        %v2454 = vld [vmem:[#allocation16 + $0x28] sm:$0xf]
        %v2455 = vld [vmem:[#allocation16 + $0x2c] sm:$0xf]
        %v2456 = vld [vmem:[#allocation16 + $0x30] sm:$0xf]
        %v2457 = vld [vmem:[#allocation16 + $0x34] sm:$0xf]
        %v2458 = vld [vmem:[#allocation16 + $0x38] sm:$0xf]
        %v2459 = vld [vmem:[#allocation16 + $0x3c] sm:$0xf]
        %v2460 = vld [vmem:[#allocation17] sm:$0xf]
        %v2461 = vld [vmem:[#allocation17 + $0x4] sm:$0xf]
        %v2462 = vld [vmem:[#allocation17 + $0x8] sm:$0xf]
        %v2463 = vld [vmem:[#allocation17 + $0xc] sm:$0xf]
        %v2464 = vld [vmem:[#allocation17 + $0x10] sm:$0xf]
        %v2465 = vld [vmem:[#allocation17 + $0x14] sm:$0xf]
        %v2466 = vld [vmem:[#allocation17 + $0x18] sm:$0xf]
        %v2467 = vld [vmem:[#allocation17 + $0x1c] sm:$0xf]
        %v2468 = vld [vmem:[#allocation17 + $0x20] sm:$0xf]
        %v2469 = vld [vmem:[#allocation17 + $0x24] sm:$0xf]
        %v2470 = vld [vmem:[#allocation17 + $0x28] sm:$0xf]
        %v2471 = vld [vmem:[#allocation17 + $0x2c] sm:$0xf]
        %v2472 = vld [vmem:[#allocation17 + $0x30] sm:$0xf]
        %v2473 = vld [vmem:[#allocation17 + $0x34] sm:$0xf]
        %v2474 = vld [vmem:[#allocation17 + $0x38] sm:$0xf]
        %v2475 = vld [vmem:[#allocation17 + $0x3c] sm:$0xf]
        %v2492 = vunpack.c.l.b16 %v2460
        %v2493 = vunpack.c.l.b16 %v2461
        %v2494 = vunpack.c.l.b16 %v2462
        %v2495 = vunpack.c.l.b16 %v2463
        %v2496 = vunpack.c.l.b16 %v2464
        %v2497 = vunpack.c.l.b16 %v2465
        %v2498 = vunpack.c.l.b16 %v2466
        %v2499 = vunpack.c.l.b16 %v2467
        %v2500 = vunpack.c.l.b16 %v2468
        %v2501 = vunpack.c.l.b16 %v2469
        %v2502 = vunpack.c.l.b16 %v2470
        %v2503 = vunpack.c.l.b16 %v2471
        %v2504 = vunpack.c.l.b16 %v2472
        %v2505 = vunpack.c.l.b16 %v2473
        %v2506 = vunpack.c.l.b16 %v2474
        %v2507 = vunpack.c.l.b16 %v2475
        %v2508 = vpack.c.b16 %v2493, %v2492
        %v2509 = vpack.c.b16 %v2495, %v2494
        %v2510 = vpack.c.b16 %v2497, %v2496
        %v2511 = vpack.c.b16 %v2499, %v2498
        %v2512 = vpack.c.b16 %v2501, %v2500
        %v2513 = vpack.c.b16 %v2503, %v2502
        %v2514 = vpack.c.b16 %v2505, %v2504
        %v2515 = vpack.c.b16 %v2507, %v2506
        %2524 = vmatprep.subr.bf16.mxu0 0
        %2525 = vmatpush1.bf16.msra.mxu0 %v2508
        %2526 = vmatprep.subr.bf16.mxu0 0
        %2527 = vmatpush1.bf16.msra.mxu0 %v2509
        %2528 = vmatprep.subr.bf16.mxu0 0
        %2529 = vmatpush1.bf16.msra.mxu0 %v2510
        %2530 = vmatprep.subr.bf16.mxu0 0
        %2531 = vmatpush1.bf16.msra.mxu0 %v2511
        %2532 = vmatprep.subr.bf16.mxu0 0
        %2533 = vmatpush1.bf16.msra.mxu0 %v2512
        %2534 = vmatprep.subr.bf16.mxu0 0
        %2535 = vmatpush1.bf16.msra.mxu0 %v2513
        %2536 = vmatprep.subr.bf16.mxu0 0
        %2537 = vmatpush1.bf16.msra.mxu0 %v2514
        %2538 = vmatprep.subr.bf16.mxu0 0
        %2539 = vmatpush1.bf16.msra.mxu0 %v2515
        %2540 = vmatprep.subr.bf16.mxu0 0
        %2541 = vmatpush1.bf16.msra.mxu0 0
        %2542 = vmatprep.subr.bf16.mxu0 0
        %2543 = vmatpush1.bf16.msra.mxu0 0
        %2544 = vmatprep.subr.bf16.mxu0 0
        %2545 = vmatpush1.bf16.msra.mxu0 0
        %2546 = vmatprep.subr.bf16.mxu0 0
        %2547 = vmatpush1.bf16.msra.mxu0 0
        %2548 = vmatprep.subr.bf16.mxu0 0
        %2549 = vmatpush1.bf16.msra.mxu0 0
        %2550 = vmatprep.subr.bf16.mxu0 0
        %2551 = vmatpush1.bf16.msra.mxu0 0
        %2552 = vmatprep.subr.bf16.mxu0 0
        %2553 = vmatpush1.bf16.msra.mxu0 0
        %2554 = vmatprep.subr.bf16.mxu0 0
        %2555 = vmatpush1.bf16.msra.mxu0 0
        %2556 = vmatprep.mubr.bf16.mxu0 0
        %2557 = vmatmul.mubr.bf16.gmra.mrb[0].mxu0 %v612
        %v2558 = vpop.f32.mrb[0].mxu0
        %v2559 = vadd.f32 0.0, %v2558
        %v2560 = vpop.f32.mrb[0].mxu0
        %v2561 = vpop.f32.mrb[0].mxu0
        %v2562 = vadd.f32 0.0, %v2561
        %v2563 = vpop.f32.mrb[0].mxu0
        %2564 = vmatprep.mubr.bf16.mxu0 0
        %2565 = vmatmul.mubr.bf16.gmra.mrb[0].mxu0 %v613
        %v2566 = vpop.f32.mrb[0].mxu0
        %v2567 = vadd.f32 0.0, %v2566
        %v2568 = vpop.f32.mrb[0].mxu0
        %v2569 = vpop.f32.mrb[0].mxu0
        %v2570 = vadd.f32 0.0, %v2569
        %v2571 = vpop.f32.mrb[0].mxu0
        %2572 = vmatprep.mubr.bf16.mxu0 0
        %2573 = vmatmul.mubr.bf16.gmra.mrb[0].mxu0 %v614
        %v2574 = vpop.f32.mrb[0].mxu0
        %v2575 = vadd.f32 0.0, %v2574
        %v2576 = vpop.f32.mrb[0].mxu0
        %v2577 = vpop.f32.mrb[0].mxu0
        %v2578 = vadd.f32 0.0, %v2577
        %v2579 = vpop.f32.mrb[0].mxu0
        %2580 = vmatprep.mubr.bf16.mxu0 0
        %2581 = vmatmul.mubr.bf16.gmra.mrb[0].mxu0 %v615
        %v2582 = vpop.f32.mrb[0].mxu0
        %v2583 = vadd.f32 0.0, %v2582
        %v2584 = vpop.f32.mrb[0].mxu0
        %v2585 = vpop.f32.mrb[0].mxu0
        %v2586 = vadd.f32 0.0, %v2585
        %v2587 = vpop.f32.mrb[0].mxu0
        %2588 = vmatprep.mubr.bf16.mxu0 0
        %2589 = vmatmul.mubr.bf16.gmra.mrb[0].mxu0 %v616
        %v2590 = vpop.f32.mrb[0].mxu0
        %v2591 = vadd.f32 0.0, %v2590
        %v2592 = vpop.f32.mrb[0].mxu0
        %v2593 = vpop.f32.mrb[0].mxu0
        %v2594 = vadd.f32 0.0, %v2593
        %v2595 = vpop.f32.mrb[0].mxu0
        %2596 = vmatprep.mubr.bf16.mxu0 0
        %2597 = vmatmul.mubr.bf16.gmra.mrb[0].mxu0 %v617
        %v2598 = vpop.f32.mrb[0].mxu0
        %v2599 = vadd.f32 0.0, %v2598
        %v2600 = vpop.f32.mrb[0].mxu0
        %v2601 = vpop.f32.mrb[0].mxu0
        %v2602 = vadd.f32 0.0, %v2601
        %v2603 = vpop.f32.mrb[0].mxu0
        %2604 = vmatprep.mubr.bf16.mxu0 0
        %2605 = vmatmul.mubr.bf16.gmra.mrb[0].mxu0 %v618
        %v2606 = vpop.f32.mrb[0].mxu0
        %v2607 = vadd.f32 0.0, %v2606
        %v2608 = vpop.f32.mrb[0].mxu0
        %v2609 = vpop.f32.mrb[0].mxu0
        %v2610 = vadd.f32 0.0, %v2609
        %v2611 = vpop.f32.mrb[0].mxu0
        %2612 = vmatprep.mubr.bf16.mxu0 0
        %2613 = vmatmul.mubr.bf16.gmra.mrb[0].mxu0 %v619
        %v2614 = vpop.f32.mrb[0].mxu0
        %v2615 = vadd.f32 0.0, %v2614
        %v2616 = vpop.f32.mrb[0].mxu0
        %v2617 = vpop.f32.mrb[0].mxu0
        %v2618 = vadd.f32 0.0, %v2617
        %v2619 = vpop.f32.mrb[0].mxu0
        %2620 = vdwg.mxu0
        %v2637 = vunpack.c.l.b16 %v2444
        %v2638 = vunpack.c.l.b16 %v2445
        %v2639 = vunpack.c.l.b16 %v2446
        %v2640 = vunpack.c.l.b16 %v2447
        %v2641 = vunpack.c.l.b16 %v2448
        %v2642 = vunpack.c.l.b16 %v2449
        %v2643 = vunpack.c.l.b16 %v2450
        %v2644 = vunpack.c.l.b16 %v2451
        %v2645 = vunpack.c.l.b16 %v2452
        %v2646 = vunpack.c.l.b16 %v2453
        %v2647 = vunpack.c.l.b16 %v2454
        %v2648 = vunpack.c.l.b16 %v2455
        %v2649 = vunpack.c.l.b16 %v2456
        %v2650 = vunpack.c.l.b16 %v2457
        %v2651 = vunpack.c.l.b16 %v2458
        %v2652 = vunpack.c.l.b16 %v2459
        %v2653 = vpack.c.b16 %v2638, %v2637
        %v2654 = vpack.c.b16 %v2640, %v2639
        %v2655 = vpack.c.b16 %v2642, %v2641
        %v2656 = vpack.c.b16 %v2644, %v2643
        %v2657 = vpack.c.b16 %v2646, %v2645
        %v2658 = vpack.c.b16 %v2648, %v2647
        %v2659 = vpack.c.b16 %v2650, %v2649
        %v2660 = vpack.c.b16 %v2652, %v2651
        %2669 = vmatprep.subr.bf16.mxu0 0
        %2670 = vmatpush1.bf16.msra.mxu0 %v2653
        %2671 = vmatprep.subr.bf16.mxu0 0
        %2672 = vmatpush1.bf16.msra.mxu0 %v2654
        %2673 = vmatprep.subr.bf16.mxu0 0
        %2674 = vmatpush1.bf16.msra.mxu0 %v2655
        %2675 = vmatprep.subr.bf16.mxu0 0
        %2676 = vmatpush1.bf16.msra.mxu0 %v2656
        %2677 = vmatprep.subr.bf16.mxu0 0
        %2678 = vmatpush1.bf16.msra.mxu0 %v2657
        %2679 = vmatprep.subr.bf16.mxu0 0
        %2680 = vmatpush1.bf16.msra.mxu0 %v2658
        %2681 = vmatprep.subr.bf16.mxu0 0
        %2682 = vmatpush1.bf16.msra.mxu0 %v2659
        %2683 = vmatprep.subr.bf16.mxu0 0
        %2684 = vmatpush1.bf16.msra.mxu0 %v2660
        %2685 = vmatprep.subr.bf16.mxu0 0
        %2686 = vmatpush1.bf16.msra.mxu0 0
        %2687 = vmatprep.subr.bf16.mxu0 0
        %2688 = vmatpush1.bf16.msra.mxu0 0
        %2689 = vmatprep.subr.bf16.mxu0 0
        %2690 = vmatpush1.bf16.msra.mxu0 0
        %2691 = vmatprep.subr.bf16.mxu0 0
        %2692 = vmatpush1.bf16.msra.mxu0 0
        %2693 = vmatprep.subr.bf16.mxu0 0
        %2694 = vmatpush1.bf16.msra.mxu0 0
        %2695 = vmatprep.subr.bf16.mxu0 0
        %2696 = vmatpush1.bf16.msra.mxu0 0
        %2697 = vmatprep.subr.bf16.mxu0 0
        %2698 = vmatpush1.bf16.msra.mxu0 0
        %2699 = vmatprep.subr.bf16.mxu0 0
        %2700 = vmatpush1.bf16.msra.mxu0 0
        %2701 = vmatprep.mubr.bf16.mxu0 0
        %2702 = vmatmul.mubr.bf16.gmra.mrb[0].mxu0 %v2436
        %v2703 = vpop.f32.mrb[0].mxu0
        %v2704 = vadd.f32 %v2559, %v2703
        %v2705 = vpop.f32.mrb[0].mxu0
        %v2706 = vpop.f32.mrb[0].mxu0
        %v2707 = vadd.f32 %v2562, %v2706
        %v2708 = vpop.f32.mrb[0].mxu0
        %2709 = vmatprep.mubr.bf16.mxu0 0
        %2710 = vmatmul.mubr.bf16.gmra.mrb[0].mxu0 %v2437
        %v2711 = vpop.f32.mrb[0].mxu0
        %v2712 = vadd.f32 %v2567, %v2711
        %v2713 = vpop.f32.mrb[0].mxu0
        %v2714 = vpop.f32.mrb[0].mxu0
        %v2715 = vadd.f32 %v2570, %v2714
        %v2716 = vpop.f32.mrb[0].mxu0
        %2717 = vmatprep.mubr.bf16.mxu0 0
        %2718 = vmatmul.mubr.bf16.gmra.mrb[0].mxu0 %v2438
        %v2719 = vpop.f32.mrb[0].mxu0
        %v2720 = vadd.f32 %v2575, %v2719
        %v2721 = vpop.f32.mrb[0].mxu0
        %v2722 = vpop.f32.mrb[0].mxu0
        %v2723 = vadd.f32 %v2578, %v2722
        %v2724 = vpop.f32.mrb[0].mxu0
        %2725 = vmatprep.mubr.bf16.mxu0 0
        %2726 = vmatmul.mubr.bf16.gmra.mrb[0].mxu0 %v2439
        %v2727 = vpop.f32.mrb[0].mxu0
        %v2728 = vadd.f32 %v2583, %v2727
        %v2729 = vpop.f32.mrb[0].mxu0
        %v2730 = vpop.f32.mrb[0].mxu0
        %v2731 = vadd.f32 %v2586, %v2730
        %v2732 = vpop.f32.mrb[0].mxu0
        %2733 = vmatprep.mubr.bf16.mxu0 0
        %2734 = vmatmul.mubr.bf16.gmra.mrb[0].mxu0 %v2440
        %v2735 = vpop.f32.mrb[0].mxu0
        %v2736 = vadd.f32 %v2591, %v2735
        %v2737 = vpop.f32.mrb[0].mxu0
        %v2738 = vpop.f32.mrb[0].mxu0
        %v2739 = vadd.f32 %v2594, %v2738
        %v2740 = vpop.f32.mrb[0].mxu0
        %2741 = vmatprep.mubr.bf16.mxu0 0
        %2742 = vmatmul.mubr.bf16.gmra.mrb[0].mxu0 %v2441
        %v2743 = vpop.f32.mrb[0].mxu0
        %v2744 = vadd.f32 %v2599, %v2743
        %v2745 = vpop.f32.mrb[0].mxu0
        %v2746 = vpop.f32.mrb[0].mxu0
        %v2747 = vadd.f32 %v2602, %v2746
        %v2748 = vpop.f32.mrb[0].mxu0
        %2749 = vmatprep.mubr.bf16.mxu0 0
        %2750 = vmatmul.mubr.bf16.gmra.mrb[0].mxu0 %v2442
        %v2751 = vpop.f32.mrb[0].mxu0
        %v2752 = vadd.f32 %v2607, %v2751
        %v2753 = vpop.f32.mrb[0].mxu0
        %v2754 = vpop.f32.mrb[0].mxu0
        %v2755 = vadd.f32 %v2610, %v2754
        %v2756 = vpop.f32.mrb[0].mxu0
        %2757 = vmatprep.mubr.bf16.mxu0 0
        %2758 = vmatmul.mubr.bf16.gmra.mrb[0].mxu0 %v2443
        %v2759 = vpop.f32.mrb[0].mxu0
        %v2760 = vadd.f32 %v2615, %v2759
        %v2761 = vpop.f32.mrb[0].mxu0
        %v2762 = vpop.f32.mrb[0].mxu0
        %v2763 = vadd.f32 %v2618, %v2762
        %v2764 = vpop.f32.mrb[0].mxu0
        %2765 = vdwg.mxu0
        %v2766 = vld [vmem:[#allocation19] sm:$0x1]
        %v2768 = vlaneseq
        %v2769 = vshrl.u32 %v2768, 7
        %v2770 = vsub.s32 0, %v2769
        %v2771 = vrot.slane %v2766, %v2770
        %v2773 = vadd.f32 %v2704, %v2771
        %v2774 = vadd.f32 %v2707, %v2771
        %v2775 = vadd.f32 %v2712, %v2771
        %v2776 = vadd.f32 %v2715, %v2771
        %v2777 = vadd.f32 %v2720, %v2771
        %v2778 = vadd.f32 %v2723, %v2771
        %v2779 = vadd.f32 %v2728, %v2771
        %v2780 = vadd.f32 %v2731, %v2771
        %v2781 = vadd.f32 %v2736, %v2771
        %v2782 = vadd.f32 %v2739, %v2771
        %v2783 = vadd.f32 %v2744, %v2771
        %v2784 = vadd.f32 %v2747, %v2771
        %v2785 = vadd.f32 %v2752, %v2771
        %v2786 = vadd.f32 %v2755, %v2771
        %v2787 = vadd.f32 %v2760, %v2771
        %v2788 = vadd.f32 %v2763, %v2771
        %v2789 = vpack.c.bf16 %v2774, %v2773
        %v2790 = vpack.c.bf16 %v2776, %v2775
        %v2791 = vpack.c.bf16 %v2778, %v2777
        %v2792 = vpack.c.bf16 %v2780, %v2779
        %v2793 = vpack.c.bf16 %v2782, %v2781
        %v2794 = vpack.c.bf16 %v2784, %v2783
        %v2795 = vpack.c.bf16 %v2786, %v2785
        %v2796 = vpack.c.bf16 %v2788, %v2787
        %v2805 = vunpack.c.l.b16 %v2789
        %v2806 = vunpack.c.h.b16 %v2789
        %v2807 = vunpack.c.l.b16 %v2790
        %v2808 = vunpack.c.h.b16 %v2790
        %v2809 = vunpack.c.l.b16 %v2791
        %v2810 = vunpack.c.h.b16 %v2791
        %v2811 = vunpack.c.l.b16 %v2792
        %v2812 = vunpack.c.h.b16 %v2792
        %v2813 = vunpack.c.l.b16 %v2793
        %v2814 = vunpack.c.h.b16 %v2793
        %v2815 = vunpack.c.l.b16 %v2794
        %v2816 = vunpack.c.h.b16 %v2794
        %v2817 = vunpack.c.l.b16 %v2795
        %v2818 = vunpack.c.h.b16 %v2795
        %v2819 = vunpack.c.l.b16 %v2796
        %v2820 = vunpack.c.h.b16 %v2796
        %v2821 = vpack.c.b16 %v2805, %v2805
        %v2822 = vpack.c.b16 %v2806, %v2806
        %v2823 = vpack.c.b16 %v2807, %v2807
        %v2824 = vpack.c.b16 %v2808, %v2808
        %v2825 = vpack.c.b16 %v2809, %v2809
        %v2826 = vpack.c.b16 %v2810, %v2810
        %v2827 = vpack.c.b16 %v2811, %v2811
        %v2828 = vpack.c.b16 %v2812, %v2812
        %v2829 = vpack.c.b16 %v2813, %v2813
        %v2830 = vpack.c.b16 %v2814, %v2814
        %v2831 = vpack.c.b16 %v2815, %v2815
        %v2832 = vpack.c.b16 %v2816, %v2816
        %v2833 = vpack.c.b16 %v2817, %v2817
        %v2834 = vpack.c.b16 %v2818, %v2818
        %v2835 = vpack.c.b16 %v2819, %v2819
        %v2836 = vpack.c.b16 %v2820, %v2820
        %2853 = vst [vmem:[%s446] sm:$0xf] %v2821
        %2854 = vst [vmem:[%s446 + $0x4] sm:$0xf] %v2822
        %2855 = vst [vmem:[%s446 + $0x8] sm:$0xf] %v2823
        %2856 = vst [vmem:[%s446 + $0xc] sm:$0xf] %v2824
        %2857 = vst [vmem:[%s446 + $0x10] sm:$0xf] %v2825
        %2858 = vst [vmem:[%s446 + $0x14] sm:$0xf] %v2826
        %2859 = vst [vmem:[%s446 + $0x18] sm:$0xf] %v2827
        %2860 = vst [vmem:[%s446 + $0x1c] sm:$0xf] %v2828
        %2861 = vst [vmem:[%s446 + $0x20] sm:$0xf] %v2829
        %2862 = vst [vmem:[%s446 + $0x24] sm:$0xf] %v2830
        %2863 = vst [vmem:[%s446 + $0x28] sm:$0xf] %v2831
        %2864 = vst [vmem:[%s446 + $0x2c] sm:$0xf] %v2832
        %2865 = vst [vmem:[%s446 + $0x30] sm:$0xf] %v2833
        %2866 = vst [vmem:[%s446 + $0x34] sm:$0xf] %v2834
        %2867 = vst [vmem:[%s446 + $0x38] sm:$0xf] %v2835
        %2868 = vst [vmem:[%s446 + $0x3c] sm:$0xf] %v2836
        %s2869 = sand.u32 %s240, 1
        %s2870 = scalar_lea.sflag [#allocation7], %s2869
        %s2871 = sand.u32 %s240, 1
        %s2872 = smul.addr %s2871, 64
        %s2873 = scalar_lea.vmem [#allocation20], %s2872
        // Predicated region
        $region125: #{tpu_custom_call.1} parent=55 // pred_check
          %p2874 = pneg %p250
        $region126: #{tpu_custom_call.1} parent=55 // pred_check_branch
          %2876 = sbr.rel (%p2874) target = $region128
        $region127: #{tpu_custom_call.1} parent=55 // pred_region
          %s2877 = smul.u32 8, %s33
          %s2879 = ssub.s32 1024, 1024
          %2880 = vsyncadd %s2870, %s2879
          %s2881 = smul.addr %s2877, 2
          %s2882 = smul.addr %s34, 32
          %s2883 = sadd.s32 %s2881, %s2882
          %s2884 = smul.addr %s2883, 64
          %s2885 = scalar_lea.hbm %s10, %s2884
          %s2886 = sshll.u32 %s2873, 4
          %s2887 = int_to_ptr.vmem [resolvable:$true] %s2886
          %2892 = dma.vmem_to_hbm [thread:$0]  %s2887, 1024, %s2885, %s2870, 64, 64, 4
        $region128: #{tpu_custom_call.1} parent=55 // pred_fallthru
          _
      $region56: #{tpu_custom_call.1} parent=5 // pred_fallthru
        _
      %p2893 = scmp.le.s32.totalorder 2, %s24
      // Predicated region
      $region129: #{tpu_custom_call.1} parent=5 // pred_check
        %p2894 = pneg %p2893
      $region130: #{tpu_custom_call.1} parent=5 // pred_check_branch
        %2896 = sbr.rel (%p2894) target = $region132
      $region131: #{tpu_custom_call.1} parent=5 // pred_region
        %s2897 = ssub.s32 %s24, 2
        // Predicated region
        $region133: #{tpu_custom_call.1} parent=131 // pred_check
          %p2898 = pneg %p256
        $region134: #{tpu_custom_call.1} parent=131 // pred_check_branch
          %2900 = sbr.rel (%p2898) target = $region136
        $region135: #{tpu_custom_call.1} parent=131 // pred_region
          %s2901 = sand.u32 %s241, 1
          %s2902 = scalar_lea.sflag [#allocation7], %s2901
          %s2903 = sand.u32 %s241, 1
          %s2904 = smul.addr %s2903, 64
          %s2905 = scalar_lea.vmem [#allocation20], %s2904
          %2906 = dma.done %s2902, 1024
        $region136: #{tpu_custom_call.1} parent=131 // pred_fallthru
          _
      $region132: #{tpu_custom_call.1} parent=5 // pred_fallthru
        _
    $region6: #{tpu_custom_call.1} parent=1 // loop_footer
      %s28 = sadd.s32 1, %s24
    $region7: #{tpu_custom_call.1} parent=1 // loop_footer_branch
      %23 = sbr.rel target = $region3
    $region8: #{tpu_custom_call.1} parent=1 // loop_exit
      _
    %2907 = vsyncpa [#allocation6], 1
    %s2908 = scalar_lea.sflag [#allocation6], 1
    %2909 = vsyncpa %s2908, 1
    %2910 = vsyncpa [#allocation9], 1
    %2911 = vsyncpa [#allocation12], 1
    %2912 = vsyncpa [#allocation15], 1
    %2913 = vsyncpa [#allocation18], 1
    %2914 = vsyncpa [#allocation7], 1
    %s2915 = scalar_lea.sflag [#allocation7], 1
    %2916 = vsyncpa %s2915, 1
  %2917 = vsyncmov [#allocation3]
  %s2918 = vpop.sfrf %2917
  %p2919 = scmp.eq.s32.totalorder %s2918, 0
  %p2920 = pneg %p2919
  %2922 = shalt.err (%p2920)
  %s2923 = scalar_lea.sflag [#allocation3], 1
  %2924 = vsyncmov %s2923
  %s2925 = vpop.sfrf %2924
  %p2926 = scmp.eq.s32.totalorder %s2925, 0
  %p2927 = pneg %p2926
  %2929 = shalt.err (%p2927)
  %s2930 = scalar_lea.sflag [#allocation3], 2
  %2931 = vsyncmov %s2930
  %s2932 = vpop.sfrf %2931
  %p2933 = scmp.eq.s32.totalorder %s2932, 0
  %p2934 = pneg %p2933
  %2936 = shalt.err (%p2934)
  %s2937 = scalar_lea.sflag [#allocation3], 3
  %2938 = vsyncmov %s2937
  %s2939 = vpop.sfrf %2938
  %p2940 = scmp.eq.s32.totalorder %s2939, 0
  %p2941 = pneg %p2940
  %2943 = shalt.err (%p2941)
  %s2944 = scalar_lea.sflag [#allocation3], 4
  %2945 = vsyncmov %s2944
  %s2946 = vpop.sfrf %2945
  %p2947 = scmp.eq.s32.totalorder %s2946, 0
  %p2948 = pneg %p2947
  %2950 = shalt.err (%p2948)
  %s2951 = scalar_lea.sflag [#allocation3], 5
  %2952 = vsyncmov %s2951
  %s2953 = vpop.sfrf %2952
  %p2954 = scmp.eq.s32.totalorder %s2953, 0
  %p2955 = pneg %p2954
  %2957 = shalt.err (%p2955)

</llo_original>
